<compile_context>
chip_gen: v6e
topology: v6e:2x2x1
jax: 0.10.0
libtpu: 0.0.40
codegen_flags: <defaults>
</compile_context>

<pallas_src>
import jax
import jax.numpy as jnp
from jax.experimental import pallas as pl
from jax.experimental.pallas import tpu as pltpu

EPS = 1e-5
BLOCK_CO = 176   # output-channel block width: 344 -> grid=(2,), balanced on v7x megacore


def _fused_kernel(x_ref, g_ref, w_ref, gamma_ref, beta_ref, o_ref):
    # x_ref:     (C_in, M)   activations, M = N*H*W                (f32)
    # g_ref:     (1, C_in)   SE gate logits, lane-dense row        (f32)
    # w_ref:     (BLK, C_in) 1x1 conv weight slab                  (bf16)
    # gamma_ref: (BLK, 1), beta_ref: (BLK, 1)                      (f32)
    # o_ref:     (BLK, M)                                          (f32)
    gate = jax.nn.sigmoid(g_ref[...])                       # f32, ~17 vregs on the EUP
    # Fold the per-input-channel gate into the weight columns (identical to gating x).
    # f32 multiply (v5e has no bf16 VPU), then bf16 operands for the MXU.
    w_gated = (w_ref[...] * gate).astype(jnp.bfloat16)      # (BLK, C_in)
    xb = x_ref[...].astype(jnp.bfloat16)                    # (C_in, M)
    y = jnp.dot(w_gated, xb,
                preferred_element_type=jnp.float32)         # (BLK, M), f32 accumulation
    # Training-mode BatchNorm: biased batch stats over M per output channel
    # (per row) -> exact under the C_out grid split.  Padded rows of a partial
    # last block may produce inf/NaN stats, but their stores are masked out.
    mean = jnp.mean(y, axis=1, keepdims=True)                # (BLK, 1)
    c = y - mean
    var = jnp.mean(c * c, axis=1, keepdims=True)             # biased variance
    scale = gamma_ref[...] * jax.lax.rsqrt(var + EPS)        # fold BN affine -> one FMA pass
    shift = beta_ref[...] - mean * scale
    o_ref[...] = y * scale + shift


@jax.jit
def fused_sigmoid_mul_conv_bn(x_nchw, gate_nc11, w_oihw, gamma, beta):
    """x: (N, C_in, H, W) f32; gate: (1, C_in, 1, 1) f32;
    w: (C_out, C_in, 1, 1) (ideally bf16; cast otherwise); gamma/beta: (C_out,).
    Returns (N, C_out, H, W) f32."""
    N, C_in, H, W = x_nchw.shape
    C_out = w_oihw.shape[0]
    M = N * H * W

    # (C, M) layout.  For N == 1 (the module's case) this is a pure reshape.
    if N == 1:
        x2d = x_nchw.reshape(C_in, M)
    else:
        x2d = jnp.moveaxis(x_nchw, 1, 0).reshape(C_in, M)
    g2d = gate_nc11.reshape(1, C_in)                          # lane-dense gate row
    w2d = w_oihw.reshape(C_out, C_in).astype(jnp.bfloat16)    # no-op if already bf16
    gamma2d = gamma.reshape(C_out, 1).astype(jnp.float32)
    beta2d = beta.reshape(C_out, 1).astype(jnp.float32)

    blk = min(BLOCK_CO, C_out)
    if blk != C_out:
        blk = max(8, (blk // 8) * 8)      # sublane dim of C_out blocks must be 8-aligned
    grid = (pl.cdiv(C_out, blk),)

    out2d = pl.pallas_call(
        _fused_kernel,
        out_shape=jax.ShapeDtypeStruct((C_out, M), jnp.float32),
        grid=grid,
        in_specs=[
            pl.BlockSpec((C_in, M), lambda j: (0, 0)),     # x: stays resident across grid
            pl.BlockSpec((1, C_in), lambda j: (0, 0)),     # gate logits (lane-dense row)
            pl.BlockSpec((blk, C_in), lambda j: (j, 0)),   # weight slab (double-buffered)
            pl.BlockSpec((blk, 1), lambda j: (j, 0)),      # gamma
            pl.BlockSpec((blk, 1), lambda j: (j, 0)),      # beta
        ],
        out_specs=pl.BlockSpec((blk, M), lambda j: (j, 0)),
        compiler_params=pltpu.CompilerParams(
            dimension_semantics=("parallel",),             # grid=(2,): one step per TC on v7x
            vmem_limit_bytes=16 << 20,                     # working set ~2.5 MiB
        ),
    )(x2d, g2d, w2d, gamma2d, beta2d)

    if N == 1:
        return out2d.reshape(1, C_out, H, W)
    return jnp.moveaxis(out2d.reshape(C_out, N, H, W), 0, 1)


def _reference_f32(x_nchw, gate_nc11, w_oihw, gamma, beta):
    """Full-f32 reference with PyTorch forward semantics."""
    xs = x_nchw * jax.nn.sigmoid(gate_nc11)
    y = jax.lax.conv_general_dilated(
        xs, w_oihw, window_strides=(1, 1), padding="VALID",
        dimension_numbers=("NCHW", "OIHW", "NCHW"))
    mean = jnp.mean(y, axis=(0, 2, 3), keepdims=True)
    var = jnp.mean((y - mean) ** 2, axis=(0, 2, 3), keepdims=True)
    y_hat = (y - mean) / jnp.sqrt(var + EPS)
    return y_hat * gamma.reshape(1, -1, 1, 1) + beta.reshape(1, -1, 1, 1)


def _reference_bf16_matmul(x_nchw, gate_nc11, w_bf16, gamma, beta):
    """Plain-JAX reference at the kernel's precision (gate folded into bf16 weight,
    bf16 activations, f32 MXU accumulation)."""
    N, C_in, H, W = x_nchw.shape
    C_out = w_bf16.shape[0]
    gate = jax.nn.sigmoid(gate_nc11.reshape(1, C_in).astype(jnp.float32))
    w_gated = (w_bf16.reshape(C_out, C_in) * gate).astype(jnp.bfloat16)
    xb = x_nchw.reshape(C_in, H * W).astype(jnp.bfloat16)
    y = jnp.dot(w_gated, xb, preferred_element_type=jnp.float32)
    mean = jnp.mean(y, axis=1, keepdims=True)
    var = jnp.mean((y - mean) ** 2, axis=1, keepdims=True)
    out = (y - mean) * jax.lax.rsqrt(var + EPS) * gamma.reshape(-1, 1) + beta.reshape(-1, 1)
    return out.reshape(C_out, H, W)[None]


if __name__ == "__main__":
    key = jax.random.PRNGKey(0)
    k1, k2, k3 = jax.random.split(key, 3)

    # Shapes from the module: x492 (1, 2064, 7, 7), x496 (1, 2064, 1, 1),
    # Conv2d(2064, 344, 1x1, bias=False), BatchNorm2d(344).
    N, C_in, H, W = 1, 2064, 7, 7
    C_out = 344

    x492 = jax.random.normal(k1, (N, C_in, H, W), dtype=jnp.float32)
    x496 = jax.random.normal(k2, (1, C_in, 1, 1), dtype=jnp.float32)

    conv_w_f32 = jax.random.normal(k3, (C_out, C_in, 1, 1), dtype=jnp.float32) * 0.02
    conv_w_bf16 = conv_w_f32.astype(jnp.bfloat16)   # weights stored/passed in bf16
    bn_gamma = jnp.ones((C_out,), dtype=jnp.float32)   # PyTorch default init
    bn_beta = jnp.zeros((C_out,), dtype=jnp.float32)

    out = fused_sigmoid_mul_conv_bn(x492, x496, conv_w_bf16, bn_gamma, bn_beta)
    out = jax.block_until_ready(out)
    assert out.shape == (N, C_out, H, W)

    # Kernel logic check vs a plain-JAX model at matched (bf16-matmul) precision.
    ref_mp = _reference_bf16_matmul(x492, x496, conv_w_bf16, bn_gamma, bn_beta)
    assert jnp.allclose(out, ref_mp, atol=2e-3, rtol=2e-3)

    # Check vs the full-f32 PyTorch-semantics reference; tolerance accounts for
    # bf16 MXU operands over the K=2064 reduction followed by BN normalization.
    ref_f32 = _reference_f32(x492, x496, conv_w_f32, bn_gamma, bn_beta)
    assert jnp.allclose(out, ref_f32, atol=2e-2, rtol=2e-2)

    print("KERNEL_OK")
</pallas_src>

<mosaic_0001>
module attributes {stable_mosaic.version = 11 : i64} {
  func.func @_fused_kernel(%arg0: i32, %arg1: memref<2064x49xf32, #tpu.memory_space<vmem>>, %arg2: memref<1x2064xf32, #tpu.memory_space<vmem>>, %arg3: memref<176x2064xbf16, #tpu.memory_space<vmem>>, %arg4: memref<176x1xf32, #tpu.memory_space<vmem>>, %arg5: memref<176x1xf32, #tpu.memory_space<vmem>>, %arg6: memref<176x49xf32, #tpu.memory_space<vmem>>) attributes {dimension_semantics = [#tpu.dimension_semantics<parallel>], iteration_bounds = array<i64: 2>, scalar_prefetch = 0 : i64, scratch_operands = 0 : i64, tpu.core_type = #tpu.core_type<tc>, window_params = [{pipeline_mode = #tpu.pipeline_mode<synchronous>, transform_indices = @transform_0, window_bounds = array<i64: 2064, 49>}, {pipeline_mode = #tpu.pipeline_mode<synchronous>, transform_indices = @transform_1, window_bounds = array<i64: 1, 2064>}, {transform_indices = @transform_2, window_bounds = array<i64: 176, 2064>}, {transform_indices = @transform_3, window_bounds = array<i64: 176, 1>}, {transform_indices = @transform_4, window_bounds = array<i64: 176, 1>}, {transform_indices = @transform_5, window_bounds = array<i64: 176, 49>}]} {
    %c0 = arith.constant 0 : index
    %c0_0 = arith.constant 0 : index
    %0 = vector.load %arg2[%c0, %c0_0] : memref<1x2064xf32, #tpu.memory_space<vmem>>, vector<1x2064xf32>
    %1 = arith.negf %0 : vector<1x2064xf32>
    %2 = math.exp %1 : vector<1x2064xf32>
    %cst = arith.constant 1.000000e+00 : f32
    %3 = vector.broadcast %cst : f32 to vector<1x2064xf32>
    %4 = arith.addf %3, %2 : vector<1x2064xf32>
    %5 = arith.divf %3, %4 : vector<1x2064xf32>
    %c0_1 = arith.constant 0 : index
    %c0_2 = arith.constant 0 : index
    %6 = vector.load %arg3[%c0_1, %c0_2] : memref<176x2064xbf16, #tpu.memory_space<vmem>>, vector<176x2064xbf16>
    %7 = arith.extf %6 : vector<176x2064xbf16> to vector<176x2064xf32>
    %8 = vector.broadcast %5 : vector<1x2064xf32> to vector<176x2064xf32>
    %9 = arith.mulf %7, %8 : vector<176x2064xf32>
    %10 = arith.truncf %9 : vector<176x2064xf32> to vector<176x2064xbf16>
    %c0_3 = arith.constant 0 : index
    %c0_4 = arith.constant 0 : index
    %11 = vector.load %arg1[%c0_3, %c0_4] : memref<2064x49xf32, #tpu.memory_space<vmem>>, vector<2064x49xf32>
    %12 = arith.truncf %11 : vector<2064x49xf32> to vector<2064x49xbf16>
    %cst_5 = arith.constant dense<0.000000e+00> : vector<176x49xf32>
    %13 = tpu.matmul %10, %12, %cst_5 {dimension_numbers = #tpu.dot_dimension_numbers<[1], [0], [0], [1], [0, 0, 1, 1], [], []>} : vector<176x2064xbf16>, vector<2064x49xbf16>, vector<176x49xf32> -> vector<176x49xf32>
    %cst_6 = arith.constant dense<0.000000e+00> : vector<176xf32>
    %14 = vector.multi_reduction <add>, %13, %cst_6 [1] : vector<176x49xf32> to vector<176xf32>
    %15 = vector.shape_cast %14 : vector<176xf32> to vector<176x1xf32>
    %cst_7 = arith.constant 4.900000e+01 : f32
    %16 = vector.broadcast %cst_7 : f32 to vector<176x1xf32>
    %17 = arith.divf %15, %16 : vector<176x1xf32>
    %18 = vector.broadcast %17 : vector<176x1xf32> to vector<176x49xf32>
    %19 = arith.subf %13, %18 : vector<176x49xf32>
    %20 = arith.mulf %19, %19 : vector<176x49xf32>
    %cst_8 = arith.constant dense<0.000000e+00> : vector<176xf32>
    %21 = vector.multi_reduction <add>, %20, %cst_8 [1] : vector<176x49xf32> to vector<176xf32>
    %22 = vector.shape_cast %21 : vector<176xf32> to vector<176x1xf32>
    %cst_9 = arith.constant 4.900000e+01 : f32
    %23 = vector.broadcast %cst_9 : f32 to vector<176x1xf32>
    %24 = arith.divf %22, %23 : vector<176x1xf32>
    %c0_10 = arith.constant 0 : index
    %c0_11 = arith.constant 0 : index
    %25 = vector.load %arg4[%c0_10, %c0_11] : memref<176x1xf32, #tpu.memory_space<vmem>>, vector<176x1xf32>
    %cst_12 = arith.constant 9.99999974E-6 : f32
    %26 = vector.broadcast %cst_12 : f32 to vector<176x1xf32>
    %27 = arith.addf %24, %26 : vector<176x1xf32>
    %28 = math.rsqrt %27 : vector<176x1xf32>
    %29 = arith.mulf %25, %28 : vector<176x1xf32>
    %c0_13 = arith.constant 0 : index
    %c0_14 = arith.constant 0 : index
    %30 = vector.load %arg5[%c0_13, %c0_14] : memref<176x1xf32, #tpu.memory_space<vmem>>, vector<176x1xf32>
    %31 = arith.mulf %17, %29 : vector<176x1xf32>
    %32 = arith.subf %30, %31 : vector<176x1xf32>
    %33 = vector.broadcast %29 : vector<176x1xf32> to vector<176x49xf32>
    %34 = arith.mulf %13, %33 : vector<176x49xf32>
    %35 = vector.broadcast %32 : vector<176x1xf32> to vector<176x49xf32>
    %36 = arith.addf %34, %35 : vector<176x49xf32>
    %c0_15 = arith.constant 0 : index
    %c0_16 = arith.constant 0 : index
    %37 = vector.load %arg6[%c0_15, %c0_16] : memref<176x49xf32, #tpu.memory_space<vmem>>, vector<176x49xf32>
    tpu.vector_store %arg6[%c0_15, %c0_16], %36 {strides = array<i32>} : memref<176x49xf32, #tpu.memory_space<vmem>>, vector<176x49xf32>,
    return
  }
  func.func @transform_0(%arg0: i32) -> (i32, i32) {
    %c0_i32 = arith.constant 0 : i32
    %c0_i32_0 = arith.constant 0 : i32
    %c0_i32_1 = arith.constant 0 : i32
    return %c0_i32, %c0_i32_0 : i32, i32
  }
  func.func @transform_1(%arg0: i32) -> (i32, i32) {
    %c0_i32 = arith.constant 0 : i32
    %c0_i32_0 = arith.constant 0 : i32
    %c0_i32_1 = arith.constant 0 : i32
    return %c0_i32, %c0_i32_0 : i32, i32
  }
  func.func @transform_2(%arg0: i32) -> (i32, i32) {
    %c0_i32 = arith.constant 0 : i32
    %c0_i32_0 = arith.constant 0 : i32
    return %arg0, %c0_i32 : i32, i32
  }
  func.func @transform_3(%arg0: i32) -> (i32, i32) {
    %c0_i32 = arith.constant 0 : i32
    %c0_i32_0 = arith.constant 0 : i32
    return %arg0, %c0_i32 : i32, i32
  }
  func.func @transform_4(%arg0: i32) -> (i32, i32) {
    %c0_i32 = arith.constant 0 : i32
    %c0_i32_0 = arith.constant 0 : i32
    return %arg0, %c0_i32 : i32, i32
  }
  func.func @transform_5(%arg0: i32) -> (i32, i32) {
    %c0_i32 = arith.constant 0 : i32
    %c0_i32_0 = arith.constant 0 : i32
    return %arg0, %c0_i32 : i32, i32
  }
}

</mosaic_0001>

<llo_original>
// kernel: fused_sigmoid_mul_conv_bn.1
$region0: #{fused_sigmoid_mul_conv_bn.1}
  #allocation0 [shape = 'u32[]', space=smem, size = 0x4, offset = 0x4, fixed_abs, tag = 'smem constant byte address 0x4 - core index']
  #allocation1 [shape = 'u32[144,128]{1,0:T(1,128)}', space=vmem, size = 0x12000, scoped, tag = 'internal scratch']
  %s0 = inlined_call_operand.vmem [shape: f32[2064,49], index: 0, kind: input, shape index: {}]
  %s1 = inlined_call_operand.vmem [shape: f32[1,2064], index: 1, kind: input, shape index: {}]
  %s2 = inlined_call_operand.vmem [shape: bf16[344,2064], index: 2, kind: input, shape index: {}]
  %s3 = inlined_call_operand.vmem [shape: f32[344,1], index: 3, kind: input, shape index: {}]
  %s4 = inlined_call_operand.vmem [shape: f32[344,1], index: 4, kind: input, shape index: {}]
  %s5 = inlined_call_operand.vmem [shape: f32[344,49], index: 5, kind: output, shape index: {}]
  %s6 = sld [smem:[#allocation0]]
  $region101: #{fused_sigmoid_mul_conv_bn.1} parent=0
    _
  %s8 = ssub.s32 1, %s6
  %s9 = scalar_select 0, %s8, %s6
  $region1: #{fused_sigmoid_mul_conv_bn.1} parent=0
    #allocation2 [shape = 'u8[180224]{0}', space=vmem, size = 0x2c000, scoped, tag = 'output window, operand 0']
    loop: start=0, step=1, limit=4
    $region2: #{fused_sigmoid_mul_conv_bn.1} parent=1 // loop_pre_header
      _
    $region3: #{fused_sigmoid_mul_conv_bn.1} parent=1 // loop_header
      %s11 = sphi 0, %s15
      %p12 = scmp.ge.s32.totalorder %s11, 4
      %s19 = sphi 0, %s19
      %s21 = sphi 0, %s19
      %s22 = sphi 0, %s21
      %s36 = sphi 0, %s22
      %s40 = sphi 0, %s40
      %s42 = sphi 0, %s40
      %s43 = sphi 0, %s42
      %s57 = sphi 0, %s43
      %s63 = sphi 0, %s65
      %s66 = sphi 0, %s63
      %s67 = sphi 0, %s66
      %s83 = sphi 0, %s67
      %s89 = sphi 0, %s91
      %s92 = sphi 0, %s89
      %s93 = sphi 0, %s92
      %s109 = sphi 0, %s93
      %s115 = sphi 0, %s117
      %s118 = sphi 0, %s115
      %s119 = sphi 0, %s118
      %s135 = sphi 0, %s119
      %s141 = sphi 0, %s143
      %s144 = sphi 0, %s141
      %s145 = sphi 0, %s144
      %s161 = sphi 0, %s145
    $region4: #{fused_sigmoid_mul_conv_bn.1} parent=1 // loop_header_branch
      %14 = sbr.rel (%p12) target = $region8
    $region5: #{fused_sigmoid_mul_conv_bn.1} parent=1 // loop_body
      %s16 = ssub.s32 %s11, 1
      %s17 = ssub.s32 %s11, 2
      %s18 = sadd.s32 %s11, 1
      %s20 = sadd.s32 %s19, 1
      %p23 = scmp.eq.s32.totalorder %s11, 1
      %p24 = scmp.ne.s32.totalorder %s19, %s21
      %p25 = scmp.eq.s32.totalorder %s11, 0
      %p26 = por %p24, %p25
      %p27 = scmp.ne.s32.totalorder %s19, %s21
      %p28 = scmp.eq.s32.totalorder %s16, 1
      %p29 = por %p27, %p28
      %p30 = scmp.ne.s32.totalorder %s21, %s22
      %p31 = scmp.eq.s32.totalorder %s16, 0
      %p32 = por %p30, %p31
      %p33 = scmp.ne.s32.totalorder %s21, %s22
      %p34 = scmp.eq.s32.totalorder %s17, 1
      %p35 = por %p33, %p34
      %p37 = scmp.ne.s32.totalorder %s22, %s36
      %p38 = scmp.eq.s32.totalorder %s17, 0
      %p39 = por %p37, %p38
      %s41 = sadd.s32 %s40, 1
      %p44 = scmp.eq.s32.totalorder %s11, 1
      %p45 = scmp.ne.s32.totalorder %s40, %s42
      %p46 = scmp.eq.s32.totalorder %s11, 0
      %p47 = por %p45, %p46
      %p48 = scmp.ne.s32.totalorder %s40, %s42
      %p49 = scmp.eq.s32.totalorder %s16, 1
      %p50 = por %p48, %p49
      %p51 = scmp.ne.s32.totalorder %s42, %s43
      %p52 = scmp.eq.s32.totalorder %s16, 0
      %p53 = por %p51, %p52
      %p54 = scmp.ne.s32.totalorder %s42, %s43
      %p55 = scmp.eq.s32.totalorder %s17, 1
      %p56 = por %p54, %p55
      %p58 = scmp.ne.s32.totalorder %s43, %s57
      %p59 = scmp.eq.s32.totalorder %s17, 0
      %p60 = por %p58, %p59
      %s61 = ssub.s32 %s11, %s18
      %p62 = scmp.eq.s32.totalorder %s61, 0
      %s64 = sadd.s32 %s63, 1
      %s65 = scalar_select %p62, %s63, %s64
      %p68 = pneg %p62
      %p69 = scmp.eq.s32.totalorder %s11, 1
      %p70 = por %p68, %p69
      %p71 = scmp.ne.s32.totalorder %s63, %s66
      %p72 = scmp.eq.s32.totalorder %s11, 0
      %p73 = por %p71, %p72
      %p74 = scmp.ne.s32.totalorder %s63, %s66
      %p75 = scmp.eq.s32.totalorder %s16, 1
      %p76 = por %p74, %p75
      %p77 = scmp.ne.s32.totalorder %s66, %s67
      %p78 = scmp.eq.s32.totalorder %s16, 0
      %p79 = por %p77, %p78
      %p80 = scmp.ne.s32.totalorder %s66, %s67
      %p81 = scmp.eq.s32.totalorder %s17, 1
      %p82 = por %p80, %p81
      %p84 = scmp.ne.s32.totalorder %s67, %s83
      %p85 = scmp.eq.s32.totalorder %s17, 0
      %p86 = por %p84, %p85
      %s87 = ssub.s32 %s11, %s18
      %p88 = scmp.eq.s32.totalorder %s87, 0
      %s90 = sadd.s32 %s89, 1
      %s91 = scalar_select %p88, %s89, %s90
      %p94 = pneg %p88
      %p95 = scmp.eq.s32.totalorder %s11, 1
      %p96 = por %p94, %p95
      %p97 = scmp.ne.s32.totalorder %s89, %s92
      %p98 = scmp.eq.s32.totalorder %s11, 0
      %p99 = por %p97, %p98
      %p100 = scmp.ne.s32.totalorder %s89, %s92
      %p101 = scmp.eq.s32.totalorder %s16, 1
      %p102 = por %p100, %p101
      %p103 = scmp.ne.s32.totalorder %s92, %s93
      %p104 = scmp.eq.s32.totalorder %s16, 0
      %p105 = por %p103, %p104
      %p106 = scmp.ne.s32.totalorder %s92, %s93
      %p107 = scmp.eq.s32.totalorder %s17, 1
      %p108 = por %p106, %p107
      %p110 = scmp.ne.s32.totalorder %s93, %s109
      %p111 = scmp.eq.s32.totalorder %s17, 0
      %p112 = por %p110, %p111
      %s113 = ssub.s32 %s11, %s18
      %p114 = scmp.eq.s32.totalorder %s113, 0
      %s116 = sadd.s32 %s115, 1
      %s117 = scalar_select %p114, %s115, %s116
      %p120 = pneg %p114
      %p121 = scmp.eq.s32.totalorder %s11, 1
      %p122 = por %p120, %p121
      %p123 = scmp.ne.s32.totalorder %s115, %s118
      %p124 = scmp.eq.s32.totalorder %s11, 0
      %p125 = por %p123, %p124
      %p126 = scmp.ne.s32.totalorder %s115, %s118
      %p127 = scmp.eq.s32.totalorder %s16, 1
      %p128 = por %p126, %p127
      %p129 = scmp.ne.s32.totalorder %s118, %s119
      %p130 = scmp.eq.s32.totalorder %s16, 0
      %p131 = por %p129, %p130
      %p132 = scmp.ne.s32.totalorder %s118, %s119
      %p133 = scmp.eq.s32.totalorder %s17, 1
      %p134 = por %p132, %p133
      %p136 = scmp.ne.s32.totalorder %s119, %s135
      %p137 = scmp.eq.s32.totalorder %s17, 0
      %p138 = por %p136, %p137
      %s139 = ssub.s32 %s11, %s18
      %p140 = scmp.eq.s32.totalorder %s139, 0
      %s142 = sadd.s32 %s141, 1
      %s143 = scalar_select %p140, %s141, %s142
      %p146 = pneg %p140
      %p147 = scmp.eq.s32.totalorder %s11, 1
      %p148 = por %p146, %p147
      %p149 = scmp.ne.s32.totalorder %s141, %s144
      %p150 = scmp.eq.s32.totalorder %s11, 0
      %p151 = por %p149, %p150
      %p152 = scmp.ne.s32.totalorder %s141, %s144
      %p153 = scmp.eq.s32.totalorder %s16, 1
      %p154 = por %p152, %p153
      %p155 = scmp.ne.s32.totalorder %s144, %s145
      %p156 = scmp.eq.s32.totalorder %s16, 0
      %p157 = por %p155, %p156
      %p158 = scmp.ne.s32.totalorder %s144, %s145
      %p159 = scmp.eq.s32.totalorder %s17, 1
      %p160 = por %p158, %p159
      %p162 = scmp.ne.s32.totalorder %s145, %s161
      %p163 = scmp.eq.s32.totalorder %s17, 0
      %p164 = por %p162, %p163
      %p165 = scmp.le.s32.totalorder 1, %s11
      %p166 = scmp.lt.s32.totalorder %s11, 3
      %p167 = pnand %p165, %p166
      %p168 = pneg %p167
      // Predicated region
      $region9: #{fused_sigmoid_mul_conv_bn.1} parent=5 // pred_check
        _
      $region10: #{fused_sigmoid_mul_conv_bn.1} parent=5 // pred_check_branch
        %170 = sbr.rel (%p167) target = $region12
      $region11: #{fused_sigmoid_mul_conv_bn.1} parent=5 // pred_region
        %s171 = ssub.s32 %s11, 1
        // Predicated region
        $region13: #{fused_sigmoid_mul_conv_bn.1} parent=11 // pred_check
          %p172 = pneg %p32
        $region14: #{fused_sigmoid_mul_conv_bn.1} parent=11 // pred_check_branch
          %174 = sbr.rel (%p172) target = $region16
        $region15: #{fused_sigmoid_mul_conv_bn.1} parent=11 // pred_region
          _
        $region16: #{fused_sigmoid_mul_conv_bn.1} parent=11 // pred_fallthru
          _
        // Predicated region
        $region17: #{fused_sigmoid_mul_conv_bn.1} parent=11 // pred_check
          %p175 = pneg %p53
        $region18: #{fused_sigmoid_mul_conv_bn.1} parent=11 // pred_check_branch
          %177 = sbr.rel (%p175) target = $region20
        $region19: #{fused_sigmoid_mul_conv_bn.1} parent=11 // pred_region
          _
        $region20: #{fused_sigmoid_mul_conv_bn.1} parent=11 // pred_fallthru
          _
      $region12: #{fused_sigmoid_mul_conv_bn.1} parent=5 // pred_fallthru
        _
      %p178 = scmp.lt.s32.totalorder %s11, 2
      // Predicated region
      $region21: #{fused_sigmoid_mul_conv_bn.1} parent=5 // pred_check
        %p179 = pneg %p178
      $region22: #{fused_sigmoid_mul_conv_bn.1} parent=5 // pred_check_branch
        %181 = sbr.rel (%p179) target = $region24
      $region23: #{fused_sigmoid_mul_conv_bn.1} parent=5 // pred_region
        // Predicated region
        $region25: #{fused_sigmoid_mul_conv_bn.1} parent=23 // pred_check
          %p182 = pneg %p73
        $region26: #{fused_sigmoid_mul_conv_bn.1} parent=23 // pred_check_branch
          %184 = sbr.rel (%p182) target = $region28
        $region27: #{fused_sigmoid_mul_conv_bn.1} parent=23 // pred_region
          %s185 = smul.u32 22, %s11
          %s186 = ssub.s32 43, %s185
          %p187 = scmp.lt.s32.totalorder %s186, 22
          %s188 = scalar_select %p187, %s186, 22
          %s189 = smul.u32 64, %s188
          %s190 = smul.u32 %s189, 17
          %p191 = scmp.lt.s32.totalorder %s185, 42
          %s192 = scalar_select %p191, %s185, 42
          %s193 = smul.addr %s192, 17
          %s194 = smul.addr %s193, 4
          %s195 = scalar_lea.vmem %s2, %s194
          %s196 = smul.u32 22, %s11
          %s197 = ssub.s32 43, %s196
          %p198 = scmp.lt.s32.totalorder %s197, 22
          %s199 = scalar_select %p198, %s197, 22
          %s200 = smul.u32 64, %s199
          %s201 = smul.u32 %s200, 17
        $region28: #{fused_sigmoid_mul_conv_bn.1} parent=23 // pred_fallthru
          _
        // Predicated region
        $region29: #{fused_sigmoid_mul_conv_bn.1} parent=23 // pred_check
          %p202 = pneg %p99
        $region30: #{fused_sigmoid_mul_conv_bn.1} parent=23 // pred_check_branch
          %204 = sbr.rel (%p202) target = $region32
        $region31: #{fused_sigmoid_mul_conv_bn.1} parent=23 // pred_region
          %s205 = smul.u32 22, %s11
          %s206 = ssub.s32 43, %s205
          %p207 = scmp.lt.s32.totalorder %s206, 22
          %s208 = scalar_select %p207, %s206, 22
          %s209 = smul.u32 128, %s208
          %p210 = scmp.lt.s32.totalorder %s205, 42
          %s211 = scalar_select %p210, %s205, 42
          %s212 = smul.addr %s211, 8
          %s213 = scalar_lea.vmem %s3, %s212
          %s214 = smul.u32 22, %s11
          %s215 = ssub.s32 43, %s214
          %p216 = scmp.lt.s32.totalorder %s215, 22
          %s217 = scalar_select %p216, %s215, 22
          %s218 = smul.u32 128, %s217
        $region32: #{fused_sigmoid_mul_conv_bn.1} parent=23 // pred_fallthru
          _
        // Predicated region
        $region33: #{fused_sigmoid_mul_conv_bn.1} parent=23 // pred_check
          %p219 = pneg %p125
        $region34: #{fused_sigmoid_mul_conv_bn.1} parent=23 // pred_check_branch
          %221 = sbr.rel (%p219) target = $region36
        $region35: #{fused_sigmoid_mul_conv_bn.1} parent=23 // pred_region
          %s222 = smul.u32 22, %s11
          %s223 = ssub.s32 43, %s222
          %p224 = scmp.lt.s32.totalorder %s223, 22
          %s225 = scalar_select %p224, %s223, 22
          %s226 = smul.u32 128, %s225
          %p227 = scmp.lt.s32.totalorder %s222, 42
          %s228 = scalar_select %p227, %s222, 42
          %s229 = smul.addr %s228, 8
          %s230 = scalar_lea.vmem %s4, %s229
          %s231 = smul.u32 22, %s11
          %s232 = ssub.s32 43, %s231
          %p233 = scmp.lt.s32.totalorder %s232, 22
          %s234 = scalar_select %p233, %s232, 22
          %s235 = smul.u32 128, %s234
        $region36: #{fused_sigmoid_mul_conv_bn.1} parent=23 // pred_fallthru
          _
      $region24: #{fused_sigmoid_mul_conv_bn.1} parent=5 // pred_fallthru
        _
      %p236 = scmp.le.s32.totalorder 1, %s11
      %p237 = scmp.lt.s32.totalorder %s11, 3
      %p238 = pnand %p236, %p237
      %p239 = pneg %p238
      // Predicated region
      $region37: #{fused_sigmoid_mul_conv_bn.1} parent=5 // pred_check
        _
      $region38: #{fused_sigmoid_mul_conv_bn.1} parent=5 // pred_check_branch
        %241 = sbr.rel (%p238) target = $region40
      $region39: #{fused_sigmoid_mul_conv_bn.1} parent=5 // pred_region
        %s242 = ssub.s32 %s11, 1
        %p243 = pneg %p32
        %p244 = pneg %p29
        %p245 = pneg %p53
        %p246 = pneg %p50
        %s247 = smul.u32 22, %s16
        %s248 = ssub.s32 43, %s247
        %p249 = scmp.lt.s32.totalorder %s248, 22
        %s250 = scalar_select %p249, %s248, 22
        %s251 = smul.u32 64, %s250
        %s252 = smul.u32 %s251, 17
        %p253 = scmp.lt.s32.totalorder %s247, 42
        %s254 = scalar_select %p253, %s247, 42
        %s255 = smul.addr %s254, 17
        %s256 = smul.addr %s255, 4
        %s257 = scalar_lea.vmem %s2, %s256
        %p258 = pneg %p79
        %p259 = pneg %p76
        %s260 = smul.u32 22, %s16
        %s261 = ssub.s32 43, %s260
        %p262 = scmp.lt.s32.totalorder %s261, 22
        %s263 = scalar_select %p262, %s261, 22
        %s264 = smul.u32 128, %s263
        %p265 = scmp.lt.s32.totalorder %s260, 42
        %s266 = scalar_select %p265, %s260, 42
        %s267 = smul.addr %s266, 8
        %s268 = scalar_lea.vmem %s3, %s267
        %p269 = pneg %p105
        %p270 = pneg %p102
        %s271 = smul.u32 22, %s16
        %s272 = ssub.s32 43, %s271
        %p273 = scmp.lt.s32.totalorder %s272, 22
        %s274 = scalar_select %p273, %s272, 22
        %s275 = smul.u32 128, %s274
        %p276 = scmp.lt.s32.totalorder %s271, 42
        %s277 = scalar_select %p276, %s271, 42
        %s278 = smul.addr %s277, 8
        %s279 = scalar_lea.vmem %s4, %s278
        %p280 = pneg %p131
        %p281 = pneg %p128
        %p282 = pneg %p157
        %p283 = pneg %p154
        %s284 = sand.u32 %s144, 1
        %s285 = sand.u32 %s144, 1
        %s286 = smul.addr %s285, 176
        %s287 = scalar_lea.vmem [#allocation2], %s286
        %s288 = smul.u32 22, %s16
        %s289 = ssub.s32 43, %s288
        %p290 = scmp.lt.s32.totalorder %s289, 22
        %s291 = scalar_select %p290, %s289, 22
        %s292 = smul.u32 64, %s291
        %s293 = smul.u32 %s292, 17
        %p294 = scmp.lt.s32.totalorder %s288, 42
        %s295 = scalar_select %p294, %s288, 42
        %s296 = smul.addr %s295, 17
        %s297 = smul.addr %s296, 4
        %s298 = scalar_lea.vmem %s2, %s297
        %s299 = smul.u32 22, %s16
        %s300 = ssub.s32 43, %s299
        %p301 = scmp.lt.s32.totalorder %s300, 22
        %s302 = scalar_select %p301, %s300, 22
        %s303 = smul.u32 64, %s302
        %s304 = smul.u32 %s303, 17
        %s305 = smul.u32 22, %s16
        %s306 = ssub.s32 43, %s305
        %p307 = scmp.lt.s32.totalorder %s306, 22
        %s308 = scalar_select %p307, %s306, 22
        %s309 = smul.u32 128, %s308
        %p310 = scmp.lt.s32.totalorder %s305, 42
        %s311 = scalar_select %p310, %s305, 42
        %s312 = smul.addr %s311, 8
        %s313 = scalar_lea.vmem %s3, %s312
        %s314 = smul.u32 22, %s16
        %s315 = ssub.s32 43, %s314
        %p316 = scmp.lt.s32.totalorder %s315, 22
        %s317 = scalar_select %p316, %s315, 22
        %s318 = smul.u32 128, %s317
        %s319 = smul.u32 22, %s16
        %s320 = ssub.s32 43, %s319
        %p321 = scmp.lt.s32.totalorder %s320, 22
        %s322 = scalar_select %p321, %s320, 22
        %s323 = smul.u32 128, %s322
        %p324 = scmp.lt.s32.totalorder %s319, 42
        %s325 = scalar_select %p324, %s319, 42
        %s326 = smul.addr %s325, 8
        %s327 = scalar_lea.vmem %s4, %s326
        %s328 = smul.u32 22, %s16
        %s329 = ssub.s32 43, %s328
        %p330 = scmp.lt.s32.totalorder %s329, 22
        %s331 = scalar_select %p330, %s329, 22
        %s332 = smul.u32 128, %s331
        %s333 = smul.u32 22, %s16
        %s334 = ssub.s32 43, %s333
        %p335 = scmp.lt.s32.totalorder %s334, 22
        %s336 = scalar_select %p335, %s334, 22
        %s337 = smul.u32 128, %s336
        %v339 = vld [vmem:[%s1] sm:$0xff]
        %v340 = vld [vmem:[%s1 + $0x8] sm:$0xff]
        %v341 = vld [vmem:[%s1 + $0x10] sm:$0x1]
        %v342 = vxor.u32 %v339, 2147483648
        %v343 = vxor.u32 %v340, 2147483648
        %v344 = vxor.u32 %v341, 2147483648
        %v345 = vmul.f32 %v342, 1.442695
        %v346 = vpow.pop %v345
        %v347 = vmul.f32 %v343, 1.442695
        %v348 = vpow.pop %v347
        %v349 = vmul.f32 %v344, 1.442695
        %v350 = vpow.pop %v349
        %v351 = vadd.f32 %v346, 1.0
        %v352 = vadd.f32 %v348, 1.0
        %v353 = vadd.f32 %v350, 1.0
        %v354 = vrcp.pop %v351
        %v355 = vmul.f32 1.0, %v354
        %v356 = vrcp.pop %v352
        %v357 = vmul.f32 1.0, %v356
        %v358 = vrcp.pop %v353
        %v359 = vmul.f32 1.0, %v358
        %v360 = vld [vmem:[%s298] sm:$0xff]
        %v361 = vld [vmem:[%s298 + $0x8] sm:$0xff]
        %v362 = vld [vmem:[%s298 + $0x10] sm:$0xff]
        %v363 = vld [vmem:[%s298 + $0x18] sm:$0xff]
        %v364 = vld [vmem:[%s298 + $0x20] sm:$0xff]
        %v365 = vld [vmem:[%s298 + $0x28] sm:$0xff]
        %v366 = vld [vmem:[%s298 + $0x30] sm:$0xff]
        %v367 = vld [vmem:[%s298 + $0x38] sm:$0xff]
        %v368 = vld [vmem:[%s298 + $0x40] sm:$0xf]
        %v369 = vld [vmem:[%s298 + $0x44] sm:$0xff]
        %v370 = vld [vmem:[%s298 + $0x4c] sm:$0xff]
        %v371 = vld [vmem:[%s298 + $0x54] sm:$0xff]
        %v372 = vld [vmem:[%s298 + $0x5c] sm:$0xff]
        %v373 = vld [vmem:[%s298 + $0x64] sm:$0xff]
        %v374 = vld [vmem:[%s298 + $0x6c] sm:$0xff]
        %v375 = vld [vmem:[%s298 + $0x74] sm:$0xff]
        %v376 = vld [vmem:[%s298 + $0x7c] sm:$0xff]
        %v377 = vld [vmem:[%s298 + $0x84] sm:$0xf]
        %v378 = vld [vmem:[%s298 + $0x88] sm:$0xff]
        %v379 = vld [vmem:[%s298 + $0x90] sm:$0xff]
        %v380 = vld [vmem:[%s298 + $0x98] sm:$0xff]
        %v381 = vld [vmem:[%s298 + $0xa0] sm:$0xff]
        %v382 = vld [vmem:[%s298 + $0xa8] sm:$0xff]
        %v383 = vld [vmem:[%s298 + $0xb0] sm:$0xff]
        %v384 = vld [vmem:[%s298 + $0xb8] sm:$0xff]
        %v385 = vld [vmem:[%s298 + $0xc0] sm:$0xff]
        %v386 = vld [vmem:[%s298 + $0xc8] sm:$0xf]
        %v387 = vld [vmem:[%s298 + $0xcc] sm:$0xff]
        %v388 = vld [vmem:[%s298 + $0xd4] sm:$0xff]
        %v389 = vld [vmem:[%s298 + $0xdc] sm:$0xff]
        %v390 = vld [vmem:[%s298 + $0xe4] sm:$0xff]
        %v391 = vld [vmem:[%s298 + $0xec] sm:$0xff]
        %v392 = vld [vmem:[%s298 + $0xf4] sm:$0xff]
        %v393 = vld [vmem:[%s298 + $0xfc] sm:$0xff]
        %v394 = vld [vmem:[%s298 + $0x104] sm:$0xff]
        %v395 = vld [vmem:[%s298 + $0x10c] sm:$0xf]
        %v396 = vld [vmem:[%s298 + $0x110] sm:$0xff]
        %v397 = vld [vmem:[%s298 + $0x118] sm:$0xff]
        %v398 = vld [vmem:[%s298 + $0x120] sm:$0xff]
        %v399 = vld [vmem:[%s298 + $0x128] sm:$0xff]
        %v400 = vld [vmem:[%s298 + $0x130] sm:$0xff]
        %v401 = vld [vmem:[%s298 + $0x138] sm:$0xff]
        %v402 = vld [vmem:[%s298 + $0x140] sm:$0xff]
        %v403 = vld [vmem:[%s298 + $0x148] sm:$0xff]
        %v404 = vld [vmem:[%s298 + $0x150] sm:$0xf]
        %v405 = vld [vmem:[%s298 + $0x154] sm:$0xff]
        %v406 = vld [vmem:[%s298 + $0x15c] sm:$0xff]
        %v407 = vld [vmem:[%s298 + $0x164] sm:$0xff]
        %v408 = vld [vmem:[%s298 + $0x16c] sm:$0xff]
        %v409 = vld [vmem:[%s298 + $0x174] sm:$0xff]
        %v410 = vld [vmem:[%s298 + $0x17c] sm:$0xff]
        %v411 = vld [vmem:[%s298 + $0x184] sm:$0xff]
        %v412 = vld [vmem:[%s298 + $0x18c] sm:$0xff]
        %v413 = vld [vmem:[%s298 + $0x194] sm:$0xf]
        %v414 = vld [vmem:[%s298 + $0x198] sm:$0xff]
        %v415 = vld [vmem:[%s298 + $0x1a0] sm:$0xff]
        %v416 = vld [vmem:[%s298 + $0x1a8] sm:$0xff]
        %v417 = vld [vmem:[%s298 + $0x1b0] sm:$0xff]
        %v418 = vld [vmem:[%s298 + $0x1b8] sm:$0xff]
        %v419 = vld [vmem:[%s298 + $0x1c0] sm:$0xff]
        %v420 = vld [vmem:[%s298 + $0x1c8] sm:$0xff]
        %v421 = vld [vmem:[%s298 + $0x1d0] sm:$0xff]
        %v422 = vld [vmem:[%s298 + $0x1d8] sm:$0xf]
        %v423 = vld [vmem:[%s298 + $0x1dc] sm:$0xff]
        %v424 = vld [vmem:[%s298 + $0x1e4] sm:$0xff]
        %v425 = vld [vmem:[%s298 + $0x1ec] sm:$0xff]
        %v426 = vld [vmem:[%s298 + $0x1f4] sm:$0xff]
        %v427 = vld [vmem:[%s298 + $0x1fc] sm:$0xff]
        %v428 = vld [vmem:[%s298 + $0x204] sm:$0xff]
        %v429 = vld [vmem:[%s298 + $0x20c] sm:$0xff]
        %v430 = vld [vmem:[%s298 + $0x214] sm:$0xff]
        %v431 = vld [vmem:[%s298 + $0x21c] sm:$0xf]
        %v432 = vld [vmem:[%s298 + $0x220] sm:$0xff]
        %v433 = vld [vmem:[%s298 + $0x228] sm:$0xff]
        %v434 = vld [vmem:[%s298 + $0x230] sm:$0xff]
        %v435 = vld [vmem:[%s298 + $0x238] sm:$0xff]
        %v436 = vld [vmem:[%s298 + $0x240] sm:$0xff]
        %v437 = vld [vmem:[%s298 + $0x248] sm:$0xff]
        %v438 = vld [vmem:[%s298 + $0x250] sm:$0xff]
        %v439 = vld [vmem:[%s298 + $0x258] sm:$0xff]
        %v440 = vld [vmem:[%s298 + $0x260] sm:$0xf]
        %v441 = vld [vmem:[%s298 + $0x264] sm:$0xff]
        %v442 = vld [vmem:[%s298 + $0x26c] sm:$0xff]
        %v443 = vld [vmem:[%s298 + $0x274] sm:$0xff]
        %v444 = vld [vmem:[%s298 + $0x27c] sm:$0xff]
        %v445 = vld [vmem:[%s298 + $0x284] sm:$0xff]
        %v446 = vld [vmem:[%s298 + $0x28c] sm:$0xff]
        %v447 = vld [vmem:[%s298 + $0x294] sm:$0xff]
        %v448 = vld [vmem:[%s298 + $0x29c] sm:$0xff]
        %v449 = vld [vmem:[%s298 + $0x2a4] sm:$0xf]
        %v450 = vld [vmem:[%s298 + $0x2a8] sm:$0xff]
        %v451 = vld [vmem:[%s298 + $0x2b0] sm:$0xff]
        %v452 = vld [vmem:[%s298 + $0x2b8] sm:$0xff]
        %v453 = vld [vmem:[%s298 + $0x2c0] sm:$0xff]
        %v454 = vld [vmem:[%s298 + $0x2c8] sm:$0xff]
        %v455 = vld [vmem:[%s298 + $0x2d0] sm:$0xff]
        %v456 = vld [vmem:[%s298 + $0x2d8] sm:$0xff]
        %v457 = vld [vmem:[%s298 + $0x2e0] sm:$0xff]
        %v458 = vld [vmem:[%s298 + $0x2e8] sm:$0xf]
        %v459 = vld [vmem:[%s298 + $0x2ec] sm:$0xff]
        %v460 = vld [vmem:[%s298 + $0x2f4] sm:$0xff]
        %v461 = vld [vmem:[%s298 + $0x2fc] sm:$0xff]
        %v462 = vld [vmem:[%s298 + $0x304] sm:$0xff]
        %v463 = vld [vmem:[%s298 + $0x30c] sm:$0xff]
        %v464 = vld [vmem:[%s298 + $0x314] sm:$0xff]
        %v465 = vld [vmem:[%s298 + $0x31c] sm:$0xff]
        %v466 = vld [vmem:[%s298 + $0x324] sm:$0xff]
        %v467 = vld [vmem:[%s298 + $0x32c] sm:$0xf]
        %v468 = vld [vmem:[%s298 + $0x330] sm:$0xff]
        %v469 = vld [vmem:[%s298 + $0x338] sm:$0xff]
        %v470 = vld [vmem:[%s298 + $0x340] sm:$0xff]
        %v471 = vld [vmem:[%s298 + $0x348] sm:$0xff]
        %v472 = vld [vmem:[%s298 + $0x350] sm:$0xff]
        %v473 = vld [vmem:[%s298 + $0x358] sm:$0xff]
        %v474 = vld [vmem:[%s298 + $0x360] sm:$0xff]
        %v475 = vld [vmem:[%s298 + $0x368] sm:$0xff]
        %v476 = vld [vmem:[%s298 + $0x370] sm:$0xf]
        %v477 = vld [vmem:[%s298 + $0x374] sm:$0xff]
        %v478 = vld [vmem:[%s298 + $0x37c] sm:$0xff]
        %v479 = vld [vmem:[%s298 + $0x384] sm:$0xff]
        %v480 = vld [vmem:[%s298 + $0x38c] sm:$0xff]
        %v481 = vld [vmem:[%s298 + $0x394] sm:$0xff]
        %v482 = vld [vmem:[%s298 + $0x39c] sm:$0xff]
        %v483 = vld [vmem:[%s298 + $0x3a4] sm:$0xff]
        %v484 = vld [vmem:[%s298 + $0x3ac] sm:$0xff]
        %v485 = vld [vmem:[%s298 + $0x3b4] sm:$0xf]
        %v486 = vld [vmem:[%s298 + $0x3b8] sm:$0xff]
        %v487 = vld [vmem:[%s298 + $0x3c0] sm:$0xff]
        %v488 = vld [vmem:[%s298 + $0x3c8] sm:$0xff]
        %v489 = vld [vmem:[%s298 + $0x3d0] sm:$0xff]
        %v490 = vld [vmem:[%s298 + $0x3d8] sm:$0xff]
        %v491 = vld [vmem:[%s298 + $0x3e0] sm:$0xff]
        %v492 = vld [vmem:[%s298 + $0x3e8] sm:$0xff]
        %v493 = vld [vmem:[%s298 + $0x3f0] sm:$0xff]
        %v494 = vld [vmem:[%s298 + $0x3f8] sm:$0xf]
        %v495 = vld [vmem:[%s298 + $0x3fc] sm:$0xff]
        %v496 = vld [vmem:[%s298 + $0x404] sm:$0xff]
        %v497 = vld [vmem:[%s298 + $0x40c] sm:$0xff]
        %v498 = vld [vmem:[%s298 + $0x414] sm:$0xff]
        %v499 = vld [vmem:[%s298 + $0x41c] sm:$0xff]
        %v500 = vld [vmem:[%s298 + $0x424] sm:$0xff]
        %v501 = vld [vmem:[%s298 + $0x42c] sm:$0xff]
        %v502 = vld [vmem:[%s298 + $0x434] sm:$0xff]
        %v503 = vld [vmem:[%s298 + $0x43c] sm:$0xf]
        %v504 = vld [vmem:[%s298 + $0x440] sm:$0xff]
        %v505 = vld [vmem:[%s298 + $0x448] sm:$0xff]
        %v506 = vld [vmem:[%s298 + $0x450] sm:$0xff]
        %v507 = vld [vmem:[%s298 + $0x458] sm:$0xff]
        %v508 = vld [vmem:[%s298 + $0x460] sm:$0xff]
        %v509 = vld [vmem:[%s298 + $0x468] sm:$0xff]
        %v510 = vld [vmem:[%s298 + $0x470] sm:$0xff]
        %v511 = vld [vmem:[%s298 + $0x478] sm:$0xff]
        %v512 = vld [vmem:[%s298 + $0x480] sm:$0xf]
        %v513 = vld [vmem:[%s298 + $0x484] sm:$0xff]
        %v514 = vld [vmem:[%s298 + $0x48c] sm:$0xff]
        %v515 = vld [vmem:[%s298 + $0x494] sm:$0xff]
        %v516 = vld [vmem:[%s298 + $0x49c] sm:$0xff]
        %v517 = vld [vmem:[%s298 + $0x4a4] sm:$0xff]
        %v518 = vld [vmem:[%s298 + $0x4ac] sm:$0xff]
        %v519 = vld [vmem:[%s298 + $0x4b4] sm:$0xff]
        %v520 = vld [vmem:[%s298 + $0x4bc] sm:$0xff]
        %v521 = vld [vmem:[%s298 + $0x4c4] sm:$0xf]
        %v522 = vld [vmem:[%s298 + $0x4c8] sm:$0xff]
        %v523 = vld [vmem:[%s298 + $0x4d0] sm:$0xff]
        %v524 = vld [vmem:[%s298 + $0x4d8] sm:$0xff]
        %v525 = vld [vmem:[%s298 + $0x4e0] sm:$0xff]
        %v526 = vld [vmem:[%s298 + $0x4e8] sm:$0xff]
        %v527 = vld [vmem:[%s298 + $0x4f0] sm:$0xff]
        %v528 = vld [vmem:[%s298 + $0x4f8] sm:$0xff]
        %v529 = vld [vmem:[%s298 + $0x500] sm:$0xff]
        %v530 = vld [vmem:[%s298 + $0x508] sm:$0xf]
        %v531 = vld [vmem:[%s298 + $0x50c] sm:$0xff]
        %v532 = vld [vmem:[%s298 + $0x514] sm:$0xff]
        %v533 = vld [vmem:[%s298 + $0x51c] sm:$0xff]
        %v534 = vld [vmem:[%s298 + $0x524] sm:$0xff]
        %v535 = vld [vmem:[%s298 + $0x52c] sm:$0xff]
        %v536 = vld [vmem:[%s298 + $0x534] sm:$0xff]
        %v537 = vld [vmem:[%s298 + $0x53c] sm:$0xff]
        %v538 = vld [vmem:[%s298 + $0x544] sm:$0xff]
        %v539 = vld [vmem:[%s298 + $0x54c] sm:$0xf]
        %v540 = vld [vmem:[%s298 + $0x550] sm:$0xff]
        %v541 = vld [vmem:[%s298 + $0x558] sm:$0xff]
        %v542 = vld [vmem:[%s298 + $0x560] sm:$0xff]
        %v543 = vld [vmem:[%s298 + $0x568] sm:$0xff]
        %v544 = vld [vmem:[%s298 + $0x570] sm:$0xff]
        %v545 = vld [vmem:[%s298 + $0x578] sm:$0xff]
        %v546 = vld [vmem:[%s298 + $0x580] sm:$0xff]
        %v547 = vld [vmem:[%s298 + $0x588] sm:$0xff]
        %v548 = vld [vmem:[%s298 + $0x590] sm:$0xf]
        %v549 = vld [vmem:[%s298 + $0x594] sm:$0xff]
        %v550 = vld [vmem:[%s298 + $0x59c] sm:$0xff]
        %v551 = vld [vmem:[%s298 + $0x5a4] sm:$0xff]
        %v552 = vld [vmem:[%s298 + $0x5ac] sm:$0xff]
        %v553 = vld [vmem:[%s298 + $0x5b4] sm:$0xff]
        %v554 = vld [vmem:[%s298 + $0x5bc] sm:$0xff]
        %v555 = vld [vmem:[%s298 + $0x5c4] sm:$0xff]
        %v556 = vld [vmem:[%s298 + $0x5cc] sm:$0xff]
        %v557 = vld [vmem:[%s298 + $0x5d4] sm:$0xf]
        %v558 = vunpack.c.l.bf16 %v360
        %v559 = vunpack.c.h.bf16 %v360
        %v560 = vunpack.c.l.bf16 %v361
        %v561 = vunpack.c.h.bf16 %v361
        %v562 = vunpack.c.l.bf16 %v362
        %v563 = vunpack.c.h.bf16 %v362
        %v564 = vunpack.c.l.bf16 %v363
        %v565 = vunpack.c.h.bf16 %v363
        %v566 = vunpack.c.l.bf16 %v364
        %v567 = vunpack.c.h.bf16 %v364
        %v568 = vunpack.c.l.bf16 %v365
        %v569 = vunpack.c.h.bf16 %v365
        %v570 = vunpack.c.l.bf16 %v366
        %v571 = vunpack.c.h.bf16 %v366
        %v572 = vunpack.c.l.bf16 %v367
        %v573 = vunpack.c.h.bf16 %v367
        %v574 = vunpack.c.l.bf16 %v368
        %v575 = vunpack.c.l.bf16 %v369
        %v576 = vunpack.c.h.bf16 %v369
        %v577 = vunpack.c.l.bf16 %v370
        %v578 = vunpack.c.h.bf16 %v370
        %v579 = vunpack.c.l.bf16 %v371
        %v580 = vunpack.c.h.bf16 %v371
        %v581 = vunpack.c.l.bf16 %v372
        %v582 = vunpack.c.h.bf16 %v372
        %v583 = vunpack.c.l.bf16 %v373
        %v584 = vunpack.c.h.bf16 %v373
        %v585 = vunpack.c.l.bf16 %v374
        %v586 = vunpack.c.h.bf16 %v374
        %v587 = vunpack.c.l.bf16 %v375
        %v588 = vunpack.c.h.bf16 %v375
        %v589 = vunpack.c.l.bf16 %v376
        %v590 = vunpack.c.h.bf16 %v376
        %v591 = vunpack.c.l.bf16 %v377
        %v592 = vunpack.c.l.bf16 %v378
        %v593 = vunpack.c.h.bf16 %v378
        %v594 = vunpack.c.l.bf16 %v379
        %v595 = vunpack.c.h.bf16 %v379
        %v596 = vunpack.c.l.bf16 %v380
        %v597 = vunpack.c.h.bf16 %v380
        %v598 = vunpack.c.l.bf16 %v381
        %v599 = vunpack.c.h.bf16 %v381
        %v600 = vunpack.c.l.bf16 %v382
        %v601 = vunpack.c.h.bf16 %v382
        %v602 = vunpack.c.l.bf16 %v383
        %v603 = vunpack.c.h.bf16 %v383
        %v604 = vunpack.c.l.bf16 %v384
        %v605 = vunpack.c.h.bf16 %v384
        %v606 = vunpack.c.l.bf16 %v385
        %v607 = vunpack.c.h.bf16 %v385
        %v608 = vunpack.c.l.bf16 %v386
        %v609 = vunpack.c.l.bf16 %v387
        %v610 = vunpack.c.h.bf16 %v387
        %v611 = vunpack.c.l.bf16 %v388
        %v612 = vunpack.c.h.bf16 %v388
        %v613 = vunpack.c.l.bf16 %v389
        %v614 = vunpack.c.h.bf16 %v389
        %v615 = vunpack.c.l.bf16 %v390
        %v616 = vunpack.c.h.bf16 %v390
        %v617 = vunpack.c.l.bf16 %v391
        %v618 = vunpack.c.h.bf16 %v391
        %v619 = vunpack.c.l.bf16 %v392
        %v620 = vunpack.c.h.bf16 %v392
        %v621 = vunpack.c.l.bf16 %v393
        %v622 = vunpack.c.h.bf16 %v393
        %v623 = vunpack.c.l.bf16 %v394
        %v624 = vunpack.c.h.bf16 %v394
        %v625 = vunpack.c.l.bf16 %v395
        %v626 = vunpack.c.l.bf16 %v396
        %v627 = vunpack.c.h.bf16 %v396
        %v628 = vunpack.c.l.bf16 %v397
        %v629 = vunpack.c.h.bf16 %v397
        %v630 = vunpack.c.l.bf16 %v398
        %v631 = vunpack.c.h.bf16 %v398
        %v632 = vunpack.c.l.bf16 %v399
        %v633 = vunpack.c.h.bf16 %v399
        %v634 = vunpack.c.l.bf16 %v400
        %v635 = vunpack.c.h.bf16 %v400
        %v636 = vunpack.c.l.bf16 %v401
        %v637 = vunpack.c.h.bf16 %v401
        %v638 = vunpack.c.l.bf16 %v402
        %v639 = vunpack.c.h.bf16 %v402
        %v640 = vunpack.c.l.bf16 %v403
        %v641 = vunpack.c.h.bf16 %v403
        %v642 = vunpack.c.l.bf16 %v404
        %v643 = vunpack.c.l.bf16 %v405
        %v644 = vunpack.c.h.bf16 %v405
        %v645 = vunpack.c.l.bf16 %v406
        %v646 = vunpack.c.h.bf16 %v406
        %v647 = vunpack.c.l.bf16 %v407
        %v648 = vunpack.c.h.bf16 %v407
        %v649 = vunpack.c.l.bf16 %v408
        %v650 = vunpack.c.h.bf16 %v408
        %v651 = vunpack.c.l.bf16 %v409
        %v652 = vunpack.c.h.bf16 %v409
        %v653 = vunpack.c.l.bf16 %v410
        %v654 = vunpack.c.h.bf16 %v410
        %v655 = vunpack.c.l.bf16 %v411
        %v656 = vunpack.c.h.bf16 %v411
        %v657 = vunpack.c.l.bf16 %v412
        %v658 = vunpack.c.h.bf16 %v412
        %v659 = vunpack.c.l.bf16 %v413
        %v660 = vunpack.c.l.bf16 %v414
        %v661 = vunpack.c.h.bf16 %v414
        %v662 = vunpack.c.l.bf16 %v415
        %v663 = vunpack.c.h.bf16 %v415
        %v664 = vunpack.c.l.bf16 %v416
        %v665 = vunpack.c.h.bf16 %v416
        %v666 = vunpack.c.l.bf16 %v417
        %v667 = vunpack.c.h.bf16 %v417
        %v668 = vunpack.c.l.bf16 %v418
        %v669 = vunpack.c.h.bf16 %v418
        %v670 = vunpack.c.l.bf16 %v419
        %v671 = vunpack.c.h.bf16 %v419
        %v672 = vunpack.c.l.bf16 %v420
        %v673 = vunpack.c.h.bf16 %v420
        %v674 = vunpack.c.l.bf16 %v421
        %v675 = vunpack.c.h.bf16 %v421
        %v676 = vunpack.c.l.bf16 %v422
        %v677 = vunpack.c.l.bf16 %v423
        %v678 = vunpack.c.h.bf16 %v423
        %v679 = vunpack.c.l.bf16 %v424
        %v680 = vunpack.c.h.bf16 %v424
        %v681 = vunpack.c.l.bf16 %v425
        %v682 = vunpack.c.h.bf16 %v425
        %v683 = vunpack.c.l.bf16 %v426
        %v684 = vunpack.c.h.bf16 %v426
        %v685 = vunpack.c.l.bf16 %v427
        %v686 = vunpack.c.h.bf16 %v427
        %v687 = vunpack.c.l.bf16 %v428
        %v688 = vunpack.c.h.bf16 %v428
        %v689 = vunpack.c.l.bf16 %v429
        %v690 = vunpack.c.h.bf16 %v429
        %v691 = vunpack.c.l.bf16 %v430
        %v692 = vunpack.c.h.bf16 %v430
        %v693 = vunpack.c.l.bf16 %v431
        %v694 = vunpack.c.l.bf16 %v432
        %v695 = vunpack.c.h.bf16 %v432
        %v696 = vunpack.c.l.bf16 %v433
        %v697 = vunpack.c.h.bf16 %v433
        %v698 = vunpack.c.l.bf16 %v434
        %v699 = vunpack.c.h.bf16 %v434
        %v700 = vunpack.c.l.bf16 %v435
        %v701 = vunpack.c.h.bf16 %v435
        %v702 = vunpack.c.l.bf16 %v436
        %v703 = vunpack.c.h.bf16 %v436
        %v704 = vunpack.c.l.bf16 %v437
        %v705 = vunpack.c.h.bf16 %v437
        %v706 = vunpack.c.l.bf16 %v438
        %v707 = vunpack.c.h.bf16 %v438
        %v708 = vunpack.c.l.bf16 %v439
        %v709 = vunpack.c.h.bf16 %v439
        %v710 = vunpack.c.l.bf16 %v440
        %v711 = vunpack.c.l.bf16 %v441
        %v712 = vunpack.c.h.bf16 %v441
        %v713 = vunpack.c.l.bf16 %v442
        %v714 = vunpack.c.h.bf16 %v442
        %v715 = vunpack.c.l.bf16 %v443
        %v716 = vunpack.c.h.bf16 %v443
        %v717 = vunpack.c.l.bf16 %v444
        %v718 = vunpack.c.h.bf16 %v444
        %v719 = vunpack.c.l.bf16 %v445
        %v720 = vunpack.c.h.bf16 %v445
        %v721 = vunpack.c.l.bf16 %v446
        %v722 = vunpack.c.h.bf16 %v446
        %v723 = vunpack.c.l.bf16 %v447
        %v724 = vunpack.c.h.bf16 %v447
        %v725 = vunpack.c.l.bf16 %v448
        %v726 = vunpack.c.h.bf16 %v448
        %v727 = vunpack.c.l.bf16 %v449
        %v728 = vunpack.c.l.bf16 %v450
        %v729 = vunpack.c.h.bf16 %v450
        %v730 = vunpack.c.l.bf16 %v451
        %v731 = vunpack.c.h.bf16 %v451
        %v732 = vunpack.c.l.bf16 %v452
        %v733 = vunpack.c.h.bf16 %v452
        %v734 = vunpack.c.l.bf16 %v453
        %v735 = vunpack.c.h.bf16 %v453
        %v736 = vunpack.c.l.bf16 %v454
        %v737 = vunpack.c.h.bf16 %v454
        %v738 = vunpack.c.l.bf16 %v455
        %v739 = vunpack.c.h.bf16 %v455
        %v740 = vunpack.c.l.bf16 %v456
        %v741 = vunpack.c.h.bf16 %v456
        %v742 = vunpack.c.l.bf16 %v457
        %v743 = vunpack.c.h.bf16 %v457
        %v744 = vunpack.c.l.bf16 %v458
        %v745 = vunpack.c.l.bf16 %v459
        %v746 = vunpack.c.h.bf16 %v459
        %v747 = vunpack.c.l.bf16 %v460
        %v748 = vunpack.c.h.bf16 %v460
        %v749 = vunpack.c.l.bf16 %v461
        %v750 = vunpack.c.h.bf16 %v461
        %v751 = vunpack.c.l.bf16 %v462
        %v752 = vunpack.c.h.bf16 %v462
        %v753 = vunpack.c.l.bf16 %v463
        %v754 = vunpack.c.h.bf16 %v463
        %v755 = vunpack.c.l.bf16 %v464
        %v756 = vunpack.c.h.bf16 %v464
        %v757 = vunpack.c.l.bf16 %v465
        %v758 = vunpack.c.h.bf16 %v465
        %v759 = vunpack.c.l.bf16 %v466
        %v760 = vunpack.c.h.bf16 %v466
        %v761 = vunpack.c.l.bf16 %v467
        %v762 = vunpack.c.l.bf16 %v468
        %v763 = vunpack.c.h.bf16 %v468
        %v764 = vunpack.c.l.bf16 %v469
        %v765 = vunpack.c.h.bf16 %v469
        %v766 = vunpack.c.l.bf16 %v470
        %v767 = vunpack.c.h.bf16 %v470
        %v768 = vunpack.c.l.bf16 %v471
        %v769 = vunpack.c.h.bf16 %v471
        %v770 = vunpack.c.l.bf16 %v472
        %v771 = vunpack.c.h.bf16 %v472
        %v772 = vunpack.c.l.bf16 %v473
        %v773 = vunpack.c.h.bf16 %v473
        %v774 = vunpack.c.l.bf16 %v474
        %v775 = vunpack.c.h.bf16 %v474
        %v776 = vunpack.c.l.bf16 %v475
        %v777 = vunpack.c.h.bf16 %v475
        %v778 = vunpack.c.l.bf16 %v476
        %v779 = vunpack.c.l.bf16 %v477
        %v780 = vunpack.c.h.bf16 %v477
        %v781 = vunpack.c.l.bf16 %v478
        %v782 = vunpack.c.h.bf16 %v478
        %v783 = vunpack.c.l.bf16 %v479
        %v784 = vunpack.c.h.bf16 %v479
        %v785 = vunpack.c.l.bf16 %v480
        %v786 = vunpack.c.h.bf16 %v480
        %v787 = vunpack.c.l.bf16 %v481
        %v788 = vunpack.c.h.bf16 %v481
        %v789 = vunpack.c.l.bf16 %v482
        %v790 = vunpack.c.h.bf16 %v482
        %v791 = vunpack.c.l.bf16 %v483
        %v792 = vunpack.c.h.bf16 %v483
        %v793 = vunpack.c.l.bf16 %v484
        %v794 = vunpack.c.h.bf16 %v484
        %v795 = vunpack.c.l.bf16 %v485
        %v796 = vunpack.c.l.bf16 %v486
        %v797 = vunpack.c.h.bf16 %v486
        %v798 = vunpack.c.l.bf16 %v487
        %v799 = vunpack.c.h.bf16 %v487
        %v800 = vunpack.c.l.bf16 %v488
        %v801 = vunpack.c.h.bf16 %v488
        %v802 = vunpack.c.l.bf16 %v489
        %v803 = vunpack.c.h.bf16 %v489
        %v804 = vunpack.c.l.bf16 %v490
        %v805 = vunpack.c.h.bf16 %v490
        %v806 = vunpack.c.l.bf16 %v491
        %v807 = vunpack.c.h.bf16 %v491
        %v808 = vunpack.c.l.bf16 %v492
        %v809 = vunpack.c.h.bf16 %v492
        %v810 = vunpack.c.l.bf16 %v493
        %v811 = vunpack.c.h.bf16 %v493
        %v812 = vunpack.c.l.bf16 %v494
        %v813 = vunpack.c.l.bf16 %v495
        %v814 = vunpack.c.h.bf16 %v495
        %v815 = vunpack.c.l.bf16 %v496
        %v816 = vunpack.c.h.bf16 %v496
        %v817 = vunpack.c.l.bf16 %v497
        %v818 = vunpack.c.h.bf16 %v497
        %v819 = vunpack.c.l.bf16 %v498
        %v820 = vunpack.c.h.bf16 %v498
        %v821 = vunpack.c.l.bf16 %v499
        %v822 = vunpack.c.h.bf16 %v499
        %v823 = vunpack.c.l.bf16 %v500
        %v824 = vunpack.c.h.bf16 %v500
        %v825 = vunpack.c.l.bf16 %v501
        %v826 = vunpack.c.h.bf16 %v501
        %v827 = vunpack.c.l.bf16 %v502
        %v828 = vunpack.c.h.bf16 %v502
        %v829 = vunpack.c.l.bf16 %v503
        %v830 = vunpack.c.l.bf16 %v504
        %v831 = vunpack.c.h.bf16 %v504
        %v832 = vunpack.c.l.bf16 %v505
        %v833 = vunpack.c.h.bf16 %v505
        %v834 = vunpack.c.l.bf16 %v506
        %v835 = vunpack.c.h.bf16 %v506
        %v836 = vunpack.c.l.bf16 %v507
        %v837 = vunpack.c.h.bf16 %v507
        %v838 = vunpack.c.l.bf16 %v508
        %v839 = vunpack.c.h.bf16 %v508
        %v840 = vunpack.c.l.bf16 %v509
        %v841 = vunpack.c.h.bf16 %v509
        %v842 = vunpack.c.l.bf16 %v510
        %v843 = vunpack.c.h.bf16 %v510
        %v844 = vunpack.c.l.bf16 %v511
        %v845 = vunpack.c.h.bf16 %v511
        %v846 = vunpack.c.l.bf16 %v512
        %v847 = vunpack.c.l.bf16 %v513
        %v848 = vunpack.c.h.bf16 %v513
        %v849 = vunpack.c.l.bf16 %v514
        %v850 = vunpack.c.h.bf16 %v514
        %v851 = vunpack.c.l.bf16 %v515
        %v852 = vunpack.c.h.bf16 %v515
        %v853 = vunpack.c.l.bf16 %v516
        %v854 = vunpack.c.h.bf16 %v516
        %v855 = vunpack.c.l.bf16 %v517
        %v856 = vunpack.c.h.bf16 %v517
        %v857 = vunpack.c.l.bf16 %v518
        %v858 = vunpack.c.h.bf16 %v518
        %v859 = vunpack.c.l.bf16 %v519
        %v860 = vunpack.c.h.bf16 %v519
        %v861 = vunpack.c.l.bf16 %v520
        %v862 = vunpack.c.h.bf16 %v520
        %v863 = vunpack.c.l.bf16 %v521
        %v864 = vunpack.c.l.bf16 %v522
        %v865 = vunpack.c.h.bf16 %v522
        %v866 = vunpack.c.l.bf16 %v523
        %v867 = vunpack.c.h.bf16 %v523
        %v868 = vunpack.c.l.bf16 %v524
        %v869 = vunpack.c.h.bf16 %v524
        %v870 = vunpack.c.l.bf16 %v525
        %v871 = vunpack.c.h.bf16 %v525
        %v872 = vunpack.c.l.bf16 %v526
        %v873 = vunpack.c.h.bf16 %v526
        %v874 = vunpack.c.l.bf16 %v527
        %v875 = vunpack.c.h.bf16 %v527
        %v876 = vunpack.c.l.bf16 %v528
        %v877 = vunpack.c.h.bf16 %v528
        %v878 = vunpack.c.l.bf16 %v529
        %v879 = vunpack.c.h.bf16 %v529
        %v880 = vunpack.c.l.bf16 %v530
        %v881 = vunpack.c.l.bf16 %v531
        %v882 = vunpack.c.h.bf16 %v531
        %v883 = vunpack.c.l.bf16 %v532
        %v884 = vunpack.c.h.bf16 %v532
        %v885 = vunpack.c.l.bf16 %v533
        %v886 = vunpack.c.h.bf16 %v533
        %v887 = vunpack.c.l.bf16 %v534
        %v888 = vunpack.c.h.bf16 %v534
        %v889 = vunpack.c.l.bf16 %v535
        %v890 = vunpack.c.h.bf16 %v535
        %v891 = vunpack.c.l.bf16 %v536
        %v892 = vunpack.c.h.bf16 %v536
        %v893 = vunpack.c.l.bf16 %v537
        %v894 = vunpack.c.h.bf16 %v537
        %v895 = vunpack.c.l.bf16 %v538
        %v896 = vunpack.c.h.bf16 %v538
        %v897 = vunpack.c.l.bf16 %v539
        %v898 = vunpack.c.l.bf16 %v540
        %v899 = vunpack.c.h.bf16 %v540
        %v900 = vunpack.c.l.bf16 %v541
        %v901 = vunpack.c.h.bf16 %v541
        %v902 = vunpack.c.l.bf16 %v542
        %v903 = vunpack.c.h.bf16 %v542
        %v904 = vunpack.c.l.bf16 %v543
        %v905 = vunpack.c.h.bf16 %v543
        %v906 = vunpack.c.l.bf16 %v544
        %v907 = vunpack.c.h.bf16 %v544
        %v908 = vunpack.c.l.bf16 %v545
        %v909 = vunpack.c.h.bf16 %v545
        %v910 = vunpack.c.l.bf16 %v546
        %v911 = vunpack.c.h.bf16 %v546
        %v912 = vunpack.c.l.bf16 %v547
        %v913 = vunpack.c.h.bf16 %v547
        %v914 = vunpack.c.l.bf16 %v548
        %v915 = vunpack.c.l.bf16 %v549
        %v916 = vunpack.c.h.bf16 %v549
        %v917 = vunpack.c.l.bf16 %v550
        %v918 = vunpack.c.h.bf16 %v550
        %v919 = vunpack.c.l.bf16 %v551
        %v920 = vunpack.c.h.bf16 %v551
        %v921 = vunpack.c.l.bf16 %v552
        %v922 = vunpack.c.h.bf16 %v552
        %v923 = vunpack.c.l.bf16 %v553
        %v924 = vunpack.c.h.bf16 %v553
        %v925 = vunpack.c.l.bf16 %v554
        %v926 = vunpack.c.h.bf16 %v554
        %v927 = vunpack.c.l.bf16 %v555
        %v928 = vunpack.c.h.bf16 %v555
        %v929 = vunpack.c.l.bf16 %v556
        %v930 = vunpack.c.h.bf16 %v556
        %v931 = vunpack.c.l.bf16 %v557
        %v935 = vlaneseq
        %v936 = vshrl.u32 %v935, 7
        %v937 = vsub.s32 0, %v936
        %v938 = vrot.slane %v355, %v937
        %v939 = vlaneseq
        %v940 = vshrl.u32 %v939, 7
        %v941 = vsub.s32 1, %v940
        %v942 = vrot.slane %v355, %v941
        %v943 = vlaneseq
        %v944 = vshrl.u32 %v943, 7
        %v945 = vsub.s32 2, %v944
        %v946 = vrot.slane %v355, %v945
        %v947 = vlaneseq
        %v948 = vshrl.u32 %v947, 7
        %v949 = vsub.s32 3, %v948
        %v950 = vrot.slane %v355, %v949
        %v951 = vlaneseq
        %v952 = vshrl.u32 %v951, 7
        %v953 = vsub.s32 4, %v952
        %v954 = vrot.slane %v355, %v953
        %v955 = vlaneseq
        %v956 = vshrl.u32 %v955, 7
        %v957 = vsub.s32 5, %v956
        %v958 = vrot.slane %v355, %v957
        %v959 = vlaneseq
        %v960 = vshrl.u32 %v959, 7
        %v961 = vsub.s32 6, %v960
        %v962 = vrot.slane %v355, %v961
        %v963 = vlaneseq
        %v964 = vshrl.u32 %v963, 7
        %v965 = vsub.s32 7, %v964
        %v966 = vrot.slane %v355, %v965
        %v967 = vlaneseq
        %v968 = vshrl.u32 %v967, 7
        %v969 = vsub.s32 0, %v968
        %v970 = vrot.slane %v357, %v969
        %v971 = vlaneseq
        %v972 = vshrl.u32 %v971, 7
        %v973 = vsub.s32 1, %v972
        %v974 = vrot.slane %v357, %v973
        %v975 = vlaneseq
        %v976 = vshrl.u32 %v975, 7
        %v977 = vsub.s32 2, %v976
        %v978 = vrot.slane %v357, %v977
        %v979 = vlaneseq
        %v980 = vshrl.u32 %v979, 7
        %v981 = vsub.s32 3, %v980
        %v982 = vrot.slane %v357, %v981
        %v983 = vlaneseq
        %v984 = vshrl.u32 %v983, 7
        %v985 = vsub.s32 4, %v984
        %v986 = vrot.slane %v357, %v985
        %v987 = vlaneseq
        %v988 = vshrl.u32 %v987, 7
        %v989 = vsub.s32 5, %v988
        %v990 = vrot.slane %v357, %v989
        %v991 = vlaneseq
        %v992 = vshrl.u32 %v991, 7
        %v993 = vsub.s32 6, %v992
        %v994 = vrot.slane %v357, %v993
        %v995 = vlaneseq
        %v996 = vshrl.u32 %v995, 7
        %v997 = vsub.s32 7, %v996
        %v998 = vrot.slane %v357, %v997
        %v999 = vlaneseq
        %v1000 = vshrl.u32 %v999, 7
        %v1001 = vsub.s32 0, %v1000
        %v1002 = vrot.slane %v359, %v1001
        %v1020 = vmul.f32 %v558, %v938
        %v1021 = vmul.f32 %v559, %v942
        %v1022 = vmul.f32 %v560, %v946
        %v1023 = vmul.f32 %v561, %v950
        %v1024 = vmul.f32 %v562, %v954
        %v1025 = vmul.f32 %v563, %v958
        %v1026 = vmul.f32 %v564, %v962
        %v1027 = vmul.f32 %v565, %v966
        %v1028 = vmul.f32 %v566, %v970
        %v1029 = vmul.f32 %v567, %v974
        %v1030 = vmul.f32 %v568, %v978
        %v1031 = vmul.f32 %v569, %v982
        %v1032 = vmul.f32 %v570, %v986
        %v1033 = vmul.f32 %v571, %v990
        %v1034 = vmul.f32 %v572, %v994
        %v1035 = vmul.f32 %v573, %v998
        %v1036 = vmul.f32 %v574, %v1002
        %v1037 = vmul.f32 %v575, %v938
        %v1038 = vmul.f32 %v576, %v942
        %v1039 = vmul.f32 %v577, %v946
        %v1040 = vmul.f32 %v578, %v950
        %v1041 = vmul.f32 %v579, %v954
        %v1042 = vmul.f32 %v580, %v958
        %v1043 = vmul.f32 %v581, %v962
        %v1044 = vmul.f32 %v582, %v966
        %v1045 = vmul.f32 %v583, %v970
        %v1046 = vmul.f32 %v584, %v974
        %v1047 = vmul.f32 %v585, %v978
        %v1048 = vmul.f32 %v586, %v982
        %v1049 = vmul.f32 %v587, %v986
        %v1050 = vmul.f32 %v588, %v990
        %v1051 = vmul.f32 %v589, %v994
        %v1052 = vmul.f32 %v590, %v998
        %v1053 = vmul.f32 %v591, %v1002
        %v1054 = vmul.f32 %v592, %v938
        %v1055 = vmul.f32 %v593, %v942
        %v1056 = vmul.f32 %v594, %v946
        %v1057 = vmul.f32 %v595, %v950
        %v1058 = vmul.f32 %v596, %v954
        %v1059 = vmul.f32 %v597, %v958
        %v1060 = vmul.f32 %v598, %v962
        %v1061 = vmul.f32 %v599, %v966
        %v1062 = vmul.f32 %v600, %v970
        %v1063 = vmul.f32 %v601, %v974
        %v1064 = vmul.f32 %v602, %v978
        %v1065 = vmul.f32 %v603, %v982
        %v1066 = vmul.f32 %v604, %v986
        %v1067 = vmul.f32 %v605, %v990
        %v1068 = vmul.f32 %v606, %v994
        %v1069 = vmul.f32 %v607, %v998
        %v1070 = vmul.f32 %v608, %v1002
        %v1071 = vmul.f32 %v609, %v938
        %v1072 = vmul.f32 %v610, %v942
        %v1073 = vmul.f32 %v611, %v946
        %v1074 = vmul.f32 %v612, %v950
        %v1075 = vmul.f32 %v613, %v954
        %v1076 = vmul.f32 %v614, %v958
        %v1077 = vmul.f32 %v615, %v962
        %v1078 = vmul.f32 %v616, %v966
        %v1079 = vmul.f32 %v617, %v970
        %v1080 = vmul.f32 %v618, %v974
        %v1081 = vmul.f32 %v619, %v978
        %v1082 = vmul.f32 %v620, %v982
        %v1083 = vmul.f32 %v621, %v986
        %v1084 = vmul.f32 %v622, %v990
        %v1085 = vmul.f32 %v623, %v994
        %v1086 = vmul.f32 %v624, %v998
        %v1087 = vmul.f32 %v625, %v1002
        %v1088 = vmul.f32 %v626, %v938
        %v1089 = vmul.f32 %v627, %v942
        %v1090 = vmul.f32 %v628, %v946
        %v1091 = vmul.f32 %v629, %v950
        %v1092 = vmul.f32 %v630, %v954
        %v1093 = vmul.f32 %v631, %v958
        %v1094 = vmul.f32 %v632, %v962
        %v1095 = vmul.f32 %v633, %v966
        %v1096 = vmul.f32 %v634, %v970
        %v1097 = vmul.f32 %v635, %v974
        %v1098 = vmul.f32 %v636, %v978
        %v1099 = vmul.f32 %v637, %v982
        %v1100 = vmul.f32 %v638, %v986
        %v1101 = vmul.f32 %v639, %v990
        %v1102 = vmul.f32 %v640, %v994
        %v1103 = vmul.f32 %v641, %v998
        %v1104 = vmul.f32 %v642, %v1002
        %v1105 = vmul.f32 %v643, %v938
        %v1106 = vmul.f32 %v644, %v942
        %v1107 = vmul.f32 %v645, %v946
        %v1108 = vmul.f32 %v646, %v950
        %v1109 = vmul.f32 %v647, %v954
        %v1110 = vmul.f32 %v648, %v958
        %v1111 = vmul.f32 %v649, %v962
        %v1112 = vmul.f32 %v650, %v966
        %v1113 = vmul.f32 %v651, %v970
        %v1114 = vmul.f32 %v652, %v974
        %v1115 = vmul.f32 %v653, %v978
        %v1116 = vmul.f32 %v654, %v982
        %v1117 = vmul.f32 %v655, %v986
        %v1118 = vmul.f32 %v656, %v990
        %v1119 = vmul.f32 %v657, %v994
        %v1120 = vmul.f32 %v658, %v998
        %v1121 = vmul.f32 %v659, %v1002
        %v1122 = vmul.f32 %v660, %v938
        %v1123 = vmul.f32 %v661, %v942
        %v1124 = vmul.f32 %v662, %v946
        %v1125 = vmul.f32 %v663, %v950
        %v1126 = vmul.f32 %v664, %v954
        %v1127 = vmul.f32 %v665, %v958
        %v1128 = vmul.f32 %v666, %v962
        %v1129 = vmul.f32 %v667, %v966
        %v1130 = vmul.f32 %v668, %v970
        %v1131 = vmul.f32 %v669, %v974
        %v1132 = vmul.f32 %v670, %v978
        %v1133 = vmul.f32 %v671, %v982
        %v1134 = vmul.f32 %v672, %v986
        %v1135 = vmul.f32 %v673, %v990
        %v1136 = vmul.f32 %v674, %v994
        %v1137 = vmul.f32 %v675, %v998
        %v1138 = vmul.f32 %v676, %v1002
        %v1139 = vmul.f32 %v677, %v938
        %v1140 = vmul.f32 %v678, %v942
        %v1141 = vmul.f32 %v679, %v946
        %v1142 = vmul.f32 %v680, %v950
        %v1143 = vmul.f32 %v681, %v954
        %v1144 = vmul.f32 %v682, %v958
        %v1145 = vmul.f32 %v683, %v962
        %v1146 = vmul.f32 %v684, %v966
        %v1147 = vmul.f32 %v685, %v970
        %v1148 = vmul.f32 %v686, %v974
        %v1149 = vmul.f32 %v687, %v978
        %v1150 = vmul.f32 %v688, %v982
        %v1151 = vmul.f32 %v689, %v986
        %v1152 = vmul.f32 %v690, %v990
        %v1153 = vmul.f32 %v691, %v994
        %v1154 = vmul.f32 %v692, %v998
        %v1155 = vmul.f32 %v693, %v1002
        %v1156 = vmul.f32 %v694, %v938
        %v1157 = vmul.f32 %v695, %v942
        %v1158 = vmul.f32 %v696, %v946
        %v1159 = vmul.f32 %v697, %v950
        %v1160 = vmul.f32 %v698, %v954
        %v1161 = vmul.f32 %v699, %v958
        %v1162 = vmul.f32 %v700, %v962
        %v1163 = vmul.f32 %v701, %v966
        %v1164 = vmul.f32 %v702, %v970
        %v1165 = vmul.f32 %v703, %v974
        %v1166 = vmul.f32 %v704, %v978
        %v1167 = vmul.f32 %v705, %v982
        %v1168 = vmul.f32 %v706, %v986
        %v1169 = vmul.f32 %v707, %v990
        %v1170 = vmul.f32 %v708, %v994
        %v1171 = vmul.f32 %v709, %v998
        %v1172 = vmul.f32 %v710, %v1002
        %v1173 = vmul.f32 %v711, %v938
        %v1174 = vmul.f32 %v712, %v942
        %v1175 = vmul.f32 %v713, %v946
        %v1176 = vmul.f32 %v714, %v950
        %v1177 = vmul.f32 %v715, %v954
        %v1178 = vmul.f32 %v716, %v958
        %v1179 = vmul.f32 %v717, %v962
        %v1180 = vmul.f32 %v718, %v966
        %v1181 = vmul.f32 %v719, %v970
        %v1182 = vmul.f32 %v720, %v974
        %v1183 = vmul.f32 %v721, %v978
        %v1184 = vmul.f32 %v722, %v982
        %v1185 = vmul.f32 %v723, %v986
        %v1186 = vmul.f32 %v724, %v990
        %v1187 = vmul.f32 %v725, %v994
        %v1188 = vmul.f32 %v726, %v998
        %v1189 = vmul.f32 %v727, %v1002
        %v1190 = vmul.f32 %v728, %v938
        %v1191 = vmul.f32 %v729, %v942
        %v1192 = vmul.f32 %v730, %v946
        %v1193 = vmul.f32 %v731, %v950
        %v1194 = vmul.f32 %v732, %v954
        %v1195 = vmul.f32 %v733, %v958
        %v1196 = vmul.f32 %v734, %v962
        %v1197 = vmul.f32 %v735, %v966
        %v1198 = vmul.f32 %v736, %v970
        %v1199 = vmul.f32 %v737, %v974
        %v1200 = vmul.f32 %v738, %v978
        %v1201 = vmul.f32 %v739, %v982
        %v1202 = vmul.f32 %v740, %v986
        %v1203 = vmul.f32 %v741, %v990
        %v1204 = vmul.f32 %v742, %v994
        %v1205 = vmul.f32 %v743, %v998
        %v1206 = vmul.f32 %v744, %v1002
        %v1207 = vmul.f32 %v745, %v938
        %v1208 = vmul.f32 %v746, %v942
        %v1209 = vmul.f32 %v747, %v946
        %v1210 = vmul.f32 %v748, %v950
        %v1211 = vmul.f32 %v749, %v954
        %v1212 = vmul.f32 %v750, %v958
        %v1213 = vmul.f32 %v751, %v962
        %v1214 = vmul.f32 %v752, %v966
        %v1215 = vmul.f32 %v753, %v970
        %v1216 = vmul.f32 %v754, %v974
        %v1217 = vmul.f32 %v755, %v978
        %v1218 = vmul.f32 %v756, %v982
        %v1219 = vmul.f32 %v757, %v986
        %v1220 = vmul.f32 %v758, %v990
        %v1221 = vmul.f32 %v759, %v994
        %v1222 = vmul.f32 %v760, %v998
        %v1223 = vmul.f32 %v761, %v1002
        %v1224 = vmul.f32 %v762, %v938
        %v1225 = vmul.f32 %v763, %v942
        %v1226 = vmul.f32 %v764, %v946
        %v1227 = vmul.f32 %v765, %v950
        %v1228 = vmul.f32 %v766, %v954
        %v1229 = vmul.f32 %v767, %v958
        %v1230 = vmul.f32 %v768, %v962
        %v1231 = vmul.f32 %v769, %v966
        %v1232 = vmul.f32 %v770, %v970
        %v1233 = vmul.f32 %v771, %v974
        %v1234 = vmul.f32 %v772, %v978
        %v1235 = vmul.f32 %v773, %v982
        %v1236 = vmul.f32 %v774, %v986
        %v1237 = vmul.f32 %v775, %v990
        %v1238 = vmul.f32 %v776, %v994
        %v1239 = vmul.f32 %v777, %v998
        %v1240 = vmul.f32 %v778, %v1002
        %v1241 = vmul.f32 %v779, %v938
        %v1242 = vmul.f32 %v780, %v942
        %v1243 = vmul.f32 %v781, %v946
        %v1244 = vmul.f32 %v782, %v950
        %v1245 = vmul.f32 %v783, %v954
        %v1246 = vmul.f32 %v784, %v958
        %v1247 = vmul.f32 %v785, %v962
        %v1248 = vmul.f32 %v786, %v966
        %v1249 = vmul.f32 %v787, %v970
        %v1250 = vmul.f32 %v788, %v974
        %v1251 = vmul.f32 %v789, %v978
        %v1252 = vmul.f32 %v790, %v982
        %v1253 = vmul.f32 %v791, %v986
        %v1254 = vmul.f32 %v792, %v990
        %v1255 = vmul.f32 %v793, %v994
        %v1256 = vmul.f32 %v794, %v998
        %v1257 = vmul.f32 %v795, %v1002
        %v1258 = vmul.f32 %v796, %v938
        %v1259 = vmul.f32 %v797, %v942
        %v1260 = vmul.f32 %v798, %v946
        %v1261 = vmul.f32 %v799, %v950
        %v1262 = vmul.f32 %v800, %v954
        %v1263 = vmul.f32 %v801, %v958
        %v1264 = vmul.f32 %v802, %v962
        %v1265 = vmul.f32 %v803, %v966
        %v1266 = vmul.f32 %v804, %v970
        %v1267 = vmul.f32 %v805, %v974
        %v1268 = vmul.f32 %v806, %v978
        %v1269 = vmul.f32 %v807, %v982
        %v1270 = vmul.f32 %v808, %v986
        %v1271 = vmul.f32 %v809, %v990
        %v1272 = vmul.f32 %v810, %v994
        %v1273 = vmul.f32 %v811, %v998
        %v1274 = vmul.f32 %v812, %v1002
        %v1275 = vmul.f32 %v813, %v938
        %v1276 = vmul.f32 %v814, %v942
        %v1277 = vmul.f32 %v815, %v946
        %v1278 = vmul.f32 %v816, %v950
        %v1279 = vmul.f32 %v817, %v954
        %v1280 = vmul.f32 %v818, %v958
        %v1281 = vmul.f32 %v819, %v962
        %v1282 = vmul.f32 %v820, %v966
        %v1283 = vmul.f32 %v821, %v970
        %v1284 = vmul.f32 %v822, %v974
        %v1285 = vmul.f32 %v823, %v978
        %v1286 = vmul.f32 %v824, %v982
        %v1287 = vmul.f32 %v825, %v986
        %v1288 = vmul.f32 %v826, %v990
        %v1289 = vmul.f32 %v827, %v994
        %v1290 = vmul.f32 %v828, %v998
        %v1291 = vmul.f32 %v829, %v1002
        %v1292 = vmul.f32 %v830, %v938
        %v1293 = vmul.f32 %v831, %v942
        %v1294 = vmul.f32 %v832, %v946
        %v1295 = vmul.f32 %v833, %v950
        %v1296 = vmul.f32 %v834, %v954
        %v1297 = vmul.f32 %v835, %v958
        %v1298 = vmul.f32 %v836, %v962
        %v1299 = vmul.f32 %v837, %v966
        %v1300 = vmul.f32 %v838, %v970
        %v1301 = vmul.f32 %v839, %v974
        %v1302 = vmul.f32 %v840, %v978
        %v1303 = vmul.f32 %v841, %v982
        %v1304 = vmul.f32 %v842, %v986
        %v1305 = vmul.f32 %v843, %v990
        %v1306 = vmul.f32 %v844, %v994
        %v1307 = vmul.f32 %v845, %v998
        %v1308 = vmul.f32 %v846, %v1002
        %v1309 = vmul.f32 %v847, %v938
        %v1310 = vmul.f32 %v848, %v942
        %v1311 = vmul.f32 %v849, %v946
        %v1312 = vmul.f32 %v850, %v950
        %v1313 = vmul.f32 %v851, %v954
        %v1314 = vmul.f32 %v852, %v958
        %v1315 = vmul.f32 %v853, %v962
        %v1316 = vmul.f32 %v854, %v966
        %v1317 = vmul.f32 %v855, %v970
        %v1318 = vmul.f32 %v856, %v974
        %v1319 = vmul.f32 %v857, %v978
        %v1320 = vmul.f32 %v858, %v982
        %v1321 = vmul.f32 %v859, %v986
        %v1322 = vmul.f32 %v860, %v990
        %v1323 = vmul.f32 %v861, %v994
        %v1324 = vmul.f32 %v862, %v998
        %v1325 = vmul.f32 %v863, %v1002
        %v1326 = vmul.f32 %v864, %v938
        %v1327 = vmul.f32 %v865, %v942
        %v1328 = vmul.f32 %v866, %v946
        %v1329 = vmul.f32 %v867, %v950
        %v1330 = vmul.f32 %v868, %v954
        %v1331 = vmul.f32 %v869, %v958
        %v1332 = vmul.f32 %v870, %v962
        %v1333 = vmul.f32 %v871, %v966
        %v1334 = vmul.f32 %v872, %v970
        %v1335 = vmul.f32 %v873, %v974
        %v1336 = vmul.f32 %v874, %v978
        %v1337 = vmul.f32 %v875, %v982
        %v1338 = vmul.f32 %v876, %v986
        %v1339 = vmul.f32 %v877, %v990
        %v1340 = vmul.f32 %v878, %v994
        %v1341 = vmul.f32 %v879, %v998
        %v1342 = vmul.f32 %v880, %v1002
        %v1343 = vmul.f32 %v881, %v938
        %v1344 = vmul.f32 %v882, %v942
        %v1345 = vmul.f32 %v883, %v946
        %v1346 = vmul.f32 %v884, %v950
        %v1347 = vmul.f32 %v885, %v954
        %v1348 = vmul.f32 %v886, %v958
        %v1349 = vmul.f32 %v887, %v962
        %v1350 = vmul.f32 %v888, %v966
        %v1351 = vmul.f32 %v889, %v970
        %v1352 = vmul.f32 %v890, %v974
        %v1353 = vmul.f32 %v891, %v978
        %v1354 = vmul.f32 %v892, %v982
        %v1355 = vmul.f32 %v893, %v986
        %v1356 = vmul.f32 %v894, %v990
        %v1357 = vmul.f32 %v895, %v994
        %v1358 = vmul.f32 %v896, %v998
        %v1359 = vmul.f32 %v897, %v1002
        %v1360 = vmul.f32 %v898, %v938
        %v1361 = vmul.f32 %v899, %v942
        %v1362 = vmul.f32 %v900, %v946
        %v1363 = vmul.f32 %v901, %v950
        %v1364 = vmul.f32 %v902, %v954
        %v1365 = vmul.f32 %v903, %v958
        %v1366 = vmul.f32 %v904, %v962
        %v1367 = vmul.f32 %v905, %v966
        %v1368 = vmul.f32 %v906, %v970
        %v1369 = vmul.f32 %v907, %v974
        %v1370 = vmul.f32 %v908, %v978
        %v1371 = vmul.f32 %v909, %v982
        %v1372 = vmul.f32 %v910, %v986
        %v1373 = vmul.f32 %v911, %v990
        %v1374 = vmul.f32 %v912, %v994
        %v1375 = vmul.f32 %v913, %v998
        %v1376 = vmul.f32 %v914, %v1002
        %v1377 = vmul.f32 %v915, %v938
        %v1378 = vmul.f32 %v916, %v942
        %v1379 = vmul.f32 %v917, %v946
        %v1380 = vmul.f32 %v918, %v950
        %v1381 = vmul.f32 %v919, %v954
        %v1382 = vmul.f32 %v920, %v958
        %v1383 = vmul.f32 %v921, %v962
        %v1384 = vmul.f32 %v922, %v966
        %v1385 = vmul.f32 %v923, %v970
        %v1386 = vmul.f32 %v924, %v974
        %v1387 = vmul.f32 %v925, %v978
        %v1388 = vmul.f32 %v926, %v982
        %v1389 = vmul.f32 %v927, %v986
        %v1390 = vmul.f32 %v928, %v990
        %v1391 = vmul.f32 %v929, %v994
        %v1392 = vmul.f32 %v930, %v998
        %v1393 = vmul.f32 %v931, %v1002
        %v1394 = vpack.c.bf16 %v1037, %v1020
        %v1395 = vpack.c.bf16 %v1038, %v1021
        %v1396 = vpack.c.bf16 %v1039, %v1022
        %v1397 = vpack.c.bf16 %v1040, %v1023
        %v1398 = vpack.c.bf16 %v1041, %v1024
        %v1399 = vpack.c.bf16 %v1042, %v1025
        %v1400 = vpack.c.bf16 %v1043, %v1026
        %v1401 = vpack.c.bf16 %v1044, %v1027
        %v1402 = vpack.c.bf16 %v1045, %v1028
        %v1403 = vpack.c.bf16 %v1046, %v1029
        %v1404 = vpack.c.bf16 %v1047, %v1030
        %v1405 = vpack.c.bf16 %v1048, %v1031
        %v1406 = vpack.c.bf16 %v1049, %v1032
        %v1407 = vpack.c.bf16 %v1050, %v1033
        %v1408 = vpack.c.bf16 %v1051, %v1034
        %v1409 = vpack.c.bf16 %v1052, %v1035
        %v1410 = vpack.c.bf16 %v1053, %v1036
        %v1411 = vpack.c.bf16 %v1071, %v1054
        %v1412 = vpack.c.bf16 %v1072, %v1055
        %v1413 = vpack.c.bf16 %v1073, %v1056
        %v1414 = vpack.c.bf16 %v1074, %v1057
        %v1415 = vpack.c.bf16 %v1075, %v1058
        %v1416 = vpack.c.bf16 %v1076, %v1059
        %v1417 = vpack.c.bf16 %v1077, %v1060
        %v1418 = vpack.c.bf16 %v1078, %v1061
        %v1419 = vpack.c.bf16 %v1079, %v1062
        %v1420 = vpack.c.bf16 %v1080, %v1063
        %v1421 = vpack.c.bf16 %v1081, %v1064
        %v1422 = vpack.c.bf16 %v1082, %v1065
        %v1423 = vpack.c.bf16 %v1083, %v1066
        %v1424 = vpack.c.bf16 %v1084, %v1067
        %v1425 = vpack.c.bf16 %v1085, %v1068
        %v1426 = vpack.c.bf16 %v1086, %v1069
        %v1427 = vpack.c.bf16 %v1087, %v1070
        %v1428 = vpack.c.bf16 %v1105, %v1088
        %v1429 = vpack.c.bf16 %v1106, %v1089
        %v1430 = vpack.c.bf16 %v1107, %v1090
        %v1431 = vpack.c.bf16 %v1108, %v1091
        %v1432 = vpack.c.bf16 %v1109, %v1092
        %v1433 = vpack.c.bf16 %v1110, %v1093
        %v1434 = vpack.c.bf16 %v1111, %v1094
        %v1435 = vpack.c.bf16 %v1112, %v1095
        %v1436 = vpack.c.bf16 %v1113, %v1096
        %v1437 = vpack.c.bf16 %v1114, %v1097
        %v1438 = vpack.c.bf16 %v1115, %v1098
        %v1439 = vpack.c.bf16 %v1116, %v1099
        %v1440 = vpack.c.bf16 %v1117, %v1100
        %v1441 = vpack.c.bf16 %v1118, %v1101
        %v1442 = vpack.c.bf16 %v1119, %v1102
        %v1443 = vpack.c.bf16 %v1120, %v1103
        %v1444 = vpack.c.bf16 %v1121, %v1104
        %v1445 = vpack.c.bf16 %v1139, %v1122
        %v1446 = vpack.c.bf16 %v1140, %v1123
        %v1447 = vpack.c.bf16 %v1141, %v1124
        %v1448 = vpack.c.bf16 %v1142, %v1125
        %v1449 = vpack.c.bf16 %v1143, %v1126
        %v1450 = vpack.c.bf16 %v1144, %v1127
        %v1451 = vpack.c.bf16 %v1145, %v1128
        %v1452 = vpack.c.bf16 %v1146, %v1129
        %v1453 = vpack.c.bf16 %v1147, %v1130
        %v1454 = vpack.c.bf16 %v1148, %v1131
        %v1455 = vpack.c.bf16 %v1149, %v1132
        %v1456 = vpack.c.bf16 %v1150, %v1133
        %v1457 = vpack.c.bf16 %v1151, %v1134
        %v1458 = vpack.c.bf16 %v1152, %v1135
        %v1459 = vpack.c.bf16 %v1153, %v1136
        %v1460 = vpack.c.bf16 %v1154, %v1137
        %v1461 = vpack.c.bf16 %v1155, %v1138
        %v1462 = vpack.c.bf16 %v1173, %v1156
        %v1463 = vpack.c.bf16 %v1174, %v1157
        %v1464 = vpack.c.bf16 %v1175, %v1158
        %v1465 = vpack.c.bf16 %v1176, %v1159
        %v1466 = vpack.c.bf16 %v1177, %v1160
        %v1467 = vpack.c.bf16 %v1178, %v1161
        %v1468 = vpack.c.bf16 %v1179, %v1162
        %v1469 = vpack.c.bf16 %v1180, %v1163
        %v1470 = vpack.c.bf16 %v1181, %v1164
        %v1471 = vpack.c.bf16 %v1182, %v1165
        %v1472 = vpack.c.bf16 %v1183, %v1166
        %v1473 = vpack.c.bf16 %v1184, %v1167
        %v1474 = vpack.c.bf16 %v1185, %v1168
        %v1475 = vpack.c.bf16 %v1186, %v1169
        %v1476 = vpack.c.bf16 %v1187, %v1170
        %v1477 = vpack.c.bf16 %v1188, %v1171
        %v1478 = vpack.c.bf16 %v1189, %v1172
        %v1479 = vpack.c.bf16 %v1207, %v1190
        %v1480 = vpack.c.bf16 %v1208, %v1191
        %v1481 = vpack.c.bf16 %v1209, %v1192
        %v1482 = vpack.c.bf16 %v1210, %v1193
        %v1483 = vpack.c.bf16 %v1211, %v1194
        %v1484 = vpack.c.bf16 %v1212, %v1195
        %v1485 = vpack.c.bf16 %v1213, %v1196
        %v1486 = vpack.c.bf16 %v1214, %v1197
        %v1487 = vpack.c.bf16 %v1215, %v1198
        %v1488 = vpack.c.bf16 %v1216, %v1199
        %v1489 = vpack.c.bf16 %v1217, %v1200
        %v1490 = vpack.c.bf16 %v1218, %v1201
        %v1491 = vpack.c.bf16 %v1219, %v1202
        %v1492 = vpack.c.bf16 %v1220, %v1203
        %v1493 = vpack.c.bf16 %v1221, %v1204
        %v1494 = vpack.c.bf16 %v1222, %v1205
        %v1495 = vpack.c.bf16 %v1223, %v1206
        %v1496 = vpack.c.bf16 %v1241, %v1224
        %v1497 = vpack.c.bf16 %v1242, %v1225
        %v1498 = vpack.c.bf16 %v1243, %v1226
        %v1499 = vpack.c.bf16 %v1244, %v1227
        %v1500 = vpack.c.bf16 %v1245, %v1228
        %v1501 = vpack.c.bf16 %v1246, %v1229
        %v1502 = vpack.c.bf16 %v1247, %v1230
        %v1503 = vpack.c.bf16 %v1248, %v1231
        %v1504 = vpack.c.bf16 %v1249, %v1232
        %v1505 = vpack.c.bf16 %v1250, %v1233
        %v1506 = vpack.c.bf16 %v1251, %v1234
        %v1507 = vpack.c.bf16 %v1252, %v1235
        %v1508 = vpack.c.bf16 %v1253, %v1236
        %v1509 = vpack.c.bf16 %v1254, %v1237
        %v1510 = vpack.c.bf16 %v1255, %v1238
        %v1511 = vpack.c.bf16 %v1256, %v1239
        %v1512 = vpack.c.bf16 %v1257, %v1240
        %v1513 = vpack.c.bf16 %v1275, %v1258
        %v1514 = vpack.c.bf16 %v1276, %v1259
        %v1515 = vpack.c.bf16 %v1277, %v1260
        %v1516 = vpack.c.bf16 %v1278, %v1261
        %v1517 = vpack.c.bf16 %v1279, %v1262
        %v1518 = vpack.c.bf16 %v1280, %v1263
        %v1519 = vpack.c.bf16 %v1281, %v1264
        %v1520 = vpack.c.bf16 %v1282, %v1265
        %v1521 = vpack.c.bf16 %v1283, %v1266
        %v1522 = vpack.c.bf16 %v1284, %v1267
        %v1523 = vpack.c.bf16 %v1285, %v1268
        %v1524 = vpack.c.bf16 %v1286, %v1269
        %v1525 = vpack.c.bf16 %v1287, %v1270
        %v1526 = vpack.c.bf16 %v1288, %v1271
        %v1527 = vpack.c.bf16 %v1289, %v1272
        %v1528 = vpack.c.bf16 %v1290, %v1273
        %v1529 = vpack.c.bf16 %v1291, %v1274
        %v1530 = vpack.c.bf16 %v1309, %v1292
        %v1531 = vpack.c.bf16 %v1310, %v1293
        %v1532 = vpack.c.bf16 %v1311, %v1294
        %v1533 = vpack.c.bf16 %v1312, %v1295
        %v1534 = vpack.c.bf16 %v1313, %v1296
        %v1535 = vpack.c.bf16 %v1314, %v1297
        %v1536 = vpack.c.bf16 %v1315, %v1298
        %v1537 = vpack.c.bf16 %v1316, %v1299
        %v1538 = vpack.c.bf16 %v1317, %v1300
        %v1539 = vpack.c.bf16 %v1318, %v1301
        %v1540 = vpack.c.bf16 %v1319, %v1302
        %v1541 = vpack.c.bf16 %v1320, %v1303
        %v1542 = vpack.c.bf16 %v1321, %v1304
        %v1543 = vpack.c.bf16 %v1322, %v1305
        %v1544 = vpack.c.bf16 %v1323, %v1306
        %v1545 = vpack.c.bf16 %v1324, %v1307
        %v1546 = vpack.c.bf16 %v1325, %v1308
        %v1547 = vpack.c.bf16 %v1343, %v1326
        %v1548 = vpack.c.bf16 %v1344, %v1327
        %v1549 = vpack.c.bf16 %v1345, %v1328
        %v1550 = vpack.c.bf16 %v1346, %v1329
        %v1551 = vpack.c.bf16 %v1347, %v1330
        %v1552 = vpack.c.bf16 %v1348, %v1331
        %v1553 = vpack.c.bf16 %v1349, %v1332
        %v1554 = vpack.c.bf16 %v1350, %v1333
        %v1555 = vpack.c.bf16 %v1351, %v1334
        %v1556 = vpack.c.bf16 %v1352, %v1335
        %v1557 = vpack.c.bf16 %v1353, %v1336
        %v1558 = vpack.c.bf16 %v1354, %v1337
        %v1559 = vpack.c.bf16 %v1355, %v1338
        %v1560 = vpack.c.bf16 %v1356, %v1339
        %v1561 = vpack.c.bf16 %v1357, %v1340
        %v1562 = vpack.c.bf16 %v1358, %v1341
        %v1563 = vpack.c.bf16 %v1359, %v1342
        %v1564 = vpack.c.bf16 %v1377, %v1360
        %v1565 = vpack.c.bf16 %v1378, %v1361
        %v1566 = vpack.c.bf16 %v1379, %v1362
        %v1567 = vpack.c.bf16 %v1380, %v1363
        %v1568 = vpack.c.bf16 %v1381, %v1364
        %v1569 = vpack.c.bf16 %v1382, %v1365
        %v1570 = vpack.c.bf16 %v1383, %v1366
        %v1571 = vpack.c.bf16 %v1384, %v1367
        %v1572 = vpack.c.bf16 %v1385, %v1368
        %v1573 = vpack.c.bf16 %v1386, %v1369
        %v1574 = vpack.c.bf16 %v1387, %v1370
        %v1575 = vpack.c.bf16 %v1388, %v1371
        %v1576 = vpack.c.bf16 %v1389, %v1372
        %v1577 = vpack.c.bf16 %v1390, %v1373
        %v1578 = vpack.c.bf16 %v1391, %v1374
        %v1579 = vpack.c.bf16 %v1392, %v1375
        %v1580 = vpack.c.bf16 %v1393, %v1376
        %v1581 = vld [vmem:[%s0] sm:$0xff]
        %v1582 = vld [vmem:[%s0 + $0x8] sm:$0xff]
        %v1583 = vld [vmem:[%s0 + $0x10] sm:$0xff]
        %v1584 = vld [vmem:[%s0 + $0x18] sm:$0xff]
        %v1585 = vld [vmem:[%s0 + $0x20] sm:$0xff]
        %v1586 = vld [vmem:[%s0 + $0x28] sm:$0xff]
        %v1587 = vld [vmem:[%s0 + $0x30] sm:$0xff]
        %v1588 = vld [vmem:[%s0 + $0x38] sm:$0xff]
        %v1589 = vld [vmem:[%s0 + $0x40] sm:$0xff]
        %v1590 = vld [vmem:[%s0 + $0x48] sm:$0xff]
        %v1591 = vld [vmem:[%s0 + $0x50] sm:$0xff]
        %v1592 = vld [vmem:[%s0 + $0x58] sm:$0xff]
        %v1593 = vld [vmem:[%s0 + $0x60] sm:$0xff]
        %v1594 = vld [vmem:[%s0 + $0x68] sm:$0xff]
        %v1595 = vld [vmem:[%s0 + $0x70] sm:$0xff]
        %v1596 = vld [vmem:[%s0 + $0x78] sm:$0xff]
        %v1597 = vld [vmem:[%s0 + $0x80] sm:$0xff]
        %v1598 = vld [vmem:[%s0 + $0x88] sm:$0xff]
        %v1599 = vld [vmem:[%s0 + $0x90] sm:$0xff]
        %v1600 = vld [vmem:[%s0 + $0x98] sm:$0xff]
        %v1601 = vld [vmem:[%s0 + $0xa0] sm:$0xff]
        %v1602 = vld [vmem:[%s0 + $0xa8] sm:$0xff]
        %v1603 = vld [vmem:[%s0 + $0xb0] sm:$0xff]
        %v1604 = vld [vmem:[%s0 + $0xb8] sm:$0xff]
        %v1605 = vld [vmem:[%s0 + $0xc0] sm:$0xff]
        %v1606 = vld [vmem:[%s0 + $0xc8] sm:$0xff]
        %v1607 = vld [vmem:[%s0 + $0xd0] sm:$0xff]
        %v1608 = vld [vmem:[%s0 + $0xd8] sm:$0xff]
        %v1609 = vld [vmem:[%s0 + $0xe0] sm:$0xff]
        %v1610 = vld [vmem:[%s0 + $0xe8] sm:$0xff]
        %v1611 = vld [vmem:[%s0 + $0xf0] sm:$0xff]
        %v1612 = vld [vmem:[%s0 + $0xf8] sm:$0xff]
        %v1613 = vld [vmem:[%s0 + $0x100] sm:$0xff]
        %v1614 = vld [vmem:[%s0 + $0x108] sm:$0xff]
        %v1615 = vld [vmem:[%s0 + $0x110] sm:$0xff]
        %v1616 = vld [vmem:[%s0 + $0x118] sm:$0xff]
        %v1617 = vld [vmem:[%s0 + $0x120] sm:$0xff]
        %v1618 = vld [vmem:[%s0 + $0x128] sm:$0xff]
        %v1619 = vld [vmem:[%s0 + $0x130] sm:$0xff]
        %v1620 = vld [vmem:[%s0 + $0x138] sm:$0xff]
        %v1621 = vld [vmem:[%s0 + $0x140] sm:$0xff]
        %v1622 = vld [vmem:[%s0 + $0x148] sm:$0xff]
        %v1623 = vld [vmem:[%s0 + $0x150] sm:$0xff]
        %v1624 = vld [vmem:[%s0 + $0x158] sm:$0xff]
        %v1625 = vld [vmem:[%s0 + $0x160] sm:$0xff]
        %v1626 = vld [vmem:[%s0 + $0x168] sm:$0xff]
        %v1627 = vld [vmem:[%s0 + $0x170] sm:$0xff]
        %v1628 = vld [vmem:[%s0 + $0x178] sm:$0xff]
        %v1629 = vld [vmem:[%s0 + $0x180] sm:$0xff]
        %v1630 = vld [vmem:[%s0 + $0x188] sm:$0xff]
        %v1631 = vld [vmem:[%s0 + $0x190] sm:$0xff]
        %v1632 = vld [vmem:[%s0 + $0x198] sm:$0xff]
        %v1633 = vld [vmem:[%s0 + $0x1a0] sm:$0xff]
        %v1634 = vld [vmem:[%s0 + $0x1a8] sm:$0xff]
        %v1635 = vld [vmem:[%s0 + $0x1b0] sm:$0xff]
        %v1636 = vld [vmem:[%s0 + $0x1b8] sm:$0xff]
        %v1637 = vld [vmem:[%s0 + $0x1c0] sm:$0xff]
        %v1638 = vld [vmem:[%s0 + $0x1c8] sm:$0xff]
        %v1639 = vld [vmem:[%s0 + $0x1d0] sm:$0xff]
        %v1640 = vld [vmem:[%s0 + $0x1d8] sm:$0xff]
        %v1641 = vld [vmem:[%s0 + $0x1e0] sm:$0xff]
        %v1642 = vld [vmem:[%s0 + $0x1e8] sm:$0xff]
        %v1643 = vld [vmem:[%s0 + $0x1f0] sm:$0xff]
        %v1644 = vld [vmem:[%s0 + $0x1f8] sm:$0xff]
        %v1645 = vld [vmem:[%s0 + $0x200] sm:$0xff]
        %v1646 = vld [vmem:[%s0 + $0x208] sm:$0xff]
        %v1647 = vld [vmem:[%s0 + $0x210] sm:$0xff]
        %v1648 = vld [vmem:[%s0 + $0x218] sm:$0xff]
        %v1649 = vld [vmem:[%s0 + $0x220] sm:$0xff]
        %v1650 = vld [vmem:[%s0 + $0x228] sm:$0xff]
        %v1651 = vld [vmem:[%s0 + $0x230] sm:$0xff]
        %v1652 = vld [vmem:[%s0 + $0x238] sm:$0xff]
        %v1653 = vld [vmem:[%s0 + $0x240] sm:$0xff]
        %v1654 = vld [vmem:[%s0 + $0x248] sm:$0xff]
        %v1655 = vld [vmem:[%s0 + $0x250] sm:$0xff]
        %v1656 = vld [vmem:[%s0 + $0x258] sm:$0xff]
        %v1657 = vld [vmem:[%s0 + $0x260] sm:$0xff]
        %v1658 = vld [vmem:[%s0 + $0x268] sm:$0xff]
        %v1659 = vld [vmem:[%s0 + $0x270] sm:$0xff]
        %v1660 = vld [vmem:[%s0 + $0x278] sm:$0xff]
        %v1661 = vld [vmem:[%s0 + $0x280] sm:$0xff]
        %v1662 = vld [vmem:[%s0 + $0x288] sm:$0xff]
        %v1663 = vld [vmem:[%s0 + $0x290] sm:$0xff]
        %v1664 = vld [vmem:[%s0 + $0x298] sm:$0xff]
        %v1665 = vld [vmem:[%s0 + $0x2a0] sm:$0xff]
        %v1666 = vld [vmem:[%s0 + $0x2a8] sm:$0xff]
        %v1667 = vld [vmem:[%s0 + $0x2b0] sm:$0xff]
        %v1668 = vld [vmem:[%s0 + $0x2b8] sm:$0xff]
        %v1669 = vld [vmem:[%s0 + $0x2c0] sm:$0xff]
        %v1670 = vld [vmem:[%s0 + $0x2c8] sm:$0xff]
        %v1671 = vld [vmem:[%s0 + $0x2d0] sm:$0xff]
        %v1672 = vld [vmem:[%s0 + $0x2d8] sm:$0xff]
        %v1673 = vld [vmem:[%s0 + $0x2e0] sm:$0xff]
        %v1674 = vld [vmem:[%s0 + $0x2e8] sm:$0xff]
        %v1675 = vld [vmem:[%s0 + $0x2f0] sm:$0xff]
        %v1676 = vld [vmem:[%s0 + $0x2f8] sm:$0xff]
        %v1677 = vld [vmem:[%s0 + $0x300] sm:$0xff]
        %v1678 = vld [vmem:[%s0 + $0x308] sm:$0xff]
        %v1679 = vld [vmem:[%s0 + $0x310] sm:$0xff]
        %v1680 = vld [vmem:[%s0 + $0x318] sm:$0xff]
        %v1681 = vld [vmem:[%s0 + $0x320] sm:$0xff]
        %v1682 = vld [vmem:[%s0 + $0x328] sm:$0xff]
        %v1683 = vld [vmem:[%s0 + $0x330] sm:$0xff]
        %v1684 = vld [vmem:[%s0 + $0x338] sm:$0xff]
        %v1685 = vld [vmem:[%s0 + $0x340] sm:$0xff]
        %v1686 = vld [vmem:[%s0 + $0x348] sm:$0xff]
        %v1687 = vld [vmem:[%s0 + $0x350] sm:$0xff]
        %v1688 = vld [vmem:[%s0 + $0x358] sm:$0xff]
        %v1689 = vld [vmem:[%s0 + $0x360] sm:$0xff]
        %v1690 = vld [vmem:[%s0 + $0x368] sm:$0xff]
        %v1691 = vld [vmem:[%s0 + $0x370] sm:$0xff]
        %v1692 = vld [vmem:[%s0 + $0x378] sm:$0xff]
        %v1693 = vld [vmem:[%s0 + $0x380] sm:$0xff]
        %v1694 = vld [vmem:[%s0 + $0x388] sm:$0xff]
        %v1695 = vld [vmem:[%s0 + $0x390] sm:$0xff]
        %v1696 = vld [vmem:[%s0 + $0x398] sm:$0xff]
        %v1697 = vld [vmem:[%s0 + $0x3a0] sm:$0xff]
        %v1698 = vld [vmem:[%s0 + $0x3a8] sm:$0xff]
        %v1699 = vld [vmem:[%s0 + $0x3b0] sm:$0xff]
        %v1700 = vld [vmem:[%s0 + $0x3b8] sm:$0xff]
        %v1701 = vld [vmem:[%s0 + $0x3c0] sm:$0xff]
        %v1702 = vld [vmem:[%s0 + $0x3c8] sm:$0xff]
        %v1703 = vld [vmem:[%s0 + $0x3d0] sm:$0xff]
        %v1704 = vld [vmem:[%s0 + $0x3d8] sm:$0xff]
        %v1705 = vld [vmem:[%s0 + $0x3e0] sm:$0xff]
        %v1706 = vld [vmem:[%s0 + $0x3e8] sm:$0xff]
        %v1707 = vld [vmem:[%s0 + $0x3f0] sm:$0xff]
        %v1708 = vld [vmem:[%s0 + $0x3f8] sm:$0xff]
        %v1709 = vld [vmem:[%s0 + $0x400] sm:$0xff]
        %v1710 = vld [vmem:[%s0 + $0x408] sm:$0xff]
        %v1711 = vld [vmem:[%s0 + $0x410] sm:$0xff]
        %v1712 = vld [vmem:[%s0 + $0x418] sm:$0xff]
        %v1713 = vld [vmem:[%s0 + $0x420] sm:$0xff]
        %v1714 = vld [vmem:[%s0 + $0x428] sm:$0xff]
        %v1715 = vld [vmem:[%s0 + $0x430] sm:$0xff]
        %v1716 = vld [vmem:[%s0 + $0x438] sm:$0xff]
        %v1717 = vld [vmem:[%s0 + $0x440] sm:$0xff]
        %v1718 = vld [vmem:[%s0 + $0x448] sm:$0xff]
        %v1719 = vld [vmem:[%s0 + $0x450] sm:$0xff]
        %v1720 = vld [vmem:[%s0 + $0x458] sm:$0xff]
        %v1721 = vld [vmem:[%s0 + $0x460] sm:$0xff]
        %v1722 = vld [vmem:[%s0 + $0x468] sm:$0xff]
        %v1723 = vld [vmem:[%s0 + $0x470] sm:$0xff]
        %v1724 = vld [vmem:[%s0 + $0x478] sm:$0xff]
        %v1725 = vld [vmem:[%s0 + $0x480] sm:$0xff]
        %v1726 = vld [vmem:[%s0 + $0x488] sm:$0xff]
        %v1727 = vld [vmem:[%s0 + $0x490] sm:$0xff]
        %v1728 = vld [vmem:[%s0 + $0x498] sm:$0xff]
        %v1729 = vld [vmem:[%s0 + $0x4a0] sm:$0xff]
        %v1730 = vld [vmem:[%s0 + $0x4a8] sm:$0xff]
        %v1731 = vld [vmem:[%s0 + $0x4b0] sm:$0xff]
        %v1732 = vld [vmem:[%s0 + $0x4b8] sm:$0xff]
        %v1733 = vld [vmem:[%s0 + $0x4c0] sm:$0xff]
        %v1734 = vld [vmem:[%s0 + $0x4c8] sm:$0xff]
        %v1735 = vld [vmem:[%s0 + $0x4d0] sm:$0xff]
        %v1736 = vld [vmem:[%s0 + $0x4d8] sm:$0xff]
        %v1737 = vld [vmem:[%s0 + $0x4e0] sm:$0xff]
        %v1738 = vld [vmem:[%s0 + $0x4e8] sm:$0xff]
        %v1739 = vld [vmem:[%s0 + $0x4f0] sm:$0xff]
        %v1740 = vld [vmem:[%s0 + $0x4f8] sm:$0xff]
        %v1741 = vld [vmem:[%s0 + $0x500] sm:$0xff]
        %v1742 = vld [vmem:[%s0 + $0x508] sm:$0xff]
        %v1743 = vld [vmem:[%s0 + $0x510] sm:$0xff]
        %v1744 = vld [vmem:[%s0 + $0x518] sm:$0xff]
        %v1745 = vld [vmem:[%s0 + $0x520] sm:$0xff]
        %v1746 = vld [vmem:[%s0 + $0x528] sm:$0xff]
        %v1747 = vld [vmem:[%s0 + $0x530] sm:$0xff]
        %v1748 = vld [vmem:[%s0 + $0x538] sm:$0xff]
        %v1749 = vld [vmem:[%s0 + $0x540] sm:$0xff]
        %v1750 = vld [vmem:[%s0 + $0x548] sm:$0xff]
        %v1751 = vld [vmem:[%s0 + $0x550] sm:$0xff]
        %v1752 = vld [vmem:[%s0 + $0x558] sm:$0xff]
        %v1753 = vld [vmem:[%s0 + $0x560] sm:$0xff]
        %v1754 = vld [vmem:[%s0 + $0x568] sm:$0xff]
        %v1755 = vld [vmem:[%s0 + $0x570] sm:$0xff]
        %v1756 = vld [vmem:[%s0 + $0x578] sm:$0xff]
        %v1757 = vld [vmem:[%s0 + $0x580] sm:$0xff]
        %v1758 = vld [vmem:[%s0 + $0x588] sm:$0xff]
        %v1759 = vld [vmem:[%s0 + $0x590] sm:$0xff]
        %v1760 = vld [vmem:[%s0 + $0x598] sm:$0xff]
        %v1761 = vld [vmem:[%s0 + $0x5a0] sm:$0xff]
        %v1762 = vld [vmem:[%s0 + $0x5a8] sm:$0xff]
        %v1763 = vld [vmem:[%s0 + $0x5b0] sm:$0xff]
        %v1764 = vld [vmem:[%s0 + $0x5b8] sm:$0xff]
        %v1765 = vld [vmem:[%s0 + $0x5c0] sm:$0xff]
        %v1766 = vld [vmem:[%s0 + $0x5c8] sm:$0xff]
        %v1767 = vld [vmem:[%s0 + $0x5d0] sm:$0xff]
        %v1768 = vld [vmem:[%s0 + $0x5d8] sm:$0xff]
        %v1769 = vld [vmem:[%s0 + $0x5e0] sm:$0xff]
        %v1770 = vld [vmem:[%s0 + $0x5e8] sm:$0xff]
        %v1771 = vld [vmem:[%s0 + $0x5f0] sm:$0xff]
        %v1772 = vld [vmem:[%s0 + $0x5f8] sm:$0xff]
        %v1773 = vld [vmem:[%s0 + $0x600] sm:$0xff]
        %v1774 = vld [vmem:[%s0 + $0x608] sm:$0xff]
        %v1775 = vld [vmem:[%s0 + $0x610] sm:$0xff]
        %v1776 = vld [vmem:[%s0 + $0x618] sm:$0xff]
        %v1777 = vld [vmem:[%s0 + $0x620] sm:$0xff]
        %v1778 = vld [vmem:[%s0 + $0x628] sm:$0xff]
        %v1779 = vld [vmem:[%s0 + $0x630] sm:$0xff]
        %v1780 = vld [vmem:[%s0 + $0x638] sm:$0xff]
        %v1781 = vld [vmem:[%s0 + $0x640] sm:$0xff]
        %v1782 = vld [vmem:[%s0 + $0x648] sm:$0xff]
        %v1783 = vld [vmem:[%s0 + $0x650] sm:$0xff]
        %v1784 = vld [vmem:[%s0 + $0x658] sm:$0xff]
        %v1785 = vld [vmem:[%s0 + $0x660] sm:$0xff]
        %v1786 = vld [vmem:[%s0 + $0x668] sm:$0xff]
        %v1787 = vld [vmem:[%s0 + $0x670] sm:$0xff]
        %v1788 = vld [vmem:[%s0 + $0x678] sm:$0xff]
        %v1789 = vld [vmem:[%s0 + $0x680] sm:$0xff]
        %v1790 = vld [vmem:[%s0 + $0x688] sm:$0xff]
        %v1791 = vld [vmem:[%s0 + $0x690] sm:$0xff]
        %v1792 = vld [vmem:[%s0 + $0x698] sm:$0xff]
        %v1793 = vld [vmem:[%s0 + $0x6a0] sm:$0xff]
        %v1794 = vld [vmem:[%s0 + $0x6a8] sm:$0xff]
        %v1795 = vld [vmem:[%s0 + $0x6b0] sm:$0xff]
        %v1796 = vld [vmem:[%s0 + $0x6b8] sm:$0xff]
        %v1797 = vld [vmem:[%s0 + $0x6c0] sm:$0xff]
        %v1798 = vld [vmem:[%s0 + $0x6c8] sm:$0xff]
        %v1799 = vld [vmem:[%s0 + $0x6d0] sm:$0xff]
        %v1800 = vld [vmem:[%s0 + $0x6d8] sm:$0xff]
        %v1801 = vld [vmem:[%s0 + $0x6e0] sm:$0xff]
        %v1802 = vld [vmem:[%s0 + $0x6e8] sm:$0xff]
        %v1803 = vld [vmem:[%s0 + $0x6f0] sm:$0xff]
        %v1804 = vld [vmem:[%s0 + $0x6f8] sm:$0xff]
        %v1805 = vld [vmem:[%s0 + $0x700] sm:$0xff]
        %v1806 = vld [vmem:[%s0 + $0x708] sm:$0xff]
        %v1807 = vld [vmem:[%s0 + $0x710] sm:$0xff]
        %v1808 = vld [vmem:[%s0 + $0x718] sm:$0xff]
        %v1809 = vld [vmem:[%s0 + $0x720] sm:$0xff]
        %v1810 = vld [vmem:[%s0 + $0x728] sm:$0xff]
        %v1811 = vld [vmem:[%s0 + $0x730] sm:$0xff]
        %v1812 = vld [vmem:[%s0 + $0x738] sm:$0xff]
        %v1813 = vld [vmem:[%s0 + $0x740] sm:$0xff]
        %v1814 = vld [vmem:[%s0 + $0x748] sm:$0xff]
        %v1815 = vld [vmem:[%s0 + $0x750] sm:$0xff]
        %v1816 = vld [vmem:[%s0 + $0x758] sm:$0xff]
        %v1817 = vld [vmem:[%s0 + $0x760] sm:$0xff]
        %v1818 = vld [vmem:[%s0 + $0x768] sm:$0xff]
        %v1819 = vld [vmem:[%s0 + $0x770] sm:$0xff]
        %v1820 = vld [vmem:[%s0 + $0x778] sm:$0xff]
        %v1821 = vld [vmem:[%s0 + $0x780] sm:$0xff]
        %v1822 = vld [vmem:[%s0 + $0x788] sm:$0xff]
        %v1823 = vld [vmem:[%s0 + $0x790] sm:$0xff]
        %v1824 = vld [vmem:[%s0 + $0x798] sm:$0xff]
        %v1825 = vld [vmem:[%s0 + $0x7a0] sm:$0xff]
        %v1826 = vld [vmem:[%s0 + $0x7a8] sm:$0xff]
        %v1827 = vld [vmem:[%s0 + $0x7b0] sm:$0xff]
        %v1828 = vld [vmem:[%s0 + $0x7b8] sm:$0xff]
        %v1829 = vld [vmem:[%s0 + $0x7c0] sm:$0xff]
        %v1830 = vld [vmem:[%s0 + $0x7c8] sm:$0xff]
        %v1831 = vld [vmem:[%s0 + $0x7d0] sm:$0xff]
        %v1832 = vld [vmem:[%s0 + $0x7d8] sm:$0xff]
        %v1833 = vld [vmem:[%s0 + $0x7e0] sm:$0xff]
        %v1834 = vld [vmem:[%s0 + $0x7e8] sm:$0xff]
        %v1835 = vld [vmem:[%s0 + $0x7f0] sm:$0xff]
        %v1836 = vld [vmem:[%s0 + $0x7f8] sm:$0xff]
        %v1837 = vld [vmem:[%s0 + $0x800] sm:$0xff]
        %v1838 = vld [vmem:[%s0 + $0x808] sm:$0xff]
        %v1839 = vpack.c.bf16 %v1582, %v1581
        %v1840 = vpack.c.bf16 %v1584, %v1583
        %v1841 = vpack.c.bf16 %v1586, %v1585
        %v1842 = vpack.c.bf16 %v1588, %v1587
        %v1843 = vpack.c.bf16 %v1590, %v1589
        %v1844 = vpack.c.bf16 %v1592, %v1591
        %v1845 = vpack.c.bf16 %v1594, %v1593
        %v1846 = vpack.c.bf16 %v1596, %v1595
        %v1847 = vpack.c.bf16 %v1598, %v1597
        %v1848 = vpack.c.bf16 %v1600, %v1599
        %v1849 = vpack.c.bf16 %v1602, %v1601
        %v1850 = vpack.c.bf16 %v1604, %v1603
        %v1851 = vpack.c.bf16 %v1606, %v1605
        %v1852 = vpack.c.bf16 %v1608, %v1607
        %v1853 = vpack.c.bf16 %v1610, %v1609
        %v1854 = vpack.c.bf16 %v1612, %v1611
        %v1855 = vpack.c.bf16 %v1614, %v1613
        %v1856 = vpack.c.bf16 %v1616, %v1615
        %v1857 = vpack.c.bf16 %v1618, %v1617
        %v1858 = vpack.c.bf16 %v1620, %v1619
        %v1859 = vpack.c.bf16 %v1622, %v1621
        %v1860 = vpack.c.bf16 %v1624, %v1623
        %v1861 = vpack.c.bf16 %v1626, %v1625
        %v1862 = vpack.c.bf16 %v1628, %v1627
        %v1863 = vpack.c.bf16 %v1630, %v1629
        %v1864 = vpack.c.bf16 %v1632, %v1631
        %v1865 = vpack.c.bf16 %v1634, %v1633
        %v1866 = vpack.c.bf16 %v1636, %v1635
        %v1867 = vpack.c.bf16 %v1638, %v1637
        %v1868 = vpack.c.bf16 %v1640, %v1639
        %v1869 = vpack.c.bf16 %v1642, %v1641
        %v1870 = vpack.c.bf16 %v1644, %v1643
        %v1871 = vpack.c.bf16 %v1646, %v1645
        %v1872 = vpack.c.bf16 %v1648, %v1647
        %v1873 = vpack.c.bf16 %v1650, %v1649
        %v1874 = vpack.c.bf16 %v1652, %v1651
        %v1875 = vpack.c.bf16 %v1654, %v1653
        %v1876 = vpack.c.bf16 %v1656, %v1655
        %v1877 = vpack.c.bf16 %v1658, %v1657
        %v1878 = vpack.c.bf16 %v1660, %v1659
        %v1879 = vpack.c.bf16 %v1662, %v1661
        %v1880 = vpack.c.bf16 %v1664, %v1663
        %v1881 = vpack.c.bf16 %v1666, %v1665
        %v1882 = vpack.c.bf16 %v1668, %v1667
        %v1883 = vpack.c.bf16 %v1670, %v1669
        %v1884 = vpack.c.bf16 %v1672, %v1671
        %v1885 = vpack.c.bf16 %v1674, %v1673
        %v1886 = vpack.c.bf16 %v1676, %v1675
        %v1887 = vpack.c.bf16 %v1678, %v1677
        %v1888 = vpack.c.bf16 %v1680, %v1679
        %v1889 = vpack.c.bf16 %v1682, %v1681
        %v1890 = vpack.c.bf16 %v1684, %v1683
        %v1891 = vpack.c.bf16 %v1686, %v1685
        %v1892 = vpack.c.bf16 %v1688, %v1687
        %v1893 = vpack.c.bf16 %v1690, %v1689
        %v1894 = vpack.c.bf16 %v1692, %v1691
        %v1895 = vpack.c.bf16 %v1694, %v1693
        %v1896 = vpack.c.bf16 %v1696, %v1695
        %v1897 = vpack.c.bf16 %v1698, %v1697
        %v1898 = vpack.c.bf16 %v1700, %v1699
        %v1899 = vpack.c.bf16 %v1702, %v1701
        %v1900 = vpack.c.bf16 %v1704, %v1703
        %v1901 = vpack.c.bf16 %v1706, %v1705
        %v1902 = vpack.c.bf16 %v1708, %v1707
        %v1903 = vpack.c.bf16 %v1710, %v1709
        %v1904 = vpack.c.bf16 %v1712, %v1711
        %v1905 = vpack.c.bf16 %v1714, %v1713
        %v1906 = vpack.c.bf16 %v1716, %v1715
        %v1907 = vpack.c.bf16 %v1718, %v1717
        %v1908 = vpack.c.bf16 %v1720, %v1719
        %v1909 = vpack.c.bf16 %v1722, %v1721
        %v1910 = vpack.c.bf16 %v1724, %v1723
        %v1911 = vpack.c.bf16 %v1726, %v1725
        %v1912 = vpack.c.bf16 %v1728, %v1727
        %v1913 = vpack.c.bf16 %v1730, %v1729
        %v1914 = vpack.c.bf16 %v1732, %v1731
        %v1915 = vpack.c.bf16 %v1734, %v1733
        %v1916 = vpack.c.bf16 %v1736, %v1735
        %v1917 = vpack.c.bf16 %v1738, %v1737
        %v1918 = vpack.c.bf16 %v1740, %v1739
        %v1919 = vpack.c.bf16 %v1742, %v1741
        %v1920 = vpack.c.bf16 %v1744, %v1743
        %v1921 = vpack.c.bf16 %v1746, %v1745
        %v1922 = vpack.c.bf16 %v1748, %v1747
        %v1923 = vpack.c.bf16 %v1750, %v1749
        %v1924 = vpack.c.bf16 %v1752, %v1751
        %v1925 = vpack.c.bf16 %v1754, %v1753
        %v1926 = vpack.c.bf16 %v1756, %v1755
        %v1927 = vpack.c.bf16 %v1758, %v1757
        %v1928 = vpack.c.bf16 %v1760, %v1759
        %v1929 = vpack.c.bf16 %v1762, %v1761
        %v1930 = vpack.c.bf16 %v1764, %v1763
        %v1931 = vpack.c.bf16 %v1766, %v1765
        %v1932 = vpack.c.bf16 %v1768, %v1767
        %v1933 = vpack.c.bf16 %v1770, %v1769
        %v1934 = vpack.c.bf16 %v1772, %v1771
        %v1935 = vpack.c.bf16 %v1774, %v1773
        %v1936 = vpack.c.bf16 %v1776, %v1775
        %v1937 = vpack.c.bf16 %v1778, %v1777
        %v1938 = vpack.c.bf16 %v1780, %v1779
        %v1939 = vpack.c.bf16 %v1782, %v1781
        %v1940 = vpack.c.bf16 %v1784, %v1783
        %v1941 = vpack.c.bf16 %v1786, %v1785
        %v1942 = vpack.c.bf16 %v1788, %v1787
        %v1943 = vpack.c.bf16 %v1790, %v1789
        %v1944 = vpack.c.bf16 %v1792, %v1791
        %v1945 = vpack.c.bf16 %v1794, %v1793
        %v1946 = vpack.c.bf16 %v1796, %v1795
        %v1947 = vpack.c.bf16 %v1798, %v1797
        %v1948 = vpack.c.bf16 %v1800, %v1799
        %v1949 = vpack.c.bf16 %v1802, %v1801
        %v1950 = vpack.c.bf16 %v1804, %v1803
        %v1951 = vpack.c.bf16 %v1806, %v1805
        %v1952 = vpack.c.bf16 %v1808, %v1807
        %v1953 = vpack.c.bf16 %v1810, %v1809
        %v1954 = vpack.c.bf16 %v1812, %v1811
        %v1955 = vpack.c.bf16 %v1814, %v1813
        %v1956 = vpack.c.bf16 %v1816, %v1815
        %v1957 = vpack.c.bf16 %v1818, %v1817
        %v1958 = vpack.c.bf16 %v1820, %v1819
        %v1959 = vpack.c.bf16 %v1822, %v1821
        %v1960 = vpack.c.bf16 %v1824, %v1823
        %v1961 = vpack.c.bf16 %v1826, %v1825
        %v1962 = vpack.c.bf16 %v1828, %v1827
        %v1963 = vpack.c.bf16 %v1830, %v1829
        %v1964 = vpack.c.bf16 %v1832, %v1831
        %v1965 = vpack.c.bf16 %v1834, %v1833
        %v1966 = vpack.c.bf16 %v1836, %v1835
        %v1967 = vpack.c.bf16 %v1838, %v1837
        %vm1968 = vcmask 130048
        %v1970 = vsel %vm1968, %v1410, 0
        %v1973 = vsel %vm1968, %v1427, 0
        %v1976 = vsel %vm1968, %v1444, 0
        %v1979 = vsel %vm1968, %v1461, 0
        %v1982 = vsel %vm1968, %v1478, 0
        %v1985 = vsel %vm1968, %v1495, 0
        %v1988 = vsel %vm1968, %v1512, 0
        %v1991 = vsel %vm1968, %v1529, 0
        %v1994 = vsel %vm1968, %v1546, 0
        %v1997 = vsel %vm1968, %v1563, 0
        %v2000 = vsel %vm1968, %v1580, 0
        %2002 = vmatprep.subr.bf16.mxu0 0
        %2003 = vmatpush1.bf16.msra.mxu0 %v1846
        %2004 = vmatprep.subr.bf16.mxu0 0
        %2005 = vmatpush1.bf16.msra.mxu0 %v1845
        %2006 = vmatprep.subr.bf16.mxu0 0
        %2007 = vmatpush1.bf16.msra.mxu0 %v1844
        %2008 = vmatprep.subr.bf16.mxu0 0
        %2009 = vmatpush1.bf16.msra.mxu0 %v1843
        %2010 = vmatprep.subr.bf16.mxu0 0
        %2011 = vmatpush1.bf16.msra.mxu0 %v1842
        %2012 = vmatprep.subr.bf16.mxu0 0
        %2013 = vmatpush1.bf16.msra.mxu0 %v1841
        %2014 = vmatprep.subr.bf16.mxu0 0
        %2015 = vmatpush1.bf16.msra.mxu0 %v1840
        %2016 = vmatprep.subr.bf16.mxu0 0
        %2017 = vmatpush1.bf16.msra.mxu0 %v1839
        %2018 = vmatprep.subr.bf16.mxu0 0
        %2019 = vmatpush2.bf16.msra.mxu0 %v1854
        %2020 = vmatprep.subr.bf16.mxu0 0
        %2021 = vmatpush2.bf16.msra.mxu0 %v1853
        %2022 = vmatprep.subr.bf16.mxu0 0
        %2023 = vmatpush2.bf16.msra.mxu0 %v1852
        %2024 = vmatprep.subr.bf16.mxu0 0
        %2025 = vmatpush2.bf16.msra.mxu0 %v1851
        %2026 = vmatprep.subr.bf16.mxu0 0
        %2027 = vmatpush2.bf16.msra.mxu0 %v1850
        %2028 = vmatprep.subr.bf16.mxu0 0
        %2029 = vmatpush2.bf16.msra.mxu0 %v1849
        %2030 = vmatprep.subr.bf16.mxu0 0
        %2031 = vmatpush2.bf16.msra.mxu0 %v1848
        %2032 = vmatprep.subr.bf16.mxu0 0
        %2033 = vmatpush2.bf16.msra.mxu0 %v1847
        %2034 = vmatprep.mubr.bf16.mxu0 %v1395
        %2035 = vmatmul.mubr.bf16.gmra.mxu0 %v1394
        %v2036 = vpop.f32.mrf.mxu0
        %v2037 = vadd.f32 0.0, %v2036
        %v2038 = vpop.f32.mrf.mxu0
        %v2039 = vpop.f32.mrf.mxu0
        %v2040 = vadd.f32 0.0, %v2039
        %v2041 = vpop.f32.mrf.mxu0
        %2042 = vmatprep.mubr.bf16.mxu0 %v1412
        %2043 = vmatmul.mubr.bf16.gmra.mxu0 %v1411
        %v2044 = vpop.f32.mrf.mxu0
        %v2045 = vadd.f32 0.0, %v2044
        %v2046 = vpop.f32.mrf.mxu0
        %v2047 = vpop.f32.mrf.mxu0
        %v2048 = vadd.f32 0.0, %v2047
        %v2049 = vpop.f32.mrf.mxu0
        %2050 = vmatprep.mubr.bf16.mxu0 %v1429
        %2051 = vmatmul.mubr.bf16.gmra.mxu0 %v1428
        %v2052 = vpop.f32.mrf.mxu0
        %v2053 = vadd.f32 0.0, %v2052
        %v2054 = vpop.f32.mrf.mxu0
        %v2055 = vpop.f32.mrf.mxu0
        %v2056 = vadd.f32 0.0, %v2055
        %v2057 = vpop.f32.mrf.mxu0
        %2058 = vmatprep.mubr.bf16.mxu0 %v1446
        %2059 = vmatmul.mubr.bf16.gmra.mxu0 %v1445
        %v2060 = vpop.f32.mrf.mxu0
        %v2061 = vadd.f32 0.0, %v2060
        %v2062 = vpop.f32.mrf.mxu0
        %v2063 = vpop.f32.mrf.mxu0
        %v2064 = vadd.f32 0.0, %v2063
        %v2065 = vpop.f32.mrf.mxu0
        %2066 = vmatprep.mubr.bf16.mxu0 %v1463
        %2067 = vmatmul.mubr.bf16.gmra.mxu0 %v1462
        %v2068 = vpop.f32.mrf.mxu0
        %v2069 = vadd.f32 0.0, %v2068
        %v2070 = vpop.f32.mrf.mxu0
        %v2071 = vpop.f32.mrf.mxu0
        %v2072 = vadd.f32 0.0, %v2071
        %v2073 = vpop.f32.mrf.mxu0
        %2074 = vmatprep.mubr.bf16.mxu0 %v1480
        %2075 = vmatmul.mubr.bf16.gmra.mxu0 %v1479
        %v2076 = vpop.f32.mrf.mxu0
        %v2077 = vadd.f32 0.0, %v2076
        %v2078 = vpop.f32.mrf.mxu0
        %v2079 = vpop.f32.mrf.mxu0
        %v2080 = vadd.f32 0.0, %v2079
        %v2081 = vpop.f32.mrf.mxu0
        %2082 = vmatprep.mubr.bf16.mxu0 %v1497
        %2083 = vmatmul.mubr.bf16.gmra.mxu0 %v1496
        %v2084 = vpop.f32.mrf.mxu0
        %v2085 = vadd.f32 0.0, %v2084
        %v2086 = vpop.f32.mrf.mxu0
        %v2087 = vpop.f32.mrf.mxu0
        %v2088 = vadd.f32 0.0, %v2087
        %v2089 = vpop.f32.mrf.mxu0
        %2090 = vmatprep.mubr.bf16.mxu0 %v1514
        %2091 = vmatmul.mubr.bf16.gmra.mxu0 %v1513
        %v2092 = vpop.f32.mrf.mxu0
        %v2093 = vadd.f32 0.0, %v2092
        %v2094 = vpop.f32.mrf.mxu0
        %v2095 = vpop.f32.mrf.mxu0
        %v2096 = vadd.f32 0.0, %v2095
        %v2097 = vpop.f32.mrf.mxu0
        %2098 = vmatprep.mubr.bf16.mxu0 %v1531
        %2099 = vmatmul.mubr.bf16.gmra.mxu0 %v1530
        %v2100 = vpop.f32.mrf.mxu0
        %v2101 = vadd.f32 0.0, %v2100
        %v2102 = vpop.f32.mrf.mxu0
        %v2103 = vpop.f32.mrf.mxu0
        %v2104 = vadd.f32 0.0, %v2103
        %v2105 = vpop.f32.mrf.mxu0
        %2106 = vmatprep.mubr.bf16.mxu0 %v1548
        %2107 = vmatmul.mubr.bf16.gmra.mxu0 %v1547
        %v2108 = vpop.f32.mrf.mxu0
        %v2109 = vadd.f32 0.0, %v2108
        %v2110 = vpop.f32.mrf.mxu0
        %v2111 = vpop.f32.mrf.mxu0
        %v2112 = vadd.f32 0.0, %v2111
        %v2113 = vpop.f32.mrf.mxu0
        %2114 = vmatprep.mubr.bf16.mxu0 %v1565
        %2115 = vmatmul.mubr.bf16.gmra.mxu0 %v1564
        %v2116 = vpop.f32.mrf.mxu0
        %v2117 = vadd.f32 0.0, %v2116
        %v2118 = vpop.f32.mrf.mxu0
        %v2119 = vpop.f32.mrf.mxu0
        %v2120 = vadd.f32 0.0, %v2119
        %v2121 = vpop.f32.mrf.mxu0
        %2122 = vdwg.mxu0
        %2123 = vmatprep.subr.bf16.mxu0 0
        %2124 = vmatpush1.bf16.msra.mxu0 %v1862
        %2125 = vmatprep.subr.bf16.mxu0 0
        %2126 = vmatpush1.bf16.msra.mxu0 %v1861
        %2127 = vmatprep.subr.bf16.mxu0 0
        %2128 = vmatpush1.bf16.msra.mxu0 %v1860
        %2129 = vmatprep.subr.bf16.mxu0 0
        %2130 = vmatpush1.bf16.msra.mxu0 %v1859
        %2131 = vmatprep.subr.bf16.mxu0 0
        %2132 = vmatpush1.bf16.msra.mxu0 %v1858
        %2133 = vmatprep.subr.bf16.mxu0 0
        %2134 = vmatpush1.bf16.msra.mxu0 %v1857
        %2135 = vmatprep.subr.bf16.mxu0 0
        %2136 = vmatpush1.bf16.msra.mxu0 %v1856
        %2137 = vmatprep.subr.bf16.mxu0 0
        %2138 = vmatpush1.bf16.msra.mxu0 %v1855
        %2139 = vmatprep.subr.bf16.mxu0 0
        %2140 = vmatpush2.bf16.msra.mxu0 %v1870
        %2141 = vmatprep.subr.bf16.mxu0 0
        %2142 = vmatpush2.bf16.msra.mxu0 %v1869
        %2143 = vmatprep.subr.bf16.mxu0 0
        %2144 = vmatpush2.bf16.msra.mxu0 %v1868
        %2145 = vmatprep.subr.bf16.mxu0 0
        %2146 = vmatpush2.bf16.msra.mxu0 %v1867
        %2147 = vmatprep.subr.bf16.mxu0 0
        %2148 = vmatpush2.bf16.msra.mxu0 %v1866
        %2149 = vmatprep.subr.bf16.mxu0 0
        %2150 = vmatpush2.bf16.msra.mxu0 %v1865
        %2151 = vmatprep.subr.bf16.mxu0 0
        %2152 = vmatpush2.bf16.msra.mxu0 %v1864
        %2153 = vmatprep.subr.bf16.mxu0 0
        %2154 = vmatpush2.bf16.msra.mxu0 %v1863
        %2155 = vmatprep.mubr.bf16.mxu0 %v1397
        %2156 = vmatmul.mubr.bf16.gmra.mxu0 %v1396
        %v2157 = vpop.f32.mrf.mxu0
        %v2158 = vadd.f32 %v2037, %v2157
        %v2159 = vpop.f32.mrf.mxu0
        %v2160 = vpop.f32.mrf.mxu0
        %v2161 = vadd.f32 %v2040, %v2160
        %v2162 = vpop.f32.mrf.mxu0
        %2163 = vmatprep.mubr.bf16.mxu0 %v1414
        %2164 = vmatmul.mubr.bf16.gmra.mxu0 %v1413
        %v2165 = vpop.f32.mrf.mxu0
        %v2166 = vadd.f32 %v2045, %v2165
        %v2167 = vpop.f32.mrf.mxu0
        %v2168 = vpop.f32.mrf.mxu0
        %v2169 = vadd.f32 %v2048, %v2168
        %v2170 = vpop.f32.mrf.mxu0
        %2171 = vmatprep.mubr.bf16.mxu0 %v1431
        %2172 = vmatmul.mubr.bf16.gmra.mxu0 %v1430
        %v2173 = vpop.f32.mrf.mxu0
        %v2174 = vadd.f32 %v2053, %v2173
        %v2175 = vpop.f32.mrf.mxu0
        %v2176 = vpop.f32.mrf.mxu0
        %v2177 = vadd.f32 %v2056, %v2176
        %v2178 = vpop.f32.mrf.mxu0
        %2179 = vmatprep.mubr.bf16.mxu0 %v1448
        %2180 = vmatmul.mubr.bf16.gmra.mxu0 %v1447
        %v2181 = vpop.f32.mrf.mxu0
        %v2182 = vadd.f32 %v2061, %v2181
        %v2183 = vpop.f32.mrf.mxu0
        %v2184 = vpop.f32.mrf.mxu0
        %v2185 = vadd.f32 %v2064, %v2184
        %v2186 = vpop.f32.mrf.mxu0
        %2187 = vmatprep.mubr.bf16.mxu0 %v1465
        %2188 = vmatmul.mubr.bf16.gmra.mxu0 %v1464
        %v2189 = vpop.f32.mrf.mxu0
        %v2190 = vadd.f32 %v2069, %v2189
        %v2191 = vpop.f32.mrf.mxu0
        %v2192 = vpop.f32.mrf.mxu0
        %v2193 = vadd.f32 %v2072, %v2192
        %v2194 = vpop.f32.mrf.mxu0
        %2195 = vmatprep.mubr.bf16.mxu0 %v1482
        %2196 = vmatmul.mubr.bf16.gmra.mxu0 %v1481
        %v2197 = vpop.f32.mrf.mxu0
        %v2198 = vadd.f32 %v2077, %v2197
        %v2199 = vpop.f32.mrf.mxu0
        %v2200 = vpop.f32.mrf.mxu0
        %v2201 = vadd.f32 %v2080, %v2200
        %v2202 = vpop.f32.mrf.mxu0
        %2203 = vmatprep.mubr.bf16.mxu0 %v1499
        %2204 = vmatmul.mubr.bf16.gmra.mxu0 %v1498
        %v2205 = vpop.f32.mrf.mxu0
        %v2206 = vadd.f32 %v2085, %v2205
        %v2207 = vpop.f32.mrf.mxu0
        %v2208 = vpop.f32.mrf.mxu0
        %v2209 = vadd.f32 %v2088, %v2208
        %v2210 = vpop.f32.mrf.mxu0
        %2211 = vmatprep.mubr.bf16.mxu0 %v1516
        %2212 = vmatmul.mubr.bf16.gmra.mxu0 %v1515
        %v2213 = vpop.f32.mrf.mxu0
        %v2214 = vadd.f32 %v2093, %v2213
        %v2215 = vpop.f32.mrf.mxu0
        %v2216 = vpop.f32.mrf.mxu0
        %v2217 = vadd.f32 %v2096, %v2216
        %v2218 = vpop.f32.mrf.mxu0
        %2219 = vmatprep.mubr.bf16.mxu0 %v1533
        %2220 = vmatmul.mubr.bf16.gmra.mxu0 %v1532
        %v2221 = vpop.f32.mrf.mxu0
        %v2222 = vadd.f32 %v2101, %v2221
        %v2223 = vpop.f32.mrf.mxu0
        %v2224 = vpop.f32.mrf.mxu0
        %v2225 = vadd.f32 %v2104, %v2224
        %v2226 = vpop.f32.mrf.mxu0
        %2227 = vmatprep.mubr.bf16.mxu0 %v1550
        %2228 = vmatmul.mubr.bf16.gmra.mxu0 %v1549
        %v2229 = vpop.f32.mrf.mxu0
        %v2230 = vadd.f32 %v2109, %v2229
        %v2231 = vpop.f32.mrf.mxu0
        %v2232 = vpop.f32.mrf.mxu0
        %v2233 = vadd.f32 %v2112, %v2232
        %v2234 = vpop.f32.mrf.mxu0
        %2235 = vmatprep.mubr.bf16.mxu0 %v1567
        %2236 = vmatmul.mubr.bf16.gmra.mxu0 %v1566
        %v2237 = vpop.f32.mrf.mxu0
        %v2238 = vadd.f32 %v2117, %v2237
        %v2239 = vpop.f32.mrf.mxu0
        %v2240 = vpop.f32.mrf.mxu0
        %v2241 = vadd.f32 %v2120, %v2240
        %v2242 = vpop.f32.mrf.mxu0
        %2243 = vdwg.mxu0
        %2244 = vmatprep.subr.bf16.mxu0 0
        %2245 = vmatpush1.bf16.msra.mxu0 %v1878
        %2246 = vmatprep.subr.bf16.mxu0 0
        %2247 = vmatpush1.bf16.msra.mxu0 %v1877
        %2248 = vmatprep.subr.bf16.mxu0 0
        %2249 = vmatpush1.bf16.msra.mxu0 %v1876
        %2250 = vmatprep.subr.bf16.mxu0 0
        %2251 = vmatpush1.bf16.msra.mxu0 %v1875
        %2252 = vmatprep.subr.bf16.mxu0 0
        %2253 = vmatpush1.bf16.msra.mxu0 %v1874
        %2254 = vmatprep.subr.bf16.mxu0 0
        %2255 = vmatpush1.bf16.msra.mxu0 %v1873
        %2256 = vmatprep.subr.bf16.mxu0 0
        %2257 = vmatpush1.bf16.msra.mxu0 %v1872
        %2258 = vmatprep.subr.bf16.mxu0 0
        %2259 = vmatpush1.bf16.msra.mxu0 %v1871
        %2260 = vmatprep.subr.bf16.mxu0 0
        %2261 = vmatpush2.bf16.msra.mxu0 %v1886
        %2262 = vmatprep.subr.bf16.mxu0 0
        %2263 = vmatpush2.bf16.msra.mxu0 %v1885
        %2264 = vmatprep.subr.bf16.mxu0 0
        %2265 = vmatpush2.bf16.msra.mxu0 %v1884
        %2266 = vmatprep.subr.bf16.mxu0 0
        %2267 = vmatpush2.bf16.msra.mxu0 %v1883
        %2268 = vmatprep.subr.bf16.mxu0 0
        %2269 = vmatpush2.bf16.msra.mxu0 %v1882
        %2270 = vmatprep.subr.bf16.mxu0 0
        %2271 = vmatpush2.bf16.msra.mxu0 %v1881
        %2272 = vmatprep.subr.bf16.mxu0 0
        %2273 = vmatpush2.bf16.msra.mxu0 %v1880
        %2274 = vmatprep.subr.bf16.mxu0 0
        %2275 = vmatpush2.bf16.msra.mxu0 %v1879
        %2276 = vmatprep.mubr.bf16.mxu0 %v1399
        %2277 = vmatmul.mubr.bf16.gmra.mxu0 %v1398
        %v2278 = vpop.f32.mrf.mxu0
        %v2279 = vadd.f32 %v2158, %v2278
        %v2280 = vpop.f32.mrf.mxu0
        %v2281 = vpop.f32.mrf.mxu0
        %v2282 = vadd.f32 %v2161, %v2281
        %v2283 = vpop.f32.mrf.mxu0
        %2284 = vmatprep.mubr.bf16.mxu0 %v1416
        %2285 = vmatmul.mubr.bf16.gmra.mxu0 %v1415
        %v2286 = vpop.f32.mrf.mxu0
        %v2287 = vadd.f32 %v2166, %v2286
        %v2288 = vpop.f32.mrf.mxu0
        %v2289 = vpop.f32.mrf.mxu0
        %v2290 = vadd.f32 %v2169, %v2289
        %v2291 = vpop.f32.mrf.mxu0
        %2292 = vmatprep.mubr.bf16.mxu0 %v1433
        %2293 = vmatmul.mubr.bf16.gmra.mxu0 %v1432
        %v2294 = vpop.f32.mrf.mxu0
        %v2295 = vadd.f32 %v2174, %v2294
        %v2296 = vpop.f32.mrf.mxu0
        %v2297 = vpop.f32.mrf.mxu0
        %v2298 = vadd.f32 %v2177, %v2297
        %v2299 = vpop.f32.mrf.mxu0
        %2300 = vmatprep.mubr.bf16.mxu0 %v1450
        %2301 = vmatmul.mubr.bf16.gmra.mxu0 %v1449
        %v2302 = vpop.f32.mrf.mxu0
        %v2303 = vadd.f32 %v2182, %v2302
        %v2304 = vpop.f32.mrf.mxu0
        %v2305 = vpop.f32.mrf.mxu0
        %v2306 = vadd.f32 %v2185, %v2305
        %v2307 = vpop.f32.mrf.mxu0
        %2308 = vmatprep.mubr.bf16.mxu0 %v1467
        %2309 = vmatmul.mubr.bf16.gmra.mxu0 %v1466
        %v2310 = vpop.f32.mrf.mxu0
        %v2311 = vadd.f32 %v2190, %v2310
        %v2312 = vpop.f32.mrf.mxu0
        %v2313 = vpop.f32.mrf.mxu0
        %v2314 = vadd.f32 %v2193, %v2313
        %v2315 = vpop.f32.mrf.mxu0
        %2316 = vmatprep.mubr.bf16.mxu0 %v1484
        %2317 = vmatmul.mubr.bf16.gmra.mxu0 %v1483
        %v2318 = vpop.f32.mrf.mxu0
        %v2319 = vadd.f32 %v2198, %v2318
        %v2320 = vpop.f32.mrf.mxu0
        %v2321 = vpop.f32.mrf.mxu0
        %v2322 = vadd.f32 %v2201, %v2321
        %v2323 = vpop.f32.mrf.mxu0
        %2324 = vmatprep.mubr.bf16.mxu0 %v1501
        %2325 = vmatmul.mubr.bf16.gmra.mxu0 %v1500
        %v2326 = vpop.f32.mrf.mxu0
        %v2327 = vadd.f32 %v2206, %v2326
        %v2328 = vpop.f32.mrf.mxu0
        %v2329 = vpop.f32.mrf.mxu0
        %v2330 = vadd.f32 %v2209, %v2329
        %v2331 = vpop.f32.mrf.mxu0
        %2332 = vmatprep.mubr.bf16.mxu0 %v1518
        %2333 = vmatmul.mubr.bf16.gmra.mxu0 %v1517
        %v2334 = vpop.f32.mrf.mxu0
        %v2335 = vadd.f32 %v2214, %v2334
        %v2336 = vpop.f32.mrf.mxu0
        %v2337 = vpop.f32.mrf.mxu0
        %v2338 = vadd.f32 %v2217, %v2337
        %v2339 = vpop.f32.mrf.mxu0
        %2340 = vmatprep.mubr.bf16.mxu0 %v1535
        %2341 = vmatmul.mubr.bf16.gmra.mxu0 %v1534
        %v2342 = vpop.f32.mrf.mxu0
        %v2343 = vadd.f32 %v2222, %v2342
        %v2344 = vpop.f32.mrf.mxu0
        %v2345 = vpop.f32.mrf.mxu0
        %v2346 = vadd.f32 %v2225, %v2345
        %v2347 = vpop.f32.mrf.mxu0
        %2348 = vmatprep.mubr.bf16.mxu0 %v1552
        %2349 = vmatmul.mubr.bf16.gmra.mxu0 %v1551
        %v2350 = vpop.f32.mrf.mxu0
        %v2351 = vadd.f32 %v2230, %v2350
        %v2352 = vpop.f32.mrf.mxu0
        %v2353 = vpop.f32.mrf.mxu0
        %v2354 = vadd.f32 %v2233, %v2353
        %v2355 = vpop.f32.mrf.mxu0
        %2356 = vmatprep.mubr.bf16.mxu0 %v1569
        %2357 = vmatmul.mubr.bf16.gmra.mxu0 %v1568
        %v2358 = vpop.f32.mrf.mxu0
        %v2359 = vadd.f32 %v2238, %v2358
        %v2360 = vpop.f32.mrf.mxu0
        %v2361 = vpop.f32.mrf.mxu0
        %v2362 = vadd.f32 %v2241, %v2361
        %v2363 = vpop.f32.mrf.mxu0
        %2364 = vdwg.mxu0
        %2365 = vmatprep.subr.bf16.mxu0 0
        %2366 = vmatpush1.bf16.msra.mxu0 %v1894
        %2367 = vmatprep.subr.bf16.mxu0 0
        %2368 = vmatpush1.bf16.msra.mxu0 %v1893
        %2369 = vmatprep.subr.bf16.mxu0 0
        %2370 = vmatpush1.bf16.msra.mxu0 %v1892
        %2371 = vmatprep.subr.bf16.mxu0 0
        %2372 = vmatpush1.bf16.msra.mxu0 %v1891
        %2373 = vmatprep.subr.bf16.mxu0 0
        %2374 = vmatpush1.bf16.msra.mxu0 %v1890
        %2375 = vmatprep.subr.bf16.mxu0 0
        %2376 = vmatpush1.bf16.msra.mxu0 %v1889
        %2377 = vmatprep.subr.bf16.mxu0 0
        %2378 = vmatpush1.bf16.msra.mxu0 %v1888
        %2379 = vmatprep.subr.bf16.mxu0 0
        %2380 = vmatpush1.bf16.msra.mxu0 %v1887
        %2381 = vmatprep.subr.bf16.mxu0 0
        %2382 = vmatpush2.bf16.msra.mxu0 %v1902
        %2383 = vmatprep.subr.bf16.mxu0 0
        %2384 = vmatpush2.bf16.msra.mxu0 %v1901
        %2385 = vmatprep.subr.bf16.mxu0 0
        %2386 = vmatpush2.bf16.msra.mxu0 %v1900
        %2387 = vmatprep.subr.bf16.mxu0 0
        %2388 = vmatpush2.bf16.msra.mxu0 %v1899
        %2389 = vmatprep.subr.bf16.mxu0 0
        %2390 = vmatpush2.bf16.msra.mxu0 %v1898
        %2391 = vmatprep.subr.bf16.mxu0 0
        %2392 = vmatpush2.bf16.msra.mxu0 %v1897
        %2393 = vmatprep.subr.bf16.mxu0 0
        %2394 = vmatpush2.bf16.msra.mxu0 %v1896
        %2395 = vmatprep.subr.bf16.mxu0 0
        %2396 = vmatpush2.bf16.msra.mxu0 %v1895
        %2397 = vmatprep.mubr.bf16.mxu0 %v1401
        %2398 = vmatmul.mubr.bf16.gmra.mxu0 %v1400
        %v2399 = vpop.f32.mrf.mxu0
        %v2400 = vadd.f32 %v2279, %v2399
        %v2401 = vpop.f32.mrf.mxu0
        %v2402 = vpop.f32.mrf.mxu0
        %v2403 = vadd.f32 %v2282, %v2402
        %v2404 = vpop.f32.mrf.mxu0
        %2405 = vmatprep.mubr.bf16.mxu0 %v1418
        %2406 = vmatmul.mubr.bf16.gmra.mxu0 %v1417
        %v2407 = vpop.f32.mrf.mxu0
        %v2408 = vadd.f32 %v2287, %v2407
        %v2409 = vpop.f32.mrf.mxu0
        %v2410 = vpop.f32.mrf.mxu0
        %v2411 = vadd.f32 %v2290, %v2410
        %v2412 = vpop.f32.mrf.mxu0
        %2413 = vmatprep.mubr.bf16.mxu0 %v1435
        %2414 = vmatmul.mubr.bf16.gmra.mxu0 %v1434
        %v2415 = vpop.f32.mrf.mxu0
        %v2416 = vadd.f32 %v2295, %v2415
        %v2417 = vpop.f32.mrf.mxu0
        %v2418 = vpop.f32.mrf.mxu0
        %v2419 = vadd.f32 %v2298, %v2418
        %v2420 = vpop.f32.mrf.mxu0
        %2421 = vmatprep.mubr.bf16.mxu0 %v1452
        %2422 = vmatmul.mubr.bf16.gmra.mxu0 %v1451
        %v2423 = vpop.f32.mrf.mxu0
        %v2424 = vadd.f32 %v2303, %v2423
        %v2425 = vpop.f32.mrf.mxu0
        %v2426 = vpop.f32.mrf.mxu0
        %v2427 = vadd.f32 %v2306, %v2426
        %v2428 = vpop.f32.mrf.mxu0
        %2429 = vmatprep.mubr.bf16.mxu0 %v1469
        %2430 = vmatmul.mubr.bf16.gmra.mxu0 %v1468
        %v2431 = vpop.f32.mrf.mxu0
        %v2432 = vadd.f32 %v2311, %v2431
        %v2433 = vpop.f32.mrf.mxu0
        %v2434 = vpop.f32.mrf.mxu0
        %v2435 = vadd.f32 %v2314, %v2434
        %v2436 = vpop.f32.mrf.mxu0
        %2437 = vmatprep.mubr.bf16.mxu0 %v1486
        %2438 = vmatmul.mubr.bf16.gmra.mxu0 %v1485
        %v2439 = vpop.f32.mrf.mxu0
        %v2440 = vadd.f32 %v2319, %v2439
        %v2441 = vpop.f32.mrf.mxu0
        %v2442 = vpop.f32.mrf.mxu0
        %v2443 = vadd.f32 %v2322, %v2442
        %v2444 = vpop.f32.mrf.mxu0
        %2445 = vmatprep.mubr.bf16.mxu0 %v1503
        %2446 = vmatmul.mubr.bf16.gmra.mxu0 %v1502
        %v2447 = vpop.f32.mrf.mxu0
        %v2448 = vadd.f32 %v2327, %v2447
        %v2449 = vpop.f32.mrf.mxu0
        %v2450 = vpop.f32.mrf.mxu0
        %v2451 = vadd.f32 %v2330, %v2450
        %v2452 = vpop.f32.mrf.mxu0
        %2453 = vmatprep.mubr.bf16.mxu0 %v1520
        %2454 = vmatmul.mubr.bf16.gmra.mxu0 %v1519
        %v2455 = vpop.f32.mrf.mxu0
        %v2456 = vadd.f32 %v2335, %v2455
        %v2457 = vpop.f32.mrf.mxu0
        %v2458 = vpop.f32.mrf.mxu0
        %v2459 = vadd.f32 %v2338, %v2458
        %v2460 = vpop.f32.mrf.mxu0
        %2461 = vmatprep.mubr.bf16.mxu0 %v1537
        %2462 = vmatmul.mubr.bf16.gmra.mxu0 %v1536
        %v2463 = vpop.f32.mrf.mxu0
        %v2464 = vadd.f32 %v2343, %v2463
        %v2465 = vpop.f32.mrf.mxu0
        %v2466 = vpop.f32.mrf.mxu0
        %v2467 = vadd.f32 %v2346, %v2466
        %v2468 = vpop.f32.mrf.mxu0
        %2469 = vmatprep.mubr.bf16.mxu0 %v1554
        %2470 = vmatmul.mubr.bf16.gmra.mxu0 %v1553
        %v2471 = vpop.f32.mrf.mxu0
        %v2472 = vadd.f32 %v2351, %v2471
        %v2473 = vpop.f32.mrf.mxu0
        %v2474 = vpop.f32.mrf.mxu0
        %v2475 = vadd.f32 %v2354, %v2474
        %v2476 = vpop.f32.mrf.mxu0
        %2477 = vmatprep.mubr.bf16.mxu0 %v1571
        %2478 = vmatmul.mubr.bf16.gmra.mxu0 %v1570
        %v2479 = vpop.f32.mrf.mxu0
        %v2480 = vadd.f32 %v2359, %v2479
        %v2481 = vpop.f32.mrf.mxu0
        %v2482 = vpop.f32.mrf.mxu0
        %v2483 = vadd.f32 %v2362, %v2482
        %v2484 = vpop.f32.mrf.mxu0
        %2485 = vdwg.mxu0
        %2486 = vmatprep.subr.bf16.mxu0 0
        %2487 = vmatpush1.bf16.msra.mxu0 %v1910
        %2488 = vmatprep.subr.bf16.mxu0 0
        %2489 = vmatpush1.bf16.msra.mxu0 %v1909
        %2490 = vmatprep.subr.bf16.mxu0 0
        %2491 = vmatpush1.bf16.msra.mxu0 %v1908
        %2492 = vmatprep.subr.bf16.mxu0 0
        %2493 = vmatpush1.bf16.msra.mxu0 %v1907
        %2494 = vmatprep.subr.bf16.mxu0 0
        %2495 = vmatpush1.bf16.msra.mxu0 %v1906
        %2496 = vmatprep.subr.bf16.mxu0 0
        %2497 = vmatpush1.bf16.msra.mxu0 %v1905
        %2498 = vmatprep.subr.bf16.mxu0 0
        %2499 = vmatpush1.bf16.msra.mxu0 %v1904
        %2500 = vmatprep.subr.bf16.mxu0 0
        %2501 = vmatpush1.bf16.msra.mxu0 %v1903
        %2502 = vmatprep.subr.bf16.mxu0 0
        %2503 = vmatpush2.bf16.msra.mxu0 %v1918
        %2504 = vmatprep.subr.bf16.mxu0 0
        %2505 = vmatpush2.bf16.msra.mxu0 %v1917
        %2506 = vmatprep.subr.bf16.mxu0 0
        %2507 = vmatpush2.bf16.msra.mxu0 %v1916
        %2508 = vmatprep.subr.bf16.mxu0 0
        %2509 = vmatpush2.bf16.msra.mxu0 %v1915
        %2510 = vmatprep.subr.bf16.mxu0 0
        %2511 = vmatpush2.bf16.msra.mxu0 %v1914
        %2512 = vmatprep.subr.bf16.mxu0 0
        %2513 = vmatpush2.bf16.msra.mxu0 %v1913
        %2514 = vmatprep.subr.bf16.mxu0 0
        %2515 = vmatpush2.bf16.msra.mxu0 %v1912
        %2516 = vmatprep.subr.bf16.mxu0 0
        %2517 = vmatpush2.bf16.msra.mxu0 %v1911
        %2518 = vmatprep.mubr.bf16.mxu0 %v1403
        %2519 = vmatmul.mubr.bf16.gmra.mxu0 %v1402
        %v2520 = vpop.f32.mrf.mxu0
        %v2521 = vadd.f32 %v2400, %v2520
        %v2522 = vpop.f32.mrf.mxu0
        %v2523 = vpop.f32.mrf.mxu0
        %v2524 = vadd.f32 %v2403, %v2523
        %v2525 = vpop.f32.mrf.mxu0
        %2526 = vmatprep.mubr.bf16.mxu0 %v1420
        %2527 = vmatmul.mubr.bf16.gmra.mxu0 %v1419
        %v2528 = vpop.f32.mrf.mxu0
        %v2529 = vadd.f32 %v2408, %v2528
        %v2530 = vpop.f32.mrf.mxu0
        %v2531 = vpop.f32.mrf.mxu0
        %v2532 = vadd.f32 %v2411, %v2531
        %v2533 = vpop.f32.mrf.mxu0
        %2534 = vmatprep.mubr.bf16.mxu0 %v1437
        %2535 = vmatmul.mubr.bf16.gmra.mxu0 %v1436
        %v2536 = vpop.f32.mrf.mxu0
        %v2537 = vadd.f32 %v2416, %v2536
        %v2538 = vpop.f32.mrf.mxu0
        %v2539 = vpop.f32.mrf.mxu0
        %v2540 = vadd.f32 %v2419, %v2539
        %v2541 = vpop.f32.mrf.mxu0
        %2542 = vmatprep.mubr.bf16.mxu0 %v1454
        %2543 = vmatmul.mubr.bf16.gmra.mxu0 %v1453
        %v2544 = vpop.f32.mrf.mxu0
        %v2545 = vadd.f32 %v2424, %v2544
        %v2546 = vpop.f32.mrf.mxu0
        %v2547 = vpop.f32.mrf.mxu0
        %v2548 = vadd.f32 %v2427, %v2547
        %v2549 = vpop.f32.mrf.mxu0
        %2550 = vmatprep.mubr.bf16.mxu0 %v1471
        %2551 = vmatmul.mubr.bf16.gmra.mxu0 %v1470
        %v2552 = vpop.f32.mrf.mxu0
        %v2553 = vadd.f32 %v2432, %v2552
        %v2554 = vpop.f32.mrf.mxu0
        %v2555 = vpop.f32.mrf.mxu0
        %v2556 = vadd.f32 %v2435, %v2555
        %v2557 = vpop.f32.mrf.mxu0
        %2558 = vmatprep.mubr.bf16.mxu0 %v1488
        %2559 = vmatmul.mubr.bf16.gmra.mxu0 %v1487
        %v2560 = vpop.f32.mrf.mxu0
        %v2561 = vadd.f32 %v2440, %v2560
        %v2562 = vpop.f32.mrf.mxu0
        %v2563 = vpop.f32.mrf.mxu0
        %v2564 = vadd.f32 %v2443, %v2563
        %v2565 = vpop.f32.mrf.mxu0
        %2566 = vmatprep.mubr.bf16.mxu0 %v1505
        %2567 = vmatmul.mubr.bf16.gmra.mxu0 %v1504
        %v2568 = vpop.f32.mrf.mxu0
        %v2569 = vadd.f32 %v2448, %v2568
        %v2570 = vpop.f32.mrf.mxu0
        %v2571 = vpop.f32.mrf.mxu0
        %v2572 = vadd.f32 %v2451, %v2571
        %v2573 = vpop.f32.mrf.mxu0
        %2574 = vmatprep.mubr.bf16.mxu0 %v1522
        %2575 = vmatmul.mubr.bf16.gmra.mxu0 %v1521
        %v2576 = vpop.f32.mrf.mxu0
        %v2577 = vadd.f32 %v2456, %v2576
        %v2578 = vpop.f32.mrf.mxu0
        %v2579 = vpop.f32.mrf.mxu0
        %v2580 = vadd.f32 %v2459, %v2579
        %v2581 = vpop.f32.mrf.mxu0
        %2582 = vmatprep.mubr.bf16.mxu0 %v1539
        %2583 = vmatmul.mubr.bf16.gmra.mxu0 %v1538
        %v2584 = vpop.f32.mrf.mxu0
        %v2585 = vadd.f32 %v2464, %v2584
        %v2586 = vpop.f32.mrf.mxu0
        %v2587 = vpop.f32.mrf.mxu0
        %v2588 = vadd.f32 %v2467, %v2587
        %v2589 = vpop.f32.mrf.mxu0
        %2590 = vmatprep.mubr.bf16.mxu0 %v1556
        %2591 = vmatmul.mubr.bf16.gmra.mxu0 %v1555
        %v2592 = vpop.f32.mrf.mxu0
        %v2593 = vadd.f32 %v2472, %v2592
        %v2594 = vpop.f32.mrf.mxu0
        %v2595 = vpop.f32.mrf.mxu0
        %v2596 = vadd.f32 %v2475, %v2595
        %v2597 = vpop.f32.mrf.mxu0
        %2598 = vmatprep.mubr.bf16.mxu0 %v1573
        %2599 = vmatmul.mubr.bf16.gmra.mxu0 %v1572
        %v2600 = vpop.f32.mrf.mxu0
        %v2601 = vadd.f32 %v2480, %v2600
        %v2602 = vpop.f32.mrf.mxu0
        %v2603 = vpop.f32.mrf.mxu0
        %v2604 = vadd.f32 %v2483, %v2603
        %v2605 = vpop.f32.mrf.mxu0
        %2606 = vdwg.mxu0
        %2607 = vmatprep.subr.bf16.mxu0 0
        %2608 = vmatpush1.bf16.msra.mxu0 %v1926
        %2609 = vmatprep.subr.bf16.mxu0 0
        %2610 = vmatpush1.bf16.msra.mxu0 %v1925
        %2611 = vmatprep.subr.bf16.mxu0 0
        %2612 = vmatpush1.bf16.msra.mxu0 %v1924
        %2613 = vmatprep.subr.bf16.mxu0 0
        %2614 = vmatpush1.bf16.msra.mxu0 %v1923
        %2615 = vmatprep.subr.bf16.mxu0 0
        %2616 = vmatpush1.bf16.msra.mxu0 %v1922
        %2617 = vmatprep.subr.bf16.mxu0 0
        %2618 = vmatpush1.bf16.msra.mxu0 %v1921
        %2619 = vmatprep.subr.bf16.mxu0 0
        %2620 = vmatpush1.bf16.msra.mxu0 %v1920
        %2621 = vmatprep.subr.bf16.mxu0 0
        %2622 = vmatpush1.bf16.msra.mxu0 %v1919
        %2623 = vmatprep.subr.bf16.mxu0 0
        %2624 = vmatpush2.bf16.msra.mxu0 %v1934
        %2625 = vmatprep.subr.bf16.mxu0 0
        %2626 = vmatpush2.bf16.msra.mxu0 %v1933
        %2627 = vmatprep.subr.bf16.mxu0 0
        %2628 = vmatpush2.bf16.msra.mxu0 %v1932
        %2629 = vmatprep.subr.bf16.mxu0 0
        %2630 = vmatpush2.bf16.msra.mxu0 %v1931
        %2631 = vmatprep.subr.bf16.mxu0 0
        %2632 = vmatpush2.bf16.msra.mxu0 %v1930
        %2633 = vmatprep.subr.bf16.mxu0 0
        %2634 = vmatpush2.bf16.msra.mxu0 %v1929
        %2635 = vmatprep.subr.bf16.mxu0 0
        %2636 = vmatpush2.bf16.msra.mxu0 %v1928
        %2637 = vmatprep.subr.bf16.mxu0 0
        %2638 = vmatpush2.bf16.msra.mxu0 %v1927
        %2639 = vmatprep.mubr.bf16.mxu0 %v1405
        %2640 = vmatmul.mubr.bf16.gmra.mxu0 %v1404
        %v2641 = vpop.f32.mrf.mxu0
        %v2642 = vadd.f32 %v2521, %v2641
        %v2643 = vpop.f32.mrf.mxu0
        %v2644 = vpop.f32.mrf.mxu0
        %v2645 = vadd.f32 %v2524, %v2644
        %v2646 = vpop.f32.mrf.mxu0
        %2647 = vmatprep.mubr.bf16.mxu0 %v1422
        %2648 = vmatmul.mubr.bf16.gmra.mxu0 %v1421
        %v2649 = vpop.f32.mrf.mxu0
        %v2650 = vadd.f32 %v2529, %v2649
        %v2651 = vpop.f32.mrf.mxu0
        %v2652 = vpop.f32.mrf.mxu0
        %v2653 = vadd.f32 %v2532, %v2652
        %v2654 = vpop.f32.mrf.mxu0
        %2655 = vmatprep.mubr.bf16.mxu0 %v1439
        %2656 = vmatmul.mubr.bf16.gmra.mxu0 %v1438
        %v2657 = vpop.f32.mrf.mxu0
        %v2658 = vadd.f32 %v2537, %v2657
        %v2659 = vpop.f32.mrf.mxu0
        %v2660 = vpop.f32.mrf.mxu0
        %v2661 = vadd.f32 %v2540, %v2660
        %v2662 = vpop.f32.mrf.mxu0
        %2663 = vmatprep.mubr.bf16.mxu0 %v1456
        %2664 = vmatmul.mubr.bf16.gmra.mxu0 %v1455
        %v2665 = vpop.f32.mrf.mxu0
        %v2666 = vadd.f32 %v2545, %v2665
        %v2667 = vpop.f32.mrf.mxu0
        %v2668 = vpop.f32.mrf.mxu0
        %v2669 = vadd.f32 %v2548, %v2668
        %v2670 = vpop.f32.mrf.mxu0
        %2671 = vmatprep.mubr.bf16.mxu0 %v1473
        %2672 = vmatmul.mubr.bf16.gmra.mxu0 %v1472
        %v2673 = vpop.f32.mrf.mxu0
        %v2674 = vadd.f32 %v2553, %v2673
        %v2675 = vpop.f32.mrf.mxu0
        %v2676 = vpop.f32.mrf.mxu0
        %v2677 = vadd.f32 %v2556, %v2676
        %v2678 = vpop.f32.mrf.mxu0
        %2679 = vmatprep.mubr.bf16.mxu0 %v1490
        %2680 = vmatmul.mubr.bf16.gmra.mxu0 %v1489
        %v2681 = vpop.f32.mrf.mxu0
        %v2682 = vadd.f32 %v2561, %v2681
        %v2683 = vpop.f32.mrf.mxu0
        %v2684 = vpop.f32.mrf.mxu0
        %v2685 = vadd.f32 %v2564, %v2684
        %v2686 = vpop.f32.mrf.mxu0
        %2687 = vmatprep.mubr.bf16.mxu0 %v1507
        %2688 = vmatmul.mubr.bf16.gmra.mxu0 %v1506
        %v2689 = vpop.f32.mrf.mxu0
        %v2690 = vadd.f32 %v2569, %v2689
        %v2691 = vpop.f32.mrf.mxu0
        %v2692 = vpop.f32.mrf.mxu0
        %v2693 = vadd.f32 %v2572, %v2692
        %v2694 = vpop.f32.mrf.mxu0
        %2695 = vmatprep.mubr.bf16.mxu0 %v1524
        %2696 = vmatmul.mubr.bf16.gmra.mxu0 %v1523
        %v2697 = vpop.f32.mrf.mxu0
        %v2698 = vadd.f32 %v2577, %v2697
        %v2699 = vpop.f32.mrf.mxu0
        %v2700 = vpop.f32.mrf.mxu0
        %v2701 = vadd.f32 %v2580, %v2700
        %v2702 = vpop.f32.mrf.mxu0
        %2703 = vmatprep.mubr.bf16.mxu0 %v1541
        %2704 = vmatmul.mubr.bf16.gmra.mxu0 %v1540
        %v2705 = vpop.f32.mrf.mxu0
        %v2706 = vadd.f32 %v2585, %v2705
        %v2707 = vpop.f32.mrf.mxu0
        %v2708 = vpop.f32.mrf.mxu0
        %v2709 = vadd.f32 %v2588, %v2708
        %v2710 = vpop.f32.mrf.mxu0
        %2711 = vmatprep.mubr.bf16.mxu0 %v1558
        %2712 = vmatmul.mubr.bf16.gmra.mxu0 %v1557
        %v2713 = vpop.f32.mrf.mxu0
        %v2714 = vadd.f32 %v2593, %v2713
        %v2715 = vpop.f32.mrf.mxu0
        %v2716 = vpop.f32.mrf.mxu0
        %v2717 = vadd.f32 %v2596, %v2716
        %v2718 = vpop.f32.mrf.mxu0
        %2719 = vmatprep.mubr.bf16.mxu0 %v1575
        %2720 = vmatmul.mubr.bf16.gmra.mxu0 %v1574
        %v2721 = vpop.f32.mrf.mxu0
        %v2722 = vadd.f32 %v2601, %v2721
        %v2723 = vpop.f32.mrf.mxu0
        %v2724 = vpop.f32.mrf.mxu0
        %v2725 = vadd.f32 %v2604, %v2724
        %v2726 = vpop.f32.mrf.mxu0
        %2727 = vdwg.mxu0
        %2728 = vmatprep.subr.bf16.mxu0 0
        %2729 = vmatpush1.bf16.msra.mxu0 %v1942
        %2730 = vmatprep.subr.bf16.mxu0 0
        %2731 = vmatpush1.bf16.msra.mxu0 %v1941
        %2732 = vmatprep.subr.bf16.mxu0 0
        %2733 = vmatpush1.bf16.msra.mxu0 %v1940
        %2734 = vmatprep.subr.bf16.mxu0 0
        %2735 = vmatpush1.bf16.msra.mxu0 %v1939
        %2736 = vmatprep.subr.bf16.mxu0 0
        %2737 = vmatpush1.bf16.msra.mxu0 %v1938
        %2738 = vmatprep.subr.bf16.mxu0 0
        %2739 = vmatpush1.bf16.msra.mxu0 %v1937
        %2740 = vmatprep.subr.bf16.mxu0 0
        %2741 = vmatpush1.bf16.msra.mxu0 %v1936
        %2742 = vmatprep.subr.bf16.mxu0 0
        %2743 = vmatpush1.bf16.msra.mxu0 %v1935
        %2744 = vmatprep.subr.bf16.mxu0 0
        %2745 = vmatpush2.bf16.msra.mxu0 %v1950
        %2746 = vmatprep.subr.bf16.mxu0 0
        %2747 = vmatpush2.bf16.msra.mxu0 %v1949
        %2748 = vmatprep.subr.bf16.mxu0 0
        %2749 = vmatpush2.bf16.msra.mxu0 %v1948
        %2750 = vmatprep.subr.bf16.mxu0 0
        %2751 = vmatpush2.bf16.msra.mxu0 %v1947
        %2752 = vmatprep.subr.bf16.mxu0 0
        %2753 = vmatpush2.bf16.msra.mxu0 %v1946
        %2754 = vmatprep.subr.bf16.mxu0 0
        %2755 = vmatpush2.bf16.msra.mxu0 %v1945
        %2756 = vmatprep.subr.bf16.mxu0 0
        %2757 = vmatpush2.bf16.msra.mxu0 %v1944
        %2758 = vmatprep.subr.bf16.mxu0 0
        %2759 = vmatpush2.bf16.msra.mxu0 %v1943
        %2760 = vmatprep.mubr.bf16.mxu0 %v1407
        %2761 = vmatmul.mubr.bf16.gmra.mxu0 %v1406
        %v2762 = vpop.f32.mrf.mxu0
        %v2763 = vadd.f32 %v2642, %v2762
        %v2764 = vpop.f32.mrf.mxu0
        %v2765 = vpop.f32.mrf.mxu0
        %v2766 = vadd.f32 %v2645, %v2765
        %v2767 = vpop.f32.mrf.mxu0
        %2768 = vmatprep.mubr.bf16.mxu0 %v1424
        %2769 = vmatmul.mubr.bf16.gmra.mxu0 %v1423
        %v2770 = vpop.f32.mrf.mxu0
        %v2771 = vadd.f32 %v2650, %v2770
        %v2772 = vpop.f32.mrf.mxu0
        %v2773 = vpop.f32.mrf.mxu0
        %v2774 = vadd.f32 %v2653, %v2773
        %v2775 = vpop.f32.mrf.mxu0
        %2776 = vmatprep.mubr.bf16.mxu0 %v1441
        %2777 = vmatmul.mubr.bf16.gmra.mxu0 %v1440
        %v2778 = vpop.f32.mrf.mxu0
        %v2779 = vadd.f32 %v2658, %v2778
        %v2780 = vpop.f32.mrf.mxu0
        %v2781 = vpop.f32.mrf.mxu0
        %v2782 = vadd.f32 %v2661, %v2781
        %v2783 = vpop.f32.mrf.mxu0
        %2784 = vmatprep.mubr.bf16.mxu0 %v1458
        %2785 = vmatmul.mubr.bf16.gmra.mxu0 %v1457
        %v2786 = vpop.f32.mrf.mxu0
        %v2787 = vadd.f32 %v2666, %v2786
        %v2788 = vpop.f32.mrf.mxu0
        %v2789 = vpop.f32.mrf.mxu0
        %v2790 = vadd.f32 %v2669, %v2789
        %v2791 = vpop.f32.mrf.mxu0
        %2792 = vmatprep.mubr.bf16.mxu0 %v1475
        %2793 = vmatmul.mubr.bf16.gmra.mxu0 %v1474
        %v2794 = vpop.f32.mrf.mxu0
        %v2795 = vadd.f32 %v2674, %v2794
        %v2796 = vpop.f32.mrf.mxu0
        %v2797 = vpop.f32.mrf.mxu0
        %v2798 = vadd.f32 %v2677, %v2797
        %v2799 = vpop.f32.mrf.mxu0
        %2800 = vmatprep.mubr.bf16.mxu0 %v1492
        %2801 = vmatmul.mubr.bf16.gmra.mxu0 %v1491
        %v2802 = vpop.f32.mrf.mxu0
        %v2803 = vadd.f32 %v2682, %v2802
        %v2804 = vpop.f32.mrf.mxu0
        %v2805 = vpop.f32.mrf.mxu0
        %v2806 = vadd.f32 %v2685, %v2805
        %v2807 = vpop.f32.mrf.mxu0
        %2808 = vmatprep.mubr.bf16.mxu0 %v1509
        %2809 = vmatmul.mubr.bf16.gmra.mxu0 %v1508
        %v2810 = vpop.f32.mrf.mxu0
        %v2811 = vadd.f32 %v2690, %v2810
        %v2812 = vpop.f32.mrf.mxu0
        %v2813 = vpop.f32.mrf.mxu0
        %v2814 = vadd.f32 %v2693, %v2813
        %v2815 = vpop.f32.mrf.mxu0
        %2816 = vmatprep.mubr.bf16.mxu0 %v1526
        %2817 = vmatmul.mubr.bf16.gmra.mxu0 %v1525
        %v2818 = vpop.f32.mrf.mxu0
        %v2819 = vadd.f32 %v2698, %v2818
        %v2820 = vpop.f32.mrf.mxu0
        %v2821 = vpop.f32.mrf.mxu0
        %v2822 = vadd.f32 %v2701, %v2821
        %v2823 = vpop.f32.mrf.mxu0
        %2824 = vmatprep.mubr.bf16.mxu0 %v1543
        %2825 = vmatmul.mubr.bf16.gmra.mxu0 %v1542
        %v2826 = vpop.f32.mrf.mxu0
        %v2827 = vadd.f32 %v2706, %v2826
        %v2828 = vpop.f32.mrf.mxu0
        %v2829 = vpop.f32.mrf.mxu0
        %v2830 = vadd.f32 %v2709, %v2829
        %v2831 = vpop.f32.mrf.mxu0
        %2832 = vmatprep.mubr.bf16.mxu0 %v1560
        %2833 = vmatmul.mubr.bf16.gmra.mxu0 %v1559
        %v2834 = vpop.f32.mrf.mxu0
        %v2835 = vadd.f32 %v2714, %v2834
        %v2836 = vpop.f32.mrf.mxu0
        %v2837 = vpop.f32.mrf.mxu0
        %v2838 = vadd.f32 %v2717, %v2837
        %v2839 = vpop.f32.mrf.mxu0
        %2840 = vmatprep.mubr.bf16.mxu0 %v1577
        %2841 = vmatmul.mubr.bf16.gmra.mxu0 %v1576
        %v2842 = vpop.f32.mrf.mxu0
        %v2843 = vadd.f32 %v2722, %v2842
        %v2844 = vpop.f32.mrf.mxu0
        %v2845 = vpop.f32.mrf.mxu0
        %v2846 = vadd.f32 %v2725, %v2845
        %v2847 = vpop.f32.mrf.mxu0
        %2848 = vdwg.mxu0
        %2849 = vmatprep.subr.bf16.mxu0 0
        %2850 = vmatpush1.bf16.msra.mxu0 %v1958
        %2851 = vmatprep.subr.bf16.mxu0 0
        %2852 = vmatpush1.bf16.msra.mxu0 %v1957
        %2853 = vmatprep.subr.bf16.mxu0 0
        %2854 = vmatpush1.bf16.msra.mxu0 %v1956
        %2855 = vmatprep.subr.bf16.mxu0 0
        %2856 = vmatpush1.bf16.msra.mxu0 %v1955
        %2857 = vmatprep.subr.bf16.mxu0 0
        %2858 = vmatpush1.bf16.msra.mxu0 %v1954
        %2859 = vmatprep.subr.bf16.mxu0 0
        %2860 = vmatpush1.bf16.msra.mxu0 %v1953
        %2861 = vmatprep.subr.bf16.mxu0 0
        %2862 = vmatpush1.bf16.msra.mxu0 %v1952
        %2863 = vmatprep.subr.bf16.mxu0 0
        %2864 = vmatpush1.bf16.msra.mxu0 %v1951
        %2865 = vmatprep.subr.bf16.mxu0 0
        %2866 = vmatpush2.bf16.msra.mxu0 %v1966
        %2867 = vmatprep.subr.bf16.mxu0 0
        %2868 = vmatpush2.bf16.msra.mxu0 %v1965
        %2869 = vmatprep.subr.bf16.mxu0 0
        %2870 = vmatpush2.bf16.msra.mxu0 %v1964
        %2871 = vmatprep.subr.bf16.mxu0 0
        %2872 = vmatpush2.bf16.msra.mxu0 %v1963
        %2873 = vmatprep.subr.bf16.mxu0 0
        %2874 = vmatpush2.bf16.msra.mxu0 %v1962
        %2875 = vmatprep.subr.bf16.mxu0 0
        %2876 = vmatpush2.bf16.msra.mxu0 %v1961
        %2877 = vmatprep.subr.bf16.mxu0 0
        %2878 = vmatpush2.bf16.msra.mxu0 %v1960
        %2879 = vmatprep.subr.bf16.mxu0 0
        %2880 = vmatpush2.bf16.msra.mxu0 %v1959
        %2881 = vmatprep.mubr.bf16.mxu0 %v1409
        %2882 = vmatmul.mubr.bf16.gmra.mxu0 %v1408
        %v2883 = vpop.f32.mrf.mxu0
        %v2884 = vadd.f32 %v2763, %v2883
        %v2885 = vpop.f32.mrf.mxu0
        %v2886 = vpop.f32.mrf.mxu0
        %v2887 = vadd.f32 %v2766, %v2886
        %v2888 = vpop.f32.mrf.mxu0
        %2889 = vmatprep.mubr.bf16.mxu0 %v1426
        %2890 = vmatmul.mubr.bf16.gmra.mxu0 %v1425
        %v2891 = vpop.f32.mrf.mxu0
        %v2892 = vadd.f32 %v2771, %v2891
        %v2893 = vpop.f32.mrf.mxu0
        %v2894 = vpop.f32.mrf.mxu0
        %v2895 = vadd.f32 %v2774, %v2894
        %v2896 = vpop.f32.mrf.mxu0
        %2897 = vmatprep.mubr.bf16.mxu0 %v1443
        %2898 = vmatmul.mubr.bf16.gmra.mxu0 %v1442
        %v2899 = vpop.f32.mrf.mxu0
        %v2900 = vadd.f32 %v2779, %v2899
        %v2901 = vpop.f32.mrf.mxu0
        %v2902 = vpop.f32.mrf.mxu0
        %v2903 = vadd.f32 %v2782, %v2902
        %v2904 = vpop.f32.mrf.mxu0
        %2905 = vmatprep.mubr.bf16.mxu0 %v1460
        %2906 = vmatmul.mubr.bf16.gmra.mxu0 %v1459
        %v2907 = vpop.f32.mrf.mxu0
        %v2908 = vadd.f32 %v2787, %v2907
        %v2909 = vpop.f32.mrf.mxu0
        %v2910 = vpop.f32.mrf.mxu0
        %v2911 = vadd.f32 %v2790, %v2910
        %v2912 = vpop.f32.mrf.mxu0
        %2913 = vmatprep.mubr.bf16.mxu0 %v1477
        %2914 = vmatmul.mubr.bf16.gmra.mxu0 %v1476
        %v2915 = vpop.f32.mrf.mxu0
        %v2916 = vadd.f32 %v2795, %v2915
        %v2917 = vpop.f32.mrf.mxu0
        %v2918 = vpop.f32.mrf.mxu0
        %v2919 = vadd.f32 %v2798, %v2918
        %v2920 = vpop.f32.mrf.mxu0
        %2921 = vmatprep.mubr.bf16.mxu0 %v1494
        %2922 = vmatmul.mubr.bf16.gmra.mxu0 %v1493
        %v2923 = vpop.f32.mrf.mxu0
        %v2924 = vadd.f32 %v2803, %v2923
        %v2925 = vpop.f32.mrf.mxu0
        %v2926 = vpop.f32.mrf.mxu0
        %v2927 = vadd.f32 %v2806, %v2926
        %v2928 = vpop.f32.mrf.mxu0
        %2929 = vmatprep.mubr.bf16.mxu0 %v1511
        %2930 = vmatmul.mubr.bf16.gmra.mxu0 %v1510
        %v2931 = vpop.f32.mrf.mxu0
        %v2932 = vadd.f32 %v2811, %v2931
        %v2933 = vpop.f32.mrf.mxu0
        %v2934 = vpop.f32.mrf.mxu0
        %v2935 = vadd.f32 %v2814, %v2934
        %v2936 = vpop.f32.mrf.mxu0
        %2937 = vmatprep.mubr.bf16.mxu0 %v1528
        %2938 = vmatmul.mubr.bf16.gmra.mxu0 %v1527
        %v2939 = vpop.f32.mrf.mxu0
        %v2940 = vadd.f32 %v2819, %v2939
        %v2941 = vpop.f32.mrf.mxu0
        %v2942 = vpop.f32.mrf.mxu0
        %v2943 = vadd.f32 %v2822, %v2942
        %v2944 = vpop.f32.mrf.mxu0
        %2945 = vmatprep.mubr.bf16.mxu0 %v1545
        %2946 = vmatmul.mubr.bf16.gmra.mxu0 %v1544
        %v2947 = vpop.f32.mrf.mxu0
        %v2948 = vadd.f32 %v2827, %v2947
        %v2949 = vpop.f32.mrf.mxu0
        %v2950 = vpop.f32.mrf.mxu0
        %v2951 = vadd.f32 %v2830, %v2950
        %v2952 = vpop.f32.mrf.mxu0
        %2953 = vmatprep.mubr.bf16.mxu0 %v1562
        %2954 = vmatmul.mubr.bf16.gmra.mxu0 %v1561
        %v2955 = vpop.f32.mrf.mxu0
        %v2956 = vadd.f32 %v2835, %v2955
        %v2957 = vpop.f32.mrf.mxu0
        %v2958 = vpop.f32.mrf.mxu0
        %v2959 = vadd.f32 %v2838, %v2958
        %v2960 = vpop.f32.mrf.mxu0
        %2961 = vmatprep.mubr.bf16.mxu0 %v1579
        %2962 = vmatmul.mubr.bf16.gmra.mxu0 %v1578
        %v2963 = vpop.f32.mrf.mxu0
        %v2964 = vadd.f32 %v2843, %v2963
        %v2965 = vpop.f32.mrf.mxu0
        %v2966 = vpop.f32.mrf.mxu0
        %v2967 = vadd.f32 %v2846, %v2966
        %v2968 = vpop.f32.mrf.mxu0
        %2969 = vdwg.mxu0
        %2970 = vmatprep.subr.bf16.mxu0 0
        %2971 = vmatpush1.bf16.msra.mxu0 0
        %2972 = vmatprep.subr.bf16.mxu0 0
        %2973 = vmatpush1.bf16.msra.mxu0 0
        %2974 = vmatprep.subr.bf16.mxu0 0
        %2975 = vmatpush1.bf16.msra.mxu0 0
        %2976 = vmatprep.subr.bf16.mxu0 0
        %2977 = vmatpush1.bf16.msra.mxu0 0
        %2978 = vmatprep.subr.bf16.mxu0 0
        %2979 = vmatpush1.bf16.msra.mxu0 0
        %2980 = vmatprep.subr.bf16.mxu0 0
        %2981 = vmatpush1.bf16.msra.mxu0 0
        %2982 = vmatprep.subr.bf16.mxu0 0
        %2983 = vmatpush1.bf16.msra.mxu0 0
        %2984 = vmatprep.subr.bf16.mxu0 0
        %2985 = vmatpush1.bf16.msra.mxu0 %v1967
        %2986 = vmatprep.subr.bf16.mxu0 0
        %2987 = vmatpush2.bf16.msra.mxu0 0
        %2988 = vmatprep.subr.bf16.mxu0 0
        %2989 = vmatpush2.bf16.msra.mxu0 0
        %2990 = vmatprep.subr.bf16.mxu0 0
        %2991 = vmatpush2.bf16.msra.mxu0 0
        %2992 = vmatprep.subr.bf16.mxu0 0
        %2993 = vmatpush2.bf16.msra.mxu0 0
        %2994 = vmatprep.subr.bf16.mxu0 0
        %2995 = vmatpush2.bf16.msra.mxu0 0
        %2996 = vmatprep.subr.bf16.mxu0 0
        %2997 = vmatpush2.bf16.msra.mxu0 0
        %2998 = vmatprep.subr.bf16.mxu0 0
        %2999 = vmatpush2.bf16.msra.mxu0 0
        %3000 = vmatprep.subr.bf16.mxu0 0
        %3001 = vmatpush2.bf16.msra.mxu0 0
        %3002 = vmatprep.mubr.bf16.mxu0 0
        %3003 = vmatmul.mubr.bf16.gmra.mxu0 %v1970
        %v3004 = vpop.f32.mrf.mxu0
        %v3005 = vadd.f32 %v2884, %v3004
        %v3006 = vpop.f32.mrf.mxu0
        %v3007 = vpop.f32.mrf.mxu0
        %v3008 = vadd.f32 %v2887, %v3007
        %v3009 = vpop.f32.mrf.mxu0
        %3010 = vmatprep.mubr.bf16.mxu0 0
        %3011 = vmatmul.mubr.bf16.gmra.mxu0 %v1973
        %v3012 = vpop.f32.mrf.mxu0
        %v3013 = vadd.f32 %v2892, %v3012
        %v3014 = vpop.f32.mrf.mxu0
        %v3015 = vpop.f32.mrf.mxu0
        %v3016 = vadd.f32 %v2895, %v3015
        %v3017 = vpop.f32.mrf.mxu0
        %3018 = vmatprep.mubr.bf16.mxu0 0
        %3019 = vmatmul.mubr.bf16.gmra.mxu0 %v1976
        %v3020 = vpop.f32.mrf.mxu0
        %v3021 = vadd.f32 %v2900, %v3020
        %v3022 = vpop.f32.mrf.mxu0
        %v3023 = vpop.f32.mrf.mxu0
        %v3024 = vadd.f32 %v2903, %v3023
        %v3025 = vpop.f32.mrf.mxu0
        %3026 = vmatprep.mubr.bf16.mxu0 0
        %3027 = vmatmul.mubr.bf16.gmra.mxu0 %v1979
        %v3028 = vpop.f32.mrf.mxu0
        %v3029 = vadd.f32 %v2908, %v3028
        %v3030 = vpop.f32.mrf.mxu0
        %v3031 = vpop.f32.mrf.mxu0
        %v3032 = vadd.f32 %v2911, %v3031
        %v3033 = vpop.f32.mrf.mxu0
        %3034 = vmatprep.mubr.bf16.mxu0 0
        %3035 = vmatmul.mubr.bf16.gmra.mxu0 %v1982
        %v3036 = vpop.f32.mrf.mxu0
        %v3037 = vadd.f32 %v2916, %v3036
        %v3038 = vpop.f32.mrf.mxu0
        %v3039 = vpop.f32.mrf.mxu0
        %v3040 = vadd.f32 %v2919, %v3039
        %v3041 = vpop.f32.mrf.mxu0
        %3042 = vmatprep.mubr.bf16.mxu0 0
        %3043 = vmatmul.mubr.bf16.gmra.mxu0 %v1985
        %v3044 = vpop.f32.mrf.mxu0
        %v3045 = vadd.f32 %v2924, %v3044
        %v3046 = vpop.f32.mrf.mxu0
        %v3047 = vpop.f32.mrf.mxu0
        %v3048 = vadd.f32 %v2927, %v3047
        %v3049 = vpop.f32.mrf.mxu0
        %3050 = vmatprep.mubr.bf16.mxu0 0
        %3051 = vmatmul.mubr.bf16.gmra.mxu0 %v1988
        %v3052 = vpop.f32.mrf.mxu0
        %v3053 = vadd.f32 %v2932, %v3052
        %v3054 = vpop.f32.mrf.mxu0
        %v3055 = vpop.f32.mrf.mxu0
        %v3056 = vadd.f32 %v2935, %v3055
        %v3057 = vpop.f32.mrf.mxu0
        %3058 = vmatprep.mubr.bf16.mxu0 0
        %3059 = vmatmul.mubr.bf16.gmra.mxu0 %v1991
        %v3060 = vpop.f32.mrf.mxu0
        %v3061 = vadd.f32 %v2940, %v3060
        %v3062 = vpop.f32.mrf.mxu0
        %v3063 = vpop.f32.mrf.mxu0
        %v3064 = vadd.f32 %v2943, %v3063
        %v3065 = vpop.f32.mrf.mxu0
        %3066 = vmatprep.mubr.bf16.mxu0 0
        %3067 = vmatmul.mubr.bf16.gmra.mxu0 %v1994
        %v3068 = vpop.f32.mrf.mxu0
        %v3069 = vadd.f32 %v2948, %v3068
        %v3070 = vpop.f32.mrf.mxu0
        %v3071 = vpop.f32.mrf.mxu0
        %v3072 = vadd.f32 %v2951, %v3071
        %v3073 = vpop.f32.mrf.mxu0
        %3074 = vmatprep.mubr.bf16.mxu0 0
        %3075 = vmatmul.mubr.bf16.gmra.mxu0 %v1997
        %v3076 = vpop.f32.mrf.mxu0
        %v3077 = vadd.f32 %v2956, %v3076
        %v3078 = vpop.f32.mrf.mxu0
        %v3079 = vpop.f32.mrf.mxu0
        %v3080 = vadd.f32 %v2959, %v3079
        %v3081 = vpop.f32.mrf.mxu0
        %3082 = vmatprep.mubr.bf16.mxu0 0
        %3083 = vmatmul.mubr.bf16.gmra.mxu0 %v2000
        %v3084 = vpop.f32.mrf.mxu0
        %v3085 = vadd.f32 %v2964, %v3084
        %v3086 = vpop.f32.mrf.mxu0
        %v3087 = vpop.f32.mrf.mxu0
        %v3088 = vadd.f32 %v2967, %v3087
        %v3089 = vpop.f32.mrf.mxu0
        %3090 = vdwg.mxu0
        %vm3091 = vcmask 400384
        %v3092 = vsel %vm3091, %v3005, 0.0
        %3093 = vadd.xlane.f32.xlu0 %v3092
        %v3094 = vpop.xlane.xlu0 %3093
        %v3095 = vsel %vm3091, %v3008, 0.0
        %3096 = vadd.xlane.f32.xlu0 %v3095
        %v3097 = vpop.xlane.xlu0 %3096
        %v3098 = vsel %vm3091, %v3013, 0.0
        %3099 = vadd.xlane.f32.xlu0 %v3098
        %v3100 = vpop.xlane.xlu0 %3099
        %v3101 = vsel %vm3091, %v3016, 0.0
        %3102 = vadd.xlane.f32.xlu0 %v3101
        %v3103 = vpop.xlane.xlu0 %3102
        %v3104 = vsel %vm3091, %v3021, 0.0
        %3105 = vadd.xlane.f32.xlu0 %v3104
        %v3106 = vpop.xlane.xlu0 %3105
        %v3107 = vsel %vm3091, %v3024, 0.0
        %3108 = vadd.xlane.f32.xlu0 %v3107
        %v3109 = vpop.xlane.xlu0 %3108
        %v3110 = vsel %vm3091, %v3029, 0.0
        %3111 = vadd.xlane.f32.xlu0 %v3110
        %v3112 = vpop.xlane.xlu0 %3111
        %v3113 = vsel %vm3091, %v3032, 0.0
        %3114 = vadd.xlane.f32.xlu0 %v3113
        %v3115 = vpop.xlane.xlu0 %3114
        %v3116 = vsel %vm3091, %v3037, 0.0
        %3117 = vadd.xlane.f32.xlu0 %v3116
        %v3118 = vpop.xlane.xlu0 %3117
        %v3119 = vsel %vm3091, %v3040, 0.0
        %3120 = vadd.xlane.f32.xlu0 %v3119
        %v3121 = vpop.xlane.xlu0 %3120
        %v3122 = vsel %vm3091, %v3045, 0.0
        %3123 = vadd.xlane.f32.xlu0 %v3122
        %v3124 = vpop.xlane.xlu0 %3123
        %v3125 = vsel %vm3091, %v3048, 0.0
        %3126 = vadd.xlane.f32.xlu0 %v3125
        %v3127 = vpop.xlane.xlu0 %3126
        %v3128 = vsel %vm3091, %v3053, 0.0
        %3129 = vadd.xlane.f32.xlu0 %v3128
        %v3130 = vpop.xlane.xlu0 %3129
        %v3131 = vsel %vm3091, %v3056, 0.0
        %3132 = vadd.xlane.f32.xlu0 %v3131
        %v3133 = vpop.xlane.xlu0 %3132
        %v3134 = vsel %vm3091, %v3061, 0.0
        %3135 = vadd.xlane.f32.xlu0 %v3134
        %v3136 = vpop.xlane.xlu0 %3135
        %v3137 = vsel %vm3091, %v3064, 0.0
        %3138 = vadd.xlane.f32.xlu0 %v3137
        %v3139 = vpop.xlane.xlu0 %3138
        %v3140 = vsel %vm3091, %v3069, 0.0
        %3141 = vadd.xlane.f32.xlu0 %v3140
        %v3142 = vpop.xlane.xlu0 %3141
        %v3143 = vsel %vm3091, %v3072, 0.0
        %3144 = vadd.xlane.f32.xlu0 %v3143
        %v3145 = vpop.xlane.xlu0 %3144
        %v3146 = vsel %vm3091, %v3077, 0.0
        %3147 = vadd.xlane.f32.xlu0 %v3146
        %v3148 = vpop.xlane.xlu0 %3147
        %v3149 = vsel %vm3091, %v3080, 0.0
        %3150 = vadd.xlane.f32.xlu0 %v3149
        %v3151 = vpop.xlane.xlu0 %3150
        %v3152 = vsel %vm3091, %v3085, 0.0
        %3153 = vadd.xlane.f32.xlu0 %v3152
        %v3154 = vpop.xlane.xlu0 %3153
        %v3155 = vsel %vm3091, %v3088, 0.0
        %3156 = vadd.xlane.f32.xlu0 %v3155
        %v3157 = vpop.xlane.xlu0 %3156
        %v3158 = vrcp.pop 49.0
        %v3159 = vmul.f32 %v3094, %v3158
        %v3160 = vmul.f32 %v3097, %v3158
        %v3161 = vmul.f32 %v3100, %v3158
        %v3162 = vmul.f32 %v3103, %v3158
        %v3163 = vmul.f32 %v3106, %v3158
        %v3164 = vmul.f32 %v3109, %v3158
        %v3165 = vmul.f32 %v3112, %v3158
        %v3166 = vmul.f32 %v3115, %v3158
        %v3167 = vmul.f32 %v3118, %v3158
        %v3168 = vmul.f32 %v3121, %v3158
        %v3169 = vmul.f32 %v3124, %v3158
        %v3170 = vmul.f32 %v3127, %v3158
        %v3171 = vmul.f32 %v3130, %v3158
        %v3172 = vmul.f32 %v3133, %v3158
        %v3173 = vmul.f32 %v3136, %v3158
        %v3174 = vmul.f32 %v3139, %v3158
        %v3175 = vmul.f32 %v3142, %v3158
        %v3176 = vmul.f32 %v3145, %v3158
        %v3177 = vmul.f32 %v3148, %v3158
        %v3178 = vmul.f32 %v3151, %v3158
        %v3179 = vmul.f32 %v3154, %v3158
        %v3180 = vmul.f32 %v3157, %v3158
        %v3181 = vsub.f32 %v3005, %v3159
        %v3182 = vsub.f32 %v3008, %v3160
        %v3183 = vsub.f32 %v3013, %v3161
        %v3184 = vsub.f32 %v3016, %v3162
        %v3185 = vsub.f32 %v3021, %v3163
        %v3186 = vsub.f32 %v3024, %v3164
        %v3187 = vsub.f32 %v3029, %v3165
        %v3188 = vsub.f32 %v3032, %v3166
        %v3189 = vsub.f32 %v3037, %v3167
        %v3190 = vsub.f32 %v3040, %v3168
        %v3191 = vsub.f32 %v3045, %v3169
        %v3192 = vsub.f32 %v3048, %v3170
        %v3193 = vsub.f32 %v3053, %v3171
        %v3194 = vsub.f32 %v3056, %v3172
        %v3195 = vsub.f32 %v3061, %v3173
        %v3196 = vsub.f32 %v3064, %v3174
        %v3197 = vsub.f32 %v3069, %v3175
        %v3198 = vsub.f32 %v3072, %v3176
        %v3199 = vsub.f32 %v3077, %v3177
        %v3200 = vsub.f32 %v3080, %v3178
        %v3201 = vsub.f32 %v3085, %v3179
        %v3202 = vsub.f32 %v3088, %v3180
        %v3203 = vmul.f32 %v3181, %v3181
        %v3204 = vmul.f32 %v3182, %v3182
        %v3205 = vmul.f32 %v3183, %v3183
        %v3206 = vmul.f32 %v3184, %v3184
        %v3207 = vmul.f32 %v3185, %v3185
        %v3208 = vmul.f32 %v3186, %v3186
        %v3209 = vmul.f32 %v3187, %v3187
        %v3210 = vmul.f32 %v3188, %v3188
        %v3211 = vmul.f32 %v3189, %v3189
        %v3212 = vmul.f32 %v3190, %v3190
        %v3213 = vmul.f32 %v3191, %v3191
        %v3214 = vmul.f32 %v3192, %v3192
        %v3215 = vmul.f32 %v3193, %v3193
        %v3216 = vmul.f32 %v3194, %v3194
        %v3217 = vmul.f32 %v3195, %v3195
        %v3218 = vmul.f32 %v3196, %v3196
        %v3219 = vmul.f32 %v3197, %v3197
        %v3220 = vmul.f32 %v3198, %v3198
        %v3221 = vmul.f32 %v3199, %v3199
        %v3222 = vmul.f32 %v3200, %v3200
        %v3223 = vmul.f32 %v3201, %v3201
        %v3224 = vmul.f32 %v3202, %v3202
        %v3225 = vsel %vm3091, %v3203, 0.0
        %3226 = vadd.xlane.f32.xlu0 %v3225
        %v3227 = vpop.xlane.xlu0 %3226
        %v3228 = vsel %vm3091, %v3204, 0.0
        %3229 = vadd.xlane.f32.xlu0 %v3228
        %v3230 = vpop.xlane.xlu0 %3229
        %v3231 = vsel %vm3091, %v3205, 0.0
        %3232 = vadd.xlane.f32.xlu0 %v3231
        %v3233 = vpop.xlane.xlu0 %3232
        %v3234 = vsel %vm3091, %v3206, 0.0
        %3235 = vadd.xlane.f32.xlu0 %v3234
        %v3236 = vpop.xlane.xlu0 %3235
        %v3237 = vsel %vm3091, %v3207, 0.0
        %3238 = vadd.xlane.f32.xlu0 %v3237
        %v3239 = vpop.xlane.xlu0 %3238
        %v3240 = vsel %vm3091, %v3208, 0.0
        %3241 = vadd.xlane.f32.xlu0 %v3240
        %v3242 = vpop.xlane.xlu0 %3241
        %v3243 = vsel %vm3091, %v3209, 0.0
        %3244 = vadd.xlane.f32.xlu0 %v3243
        %v3245 = vpop.xlane.xlu0 %3244
        %v3246 = vsel %vm3091, %v3210, 0.0
        %3247 = vadd.xlane.f32.xlu0 %v3246
        %v3248 = vpop.xlane.xlu0 %3247
        %v3249 = vsel %vm3091, %v3211, 0.0
        %3250 = vadd.xlane.f32.xlu0 %v3249
        %v3251 = vpop.xlane.xlu0 %3250
        %v3252 = vsel %vm3091, %v3212, 0.0
        %3253 = vadd.xlane.f32.xlu0 %v3252
        %v3254 = vpop.xlane.xlu0 %3253
        %v3255 = vsel %vm3091, %v3213, 0.0
        %3256 = vadd.xlane.f32.xlu0 %v3255
        %v3257 = vpop.xlane.xlu0 %3256
        %v3258 = vsel %vm3091, %v3214, 0.0
        %3259 = vadd.xlane.f32.xlu0 %v3258
        %v3260 = vpop.xlane.xlu0 %3259
        %v3261 = vsel %vm3091, %v3215, 0.0
        %3262 = vadd.xlane.f32.xlu0 %v3261
        %v3263 = vpop.xlane.xlu0 %3262
        %v3264 = vsel %vm3091, %v3216, 0.0
        %3265 = vadd.xlane.f32.xlu0 %v3264
        %v3266 = vpop.xlane.xlu0 %3265
        %v3267 = vsel %vm3091, %v3217, 0.0
        %3268 = vadd.xlane.f32.xlu0 %v3267
        %v3269 = vpop.xlane.xlu0 %3268
        %v3270 = vsel %vm3091, %v3218, 0.0
        %3271 = vadd.xlane.f32.xlu0 %v3270
        %v3272 = vpop.xlane.xlu0 %3271
        %v3273 = vsel %vm3091, %v3219, 0.0
        %3274 = vadd.xlane.f32.xlu0 %v3273
        %v3275 = vpop.xlane.xlu0 %3274
        %v3276 = vsel %vm3091, %v3220, 0.0
        %3277 = vadd.xlane.f32.xlu0 %v3276
        %v3278 = vpop.xlane.xlu0 %3277
        %v3279 = vsel %vm3091, %v3221, 0.0
        %3280 = vadd.xlane.f32.xlu0 %v3279
        %v3281 = vpop.xlane.xlu0 %3280
        %v3282 = vsel %vm3091, %v3222, 0.0
        %3283 = vadd.xlane.f32.xlu0 %v3282
        %v3284 = vpop.xlane.xlu0 %3283
        %v3285 = vsel %vm3091, %v3223, 0.0
        %3286 = vadd.xlane.f32.xlu0 %v3285
        %v3287 = vpop.xlane.xlu0 %3286
        %v3288 = vsel %vm3091, %v3224, 0.0
        %3289 = vadd.xlane.f32.xlu0 %v3288
        %v3290 = vpop.xlane.xlu0 %3289
        %v3291 = vmul.f32 %v3227, %v3158
        %v3292 = vmul.f32 %v3230, %v3158
        %v3293 = vmul.f32 %v3233, %v3158
        %v3294 = vmul.f32 %v3236, %v3158
        %v3295 = vmul.f32 %v3239, %v3158
        %v3296 = vmul.f32 %v3242, %v3158
        %v3297 = vmul.f32 %v3245, %v3158
        %v3298 = vmul.f32 %v3248, %v3158
        %v3299 = vmul.f32 %v3251, %v3158
        %v3300 = vmul.f32 %v3254, %v3158
        %v3301 = vmul.f32 %v3257, %v3158
        %v3302 = vmul.f32 %v3260, %v3158
        %v3303 = vmul.f32 %v3263, %v3158
        %v3304 = vmul.f32 %v3266, %v3158
        %v3305 = vmul.f32 %v3269, %v3158
        %v3306 = vmul.f32 %v3272, %v3158
        %v3307 = vmul.f32 %v3275, %v3158
        %v3308 = vmul.f32 %v3278, %v3158
        %v3309 = vmul.f32 %v3281, %v3158
        %v3310 = vmul.f32 %v3284, %v3158
        %v3311 = vmul.f32 %v3287, %v3158
        %v3312 = vmul.f32 %v3290, %v3158
        %v3313 = vld [vmem:[%s313] sm:$0xff]
        %v3314 = vld [vmem:[%s313 + $0x8] sm:$0xff]
        %v3315 = vld [vmem:[%s313 + $0x10] sm:$0xff]
        %v3316 = vld [vmem:[%s313 + $0x18] sm:$0xff]
        %v3317 = vld [vmem:[%s313 + $0x20] sm:$0xff]
        %v3318 = vld [vmem:[%s313 + $0x28] sm:$0xff]
        %v3319 = vld [vmem:[%s313 + $0x30] sm:$0xff]
        %v3320 = vld [vmem:[%s313 + $0x38] sm:$0xff]
        %v3321 = vld [vmem:[%s313 + $0x40] sm:$0xff]
        %v3322 = vld [vmem:[%s313 + $0x48] sm:$0xff]
        %v3323 = vld [vmem:[%s313 + $0x50] sm:$0xff]
        %v3324 = vld [vmem:[%s313 + $0x58] sm:$0xff]
        %v3325 = vld [vmem:[%s313 + $0x60] sm:$0xff]
        %v3326 = vld [vmem:[%s313 + $0x68] sm:$0xff]
        %v3327 = vld [vmem:[%s313 + $0x70] sm:$0xff]
        %v3328 = vld [vmem:[%s313 + $0x78] sm:$0xff]
        %v3329 = vld [vmem:[%s313 + $0x80] sm:$0xff]
        %v3330 = vld [vmem:[%s313 + $0x88] sm:$0xff]
        %v3331 = vld [vmem:[%s313 + $0x90] sm:$0xff]
        %v3332 = vld [vmem:[%s313 + $0x98] sm:$0xff]
        %v3333 = vld [vmem:[%s313 + $0xa0] sm:$0xff]
        %v3334 = vld [vmem:[%s313 + $0xa8] sm:$0xff]
        %v3335 = vadd.f32 %v3291, 1e-05
        %v3336 = vadd.f32 %v3292, 1e-05
        %v3337 = vadd.f32 %v3293, 1e-05
        %v3338 = vadd.f32 %v3294, 1e-05
        %v3339 = vadd.f32 %v3295, 1e-05
        %v3340 = vadd.f32 %v3296, 1e-05
        %v3341 = vadd.f32 %v3297, 1e-05
        %v3342 = vadd.f32 %v3298, 1e-05
        %v3343 = vadd.f32 %v3299, 1e-05
        %v3344 = vadd.f32 %v3300, 1e-05
        %v3345 = vadd.f32 %v3301, 1e-05
        %v3346 = vadd.f32 %v3302, 1e-05
        %v3347 = vadd.f32 %v3303, 1e-05
        %v3348 = vadd.f32 %v3304, 1e-05
        %v3349 = vadd.f32 %v3305, 1e-05
        %v3350 = vadd.f32 %v3306, 1e-05
        %v3351 = vadd.f32 %v3307, 1e-05
        %v3352 = vadd.f32 %v3308, 1e-05
        %v3353 = vadd.f32 %v3309, 1e-05
        %v3354 = vadd.f32 %v3310, 1e-05
        %v3355 = vadd.f32 %v3311, 1e-05
        %v3356 = vadd.f32 %v3312, 1e-05
        %v3357 = vrsqrt.pop %v3335
        %v3358 = vrsqrt.pop %v3336
        %v3359 = vrsqrt.pop %v3337
        %v3360 = vrsqrt.pop %v3338
        %v3361 = vrsqrt.pop %v3339
        %v3362 = vrsqrt.pop %v3340
        %v3363 = vrsqrt.pop %v3341
        %v3364 = vrsqrt.pop %v3342
        %v3365 = vrsqrt.pop %v3343
        %v3366 = vrsqrt.pop %v3344
        %v3367 = vrsqrt.pop %v3345
        %v3368 = vrsqrt.pop %v3346
        %v3369 = vrsqrt.pop %v3347
        %v3370 = vrsqrt.pop %v3348
        %v3371 = vrsqrt.pop %v3349
        %v3372 = vrsqrt.pop %v3350
        %v3373 = vrsqrt.pop %v3351
        %v3374 = vrsqrt.pop %v3352
        %v3375 = vrsqrt.pop %v3353
        %v3376 = vrsqrt.pop %v3354
        %v3377 = vrsqrt.pop %v3355
        %v3378 = vrsqrt.pop %v3356
        %v3379 = vmul.f32 %v3313, %v3357
        %v3380 = vmul.f32 %v3314, %v3358
        %v3381 = vmul.f32 %v3315, %v3359
        %v3382 = vmul.f32 %v3316, %v3360
        %v3383 = vmul.f32 %v3317, %v3361
        %v3384 = vmul.f32 %v3318, %v3362
        %v3385 = vmul.f32 %v3319, %v3363
        %v3386 = vmul.f32 %v3320, %v3364
        %v3387 = vmul.f32 %v3321, %v3365
        %v3388 = vmul.f32 %v3322, %v3366
        %v3389 = vmul.f32 %v3323, %v3367
        %v3390 = vmul.f32 %v3324, %v3368
        %v3391 = vmul.f32 %v3325, %v3369
        %v3392 = vmul.f32 %v3326, %v3370
        %v3393 = vmul.f32 %v3327, %v3371
        %v3394 = vmul.f32 %v3328, %v3372
        %v3395 = vmul.f32 %v3329, %v3373
        %v3396 = vmul.f32 %v3330, %v3374
        %v3397 = vmul.f32 %v3331, %v3375
        %v3398 = vmul.f32 %v3332, %v3376
        %v3399 = vmul.f32 %v3333, %v3377
        %v3400 = vmul.f32 %v3334, %v3378
        %v3401 = vld [vmem:[%s327] sm:$0xff]
        %v3402 = vld [vmem:[%s327 + $0x8] sm:$0xff]
        %v3403 = vld [vmem:[%s327 + $0x10] sm:$0xff]
        %v3404 = vld [vmem:[%s327 + $0x18] sm:$0xff]
        %v3405 = vld [vmem:[%s327 + $0x20] sm:$0xff]
        %v3406 = vld [vmem:[%s327 + $0x28] sm:$0xff]
        %v3407 = vld [vmem:[%s327 + $0x30] sm:$0xff]
        %v3408 = vld [vmem:[%s327 + $0x38] sm:$0xff]
        %v3409 = vld [vmem:[%s327 + $0x40] sm:$0xff]
        %v3410 = vld [vmem:[%s327 + $0x48] sm:$0xff]
        %v3411 = vld [vmem:[%s327 + $0x50] sm:$0xff]
        %v3412 = vld [vmem:[%s327 + $0x58] sm:$0xff]
        %v3413 = vld [vmem:[%s327 + $0x60] sm:$0xff]
        %v3414 = vld [vmem:[%s327 + $0x68] sm:$0xff]
        %v3415 = vld [vmem:[%s327 + $0x70] sm:$0xff]
        %v3416 = vld [vmem:[%s327 + $0x78] sm:$0xff]
        %v3417 = vld [vmem:[%s327 + $0x80] sm:$0xff]
        %v3418 = vld [vmem:[%s327 + $0x88] sm:$0xff]
        %v3419 = vld [vmem:[%s327 + $0x90] sm:$0xff]
        %v3420 = vld [vmem:[%s327 + $0x98] sm:$0xff]
        %v3421 = vld [vmem:[%s327 + $0xa0] sm:$0xff]
        %v3422 = vld [vmem:[%s327 + $0xa8] sm:$0xff]
        %v3423 = vmul.f32 %v3159, %v3379
        %v3424 = vmul.f32 %v3160, %v3380
        %v3425 = vmul.f32 %v3161, %v3381
        %v3426 = vmul.f32 %v3162, %v3382
        %v3427 = vmul.f32 %v3163, %v3383
        %v3428 = vmul.f32 %v3164, %v3384
        %v3429 = vmul.f32 %v3165, %v3385
        %v3430 = vmul.f32 %v3166, %v3386
        %v3431 = vmul.f32 %v3167, %v3387
        %v3432 = vmul.f32 %v3168, %v3388
        %v3433 = vmul.f32 %v3169, %v3389
        %v3434 = vmul.f32 %v3170, %v3390
        %v3435 = vmul.f32 %v3171, %v3391
        %v3436 = vmul.f32 %v3172, %v3392
        %v3437 = vmul.f32 %v3173, %v3393
        %v3438 = vmul.f32 %v3174, %v3394
        %v3439 = vmul.f32 %v3175, %v3395
        %v3440 = vmul.f32 %v3176, %v3396
        %v3441 = vmul.f32 %v3177, %v3397
        %v3442 = vmul.f32 %v3178, %v3398
        %v3443 = vmul.f32 %v3179, %v3399
        %v3444 = vmul.f32 %v3180, %v3400
        %v3445 = vsub.f32 %v3401, %v3423
        %v3446 = vsub.f32 %v3402, %v3424
        %v3447 = vsub.f32 %v3403, %v3425
        %v3448 = vsub.f32 %v3404, %v3426
        %v3449 = vsub.f32 %v3405, %v3427
        %v3450 = vsub.f32 %v3406, %v3428
        %v3451 = vsub.f32 %v3407, %v3429
        %v3452 = vsub.f32 %v3408, %v3430
        %v3453 = vsub.f32 %v3409, %v3431
        %v3454 = vsub.f32 %v3410, %v3432
        %v3455 = vsub.f32 %v3411, %v3433
        %v3456 = vsub.f32 %v3412, %v3434
        %v3457 = vsub.f32 %v3413, %v3435
        %v3458 = vsub.f32 %v3414, %v3436
        %v3459 = vsub.f32 %v3415, %v3437
        %v3460 = vsub.f32 %v3416, %v3438
        %v3461 = vsub.f32 %v3417, %v3439
        %v3462 = vsub.f32 %v3418, %v3440
        %v3463 = vsub.f32 %v3419, %v3441
        %v3464 = vsub.f32 %v3420, %v3442
        %v3465 = vsub.f32 %v3421, %v3443
        %v3466 = vsub.f32 %v3422, %v3444
        %3468 = vset.pattern.permute.xlu0 0
        %3469 = vperm.xlu0 %3468, %v3379
        %v3470 = vpop.permute.xlu0 %3469
        %3473 = vset.pattern.permute.xlu0 0
        %3474 = vperm.xlu0 %3473, %v3380
        %v3475 = vpop.permute.xlu0 %3474
        %3478 = vset.pattern.permute.xlu0 0
        %3479 = vperm.xlu0 %3478, %v3381
        %v3480 = vpop.permute.xlu0 %3479
        %3483 = vset.pattern.permute.xlu0 0
        %3484 = vperm.xlu0 %3483, %v3382
        %v3485 = vpop.permute.xlu0 %3484
        %3488 = vset.pattern.permute.xlu0 0
        %3489 = vperm.xlu0 %3488, %v3383
        %v3490 = vpop.permute.xlu0 %3489
        %3493 = vset.pattern.permute.xlu0 0
        %3494 = vperm.xlu0 %3493, %v3384
        %v3495 = vpop.permute.xlu0 %3494
        %3498 = vset.pattern.permute.xlu0 0
        %3499 = vperm.xlu0 %3498, %v3385
        %v3500 = vpop.permute.xlu0 %3499
        %3503 = vset.pattern.permute.xlu0 0
        %3504 = vperm.xlu0 %3503, %v3386
        %v3505 = vpop.permute.xlu0 %3504
        %3508 = vset.pattern.permute.xlu0 0
        %3509 = vperm.xlu0 %3508, %v3387
        %v3510 = vpop.permute.xlu0 %3509
        %3513 = vset.pattern.permute.xlu0 0
        %3514 = vperm.xlu0 %3513, %v3388
        %v3515 = vpop.permute.xlu0 %3514
        %3518 = vset.pattern.permute.xlu0 0
        %3519 = vperm.xlu0 %3518, %v3389
        %v3520 = vpop.permute.xlu0 %3519
        %3523 = vset.pattern.permute.xlu0 0
        %3524 = vperm.xlu0 %3523, %v3390
        %v3525 = vpop.permute.xlu0 %3524
        %3528 = vset.pattern.permute.xlu0 0
        %3529 = vperm.xlu0 %3528, %v3391
        %v3530 = vpop.permute.xlu0 %3529
        %3533 = vset.pattern.permute.xlu0 0
        %3534 = vperm.xlu0 %3533, %v3392
        %v3535 = vpop.permute.xlu0 %3534
        %3538 = vset.pattern.permute.xlu0 0
        %3539 = vperm.xlu0 %3538, %v3393
        %v3540 = vpop.permute.xlu0 %3539
        %3543 = vset.pattern.permute.xlu0 0
        %3544 = vperm.xlu0 %3543, %v3394
        %v3545 = vpop.permute.xlu0 %3544
        %3548 = vset.pattern.permute.xlu0 0
        %3549 = vperm.xlu0 %3548, %v3395
        %v3550 = vpop.permute.xlu0 %3549
        %3553 = vset.pattern.permute.xlu0 0
        %3554 = vperm.xlu0 %3553, %v3396
        %v3555 = vpop.permute.xlu0 %3554
        %3558 = vset.pattern.permute.xlu0 0
        %3559 = vperm.xlu0 %3558, %v3397
        %v3560 = vpop.permute.xlu0 %3559
        %3563 = vset.pattern.permute.xlu0 0
        %3564 = vperm.xlu0 %3563, %v3398
        %v3565 = vpop.permute.xlu0 %3564
        %3568 = vset.pattern.permute.xlu0 0
        %3569 = vperm.xlu0 %3568, %v3399
        %v3570 = vpop.permute.xlu0 %3569
        %3573 = vset.pattern.permute.xlu0 0
        %3574 = vperm.xlu0 %3573, %v3400
        %v3575 = vpop.permute.xlu0 %3574
        %v3577 = vmul.f32 %v3005, %v3470
        %v3578 = vmul.f32 %v3008, %v3475
        %v3579 = vmul.f32 %v3013, %v3480
        %v3580 = vmul.f32 %v3016, %v3485
        %v3581 = vmul.f32 %v3021, %v3490
        %v3582 = vmul.f32 %v3024, %v3495
        %v3583 = vmul.f32 %v3029, %v3500
        %v3584 = vmul.f32 %v3032, %v3505
        %v3585 = vmul.f32 %v3037, %v3510
        %v3586 = vmul.f32 %v3040, %v3515
        %v3587 = vmul.f32 %v3045, %v3520
        %v3588 = vmul.f32 %v3048, %v3525
        %v3589 = vmul.f32 %v3053, %v3530
        %v3590 = vmul.f32 %v3056, %v3535
        %v3591 = vmul.f32 %v3061, %v3540
        %v3592 = vmul.f32 %v3064, %v3545
        %v3593 = vmul.f32 %v3069, %v3550
        %v3594 = vmul.f32 %v3072, %v3555
        %v3595 = vmul.f32 %v3077, %v3560
        %v3596 = vmul.f32 %v3080, %v3565
        %v3597 = vmul.f32 %v3085, %v3570
        %v3598 = vmul.f32 %v3088, %v3575
        %3600 = vset.pattern.permute.xlu0 0
        %3601 = vperm.xlu0 %3600, %v3445
        %v3602 = vpop.permute.xlu0 %3601
        %3605 = vset.pattern.permute.xlu0 0
        %3606 = vperm.xlu0 %3605, %v3446
        %v3607 = vpop.permute.xlu0 %3606
        %3610 = vset.pattern.permute.xlu0 0
        %3611 = vperm.xlu0 %3610, %v3447
        %v3612 = vpop.permute.xlu0 %3611
        %3615 = vset.pattern.permute.xlu0 0
        %3616 = vperm.xlu0 %3615, %v3448
        %v3617 = vpop.permute.xlu0 %3616
        %3620 = vset.pattern.permute.xlu0 0
        %3621 = vperm.xlu0 %3620, %v3449
        %v3622 = vpop.permute.xlu0 %3621
        %3625 = vset.pattern.permute.xlu0 0
        %3626 = vperm.xlu0 %3625, %v3450
        %v3627 = vpop.permute.xlu0 %3626
        %3630 = vset.pattern.permute.xlu0 0
        %3631 = vperm.xlu0 %3630, %v3451
        %v3632 = vpop.permute.xlu0 %3631
        %3635 = vset.pattern.permute.xlu0 0
        %3636 = vperm.xlu0 %3635, %v3452
        %v3637 = vpop.permute.xlu0 %3636
        %3640 = vset.pattern.permute.xlu0 0
        %3641 = vperm.xlu0 %3640, %v3453
        %v3642 = vpop.permute.xlu0 %3641
        %3645 = vset.pattern.permute.xlu0 0
        %3646 = vperm.xlu0 %3645, %v3454
        %v3647 = vpop.permute.xlu0 %3646
        %3650 = vset.pattern.permute.xlu0 0
        %3651 = vperm.xlu0 %3650, %v3455
        %v3652 = vpop.permute.xlu0 %3651
        %3655 = vset.pattern.permute.xlu0 0
        %3656 = vperm.xlu0 %3655, %v3456
        %v3657 = vpop.permute.xlu0 %3656
        %3660 = vset.pattern.permute.xlu0 0
        %3661 = vperm.xlu0 %3660, %v3457
        %v3662 = vpop.permute.xlu0 %3661
        %3665 = vset.pattern.permute.xlu0 0
        %3666 = vperm.xlu0 %3665, %v3458
        %v3667 = vpop.permute.xlu0 %3666
        %3670 = vset.pattern.permute.xlu0 0
        %3671 = vperm.xlu0 %3670, %v3459
        %v3672 = vpop.permute.xlu0 %3671
        %3675 = vset.pattern.permute.xlu0 0
        %3676 = vperm.xlu0 %3675, %v3460
        %v3677 = vpop.permute.xlu0 %3676
        %3680 = vset.pattern.permute.xlu0 0
        %3681 = vperm.xlu0 %3680, %v3461
        %v3682 = vpop.permute.xlu0 %3681
        %3685 = vset.pattern.permute.xlu0 0
        %3686 = vperm.xlu0 %3685, %v3462
        %v3687 = vpop.permute.xlu0 %3686
        %3690 = vset.pattern.permute.xlu0 0
        %3691 = vperm.xlu0 %3690, %v3463
        %v3692 = vpop.permute.xlu0 %3691
        %3695 = vset.pattern.permute.xlu0 0
        %3696 = vperm.xlu0 %3695, %v3464
        %v3697 = vpop.permute.xlu0 %3696
        %3700 = vset.pattern.permute.xlu0 0
        %3701 = vperm.xlu0 %3700, %v3465
        %v3702 = vpop.permute.xlu0 %3701
        %3705 = vset.pattern.permute.xlu0 0
        %3706 = vperm.xlu0 %3705, %v3466
        %v3707 = vpop.permute.xlu0 %3706
        %v3709 = vadd.f32 %v3577, %v3602
        %v3710 = vadd.f32 %v3578, %v3607
        %v3711 = vadd.f32 %v3579, %v3612
        %v3712 = vadd.f32 %v3580, %v3617
        %v3713 = vadd.f32 %v3581, %v3622
        %v3714 = vadd.f32 %v3582, %v3627
        %v3715 = vadd.f32 %v3583, %v3632
        %v3716 = vadd.f32 %v3584, %v3637
        %v3717 = vadd.f32 %v3585, %v3642
        %v3718 = vadd.f32 %v3586, %v3647
        %v3719 = vadd.f32 %v3587, %v3652
        %v3720 = vadd.f32 %v3588, %v3657
        %v3721 = vadd.f32 %v3589, %v3662
        %v3722 = vadd.f32 %v3590, %v3667
        %v3723 = vadd.f32 %v3591, %v3672
        %v3724 = vadd.f32 %v3592, %v3677
        %v3725 = vadd.f32 %v3593, %v3682
        %v3726 = vadd.f32 %v3594, %v3687
        %v3727 = vadd.f32 %v3595, %v3692
        %v3728 = vadd.f32 %v3596, %v3697
        %v3729 = vadd.f32 %v3597, %v3702
        %v3730 = vadd.f32 %v3598, %v3707
        %3731 = vst.msk [vmem:[%s287] sm:$0xff] %vm3091, %v3709
        %3732 = vst.msk [vmem:[%s287 + $0x8] sm:$0xff] %vm3091, %v3710
        %3733 = vst.msk [vmem:[%s287 + $0x10] sm:$0xff] %vm3091, %v3711
        %3734 = vst.msk [vmem:[%s287 + $0x18] sm:$0xff] %vm3091, %v3712
        %3735 = vst.msk [vmem:[%s287 + $0x20] sm:$0xff] %vm3091, %v3713
        %3736 = vst.msk [vmem:[%s287 + $0x28] sm:$0xff] %vm3091, %v3714
        %3737 = vst.msk [vmem:[%s287 + $0x30] sm:$0xff] %vm3091, %v3715
        %3738 = vst.msk [vmem:[%s287 + $0x38] sm:$0xff] %vm3091, %v3716
        %3739 = vst.msk [vmem:[%s287 + $0x40] sm:$0xff] %vm3091, %v3717
        %3740 = vst.msk [vmem:[%s287 + $0x48] sm:$0xff] %vm3091, %v3718
        %3741 = vst.msk [vmem:[%s287 + $0x50] sm:$0xff] %vm3091, %v3719
        %3742 = vst.msk [vmem:[%s287 + $0x58] sm:$0xff] %vm3091, %v3720
        %3743 = vst.msk [vmem:[%s287 + $0x60] sm:$0xff] %vm3091, %v3721
        %3744 = vst.msk [vmem:[%s287 + $0x68] sm:$0xff] %vm3091, %v3722
        %3745 = vst.msk [vmem:[%s287 + $0x70] sm:$0xff] %vm3091, %v3723
        %3746 = vst.msk [vmem:[%s287 + $0x78] sm:$0xff] %vm3091, %v3724
        %3747 = vst.msk [vmem:[%s287 + $0x80] sm:$0xff] %vm3091, %v3725
        %3748 = vst.msk [vmem:[%s287 + $0x88] sm:$0xff] %vm3091, %v3726
        %3749 = vst.msk [vmem:[%s287 + $0x90] sm:$0xff] %vm3091, %v3727
        %3750 = vst.msk [vmem:[%s287 + $0x98] sm:$0xff] %vm3091, %v3728
        %3751 = vst.msk [vmem:[%s287 + $0xa0] sm:$0xff] %vm3091, %v3729
        %3752 = vst.msk [vmem:[%s287 + $0xa8] sm:$0xff] %vm3091, %v3730
        %s3753 = sand.u32 %s144, 1
        %s3754 = sand.u32 %s144, 1
        %s3755 = smul.addr %s3754, 176
        %s3756 = scalar_lea.vmem [#allocation2], %s3755
        // Predicated region
        $region41: #{fused_sigmoid_mul_conv_bn.1} parent=39 // pred_check
          %p3757 = pneg %p154
        $region42: #{fused_sigmoid_mul_conv_bn.1} parent=39 // pred_check_branch
          %3759 = sbr.rel (%p3757) target = $region44
        $region43: #{fused_sigmoid_mul_conv_bn.1} parent=39 // pred_region
          %s3760 = smul.u32 22, %s16
          %s3761 = ssub.s32 43, %s3760
          %p3762 = scmp.lt.s32.totalorder %s3761, 22
          %s3763 = scalar_select %p3762, %s3761, 22
          %s3764 = smul.u32 128, %s3763
          %p3765 = scmp.ne.s32.totalorder 0, %s3764
          %s3766 = smul.addr %s3760, 8
          %s3767 = scalar_lea.vmem %s5, %s3766
          // Predicated region
          $region45: #{fused_sigmoid_mul_conv_bn.1} parent=43 // pred_check
            %p3768 = pneg %p3765
          $region46: #{fused_sigmoid_mul_conv_bn.1} parent=43 // pred_check_branch
            %3770 = sbr.rel (%p3768) target = $region48
          $region47: #{fused_sigmoid_mul_conv_bn.1} parent=43 // pred_region
            // Predicated region
            $region49: #{fused_sigmoid_mul_conv_bn.1} parent=47 // pred_check
              _
            $region50: #{fused_sigmoid_mul_conv_bn.1} parent=47 // pred_check_branch
              %3772 = sbr.rel (0) target = $region52
            $region51: #{fused_sigmoid_mul_conv_bn.1} parent=47 // pred_region
              // Predicated region
              $region71: #{fused_sigmoid_mul_conv_bn.1} parent=51 // pred_check
                _
              $region72: #{fused_sigmoid_mul_conv_bn.1} parent=51 // pred_check_branch
                %3865 = sbr.rel (0) target = $region74
              $region73: #{fused_sigmoid_mul_conv_bn.1} parent=51 // pred_region
                %s3866 = sdiv.u32.pop %s3763, 22
                %s3867 = srem.u32.pop %s3763, 22
                // While loop
                $region75: #{fused_sigmoid_mul_conv_bn.1} parent=73 // loop_pre_header
                  _
                $region76: #{fused_sigmoid_mul_conv_bn.1} parent=73 // loop_header
                  %s3869 = sphi 0, %s3871
                  %p3870 = scmp.ge.s32.totalorder %s3869, %s3866
                  %s3874 = sphi 0, %s3923
                  %s3875 = sphi %s3756, %s3926
                  %s3876 = sphi %s3767, %s3927
                $region77: #{fused_sigmoid_mul_conv_bn.1} parent=73 // loop_header_branch
                  %3873 = sbr.rel (%p3870) target = $region81
                $region78: #{fused_sigmoid_mul_conv_bn.1} parent=73 // loop_body
                  %v3877 = vld [vmem:[%s3875] sm:$0xff]
                  %3878 = vst [vmem:[%s3876] sm:$0xff] %v3877
                  %v3879 = vld [vmem:[%s3875 + $0x8] sm:$0xff]
                  %3880 = vst [vmem:[%s3876 + $0x8] sm:$0xff] %v3879
                  %v3881 = vld [vmem:[%s3875 + $0x10] sm:$0xff]
                  %3882 = vst [vmem:[%s3876 + $0x10] sm:$0xff] %v3881
                  %v3883 = vld [vmem:[%s3875 + $0x18] sm:$0xff]
                  %3884 = vst [vmem:[%s3876 + $0x18] sm:$0xff] %v3883
                  %v3885 = vld [vmem:[%s3875 + $0x20] sm:$0xff]
                  %3886 = vst [vmem:[%s3876 + $0x20] sm:$0xff] %v3885
                  %v3887 = vld [vmem:[%s3875 + $0x28] sm:$0xff]
                  %3888 = vst [vmem:[%s3876 + $0x28] sm:$0xff] %v3887
                  %v3889 = vld [vmem:[%s3875 + $0x30] sm:$0xff]
                  %3890 = vst [vmem:[%s3876 + $0x30] sm:$0xff] %v3889
                  %v3891 = vld [vmem:[%s3875 + $0x38] sm:$0xff]
                  %3892 = vst [vmem:[%s3876 + $0x38] sm:$0xff] %v3891
                  %v3893 = vld [vmem:[%s3875 + $0x40] sm:$0xff]
                  %3894 = vst [vmem:[%s3876 + $0x40] sm:$0xff] %v3893
                  %v3895 = vld [vmem:[%s3875 + $0x48] sm:$0xff]
                  %3896 = vst [vmem:[%s3876 + $0x48] sm:$0xff] %v3895
                  %v3897 = vld [vmem:[%s3875 + $0x50] sm:$0xff]
                  %3898 = vst [vmem:[%s3876 + $0x50] sm:$0xff] %v3897
                  %v3899 = vld [vmem:[%s3875 + $0x58] sm:$0xff]
                  %3900 = vst [vmem:[%s3876 + $0x58] sm:$0xff] %v3899
                  %v3901 = vld [vmem:[%s3875 + $0x60] sm:$0xff]
                  %3902 = vst [vmem:[%s3876 + $0x60] sm:$0xff] %v3901
                  %v3903 = vld [vmem:[%s3875 + $0x68] sm:$0xff]
                  %3904 = vst [vmem:[%s3876 + $0x68] sm:$0xff] %v3903
                  %v3905 = vld [vmem:[%s3875 + $0x70] sm:$0xff]
                  %3906 = vst [vmem:[%s3876 + $0x70] sm:$0xff] %v3905
                  %v3907 = vld [vmem:[%s3875 + $0x78] sm:$0xff]
                  %3908 = vst [vmem:[%s3876 + $0x78] sm:$0xff] %v3907
                  %v3909 = vld [vmem:[%s3875 + $0x80] sm:$0xff]
                  %3910 = vst [vmem:[%s3876 + $0x80] sm:$0xff] %v3909
                  %v3911 = vld [vmem:[%s3875 + $0x88] sm:$0xff]
                  %3912 = vst [vmem:[%s3876 + $0x88] sm:$0xff] %v3911
                  %v3913 = vld [vmem:[%s3875 + $0x90] sm:$0xff]
                  %3914 = vst [vmem:[%s3876 + $0x90] sm:$0xff] %v3913
                  %v3915 = vld [vmem:[%s3875 + $0x98] sm:$0xff]
                  %3916 = vst [vmem:[%s3876 + $0x98] sm:$0xff] %v3915
                  %v3917 = vld [vmem:[%s3875 + $0xa0] sm:$0xff]
                  %3918 = vst [vmem:[%s3876 + $0xa0] sm:$0xff] %v3917
                  %v3919 = vld [vmem:[%s3875 + $0xa8] sm:$0xff]
                  %3920 = vst [vmem:[%s3876 + $0xa8] sm:$0xff] %v3919
                  %s3921 = sadd.s32 1, %s3874
                  %p3922 = scmp.ge.s32.totalorder %s3921, %s3866
                  %s3923 = scalar_select %p3922, 0, %s3921
                  %s3924 = smul.u32 %s3923, 176
                  %s3925 = smul.u32 %s3923, 176
                  %s3926 = scalar_lea.vmem %s3756, %s3924 [#allocation2]
                  %s3927 = scalar_lea.vmem %s3767, %s3925
                $region79: #{fused_sigmoid_mul_conv_bn.1} parent=73 // loop_footer
                  %s3871 = sadd.s32 %s3869, 1
                $region80: #{fused_sigmoid_mul_conv_bn.1} parent=73 // loop_footer_branch
                  %3868 = sbr.rel target = $region76
                $region81: #{fused_sigmoid_mul_conv_bn.1} parent=73 // loop_exit
                  _
                %s3928 = sdiv.u32.pop %s3763, 22
                %s3929 = srem.u32.pop %s3763, 22
                %s3930 = smul.u32 %s3928, 22
                %s3931 = smul.u32 8, %s3930
                %s3932 = scalar_lea.vmem %s3756, %s3931 [#allocation2]
                %s3933 = smul.u32 8, %s3930
                %s3934 = scalar_lea.vmem %s3767, %s3933
                // While loop
                $region82: #{fused_sigmoid_mul_conv_bn.1} parent=73 // loop_pre_header
                  _
                $region83: #{fused_sigmoid_mul_conv_bn.1} parent=73 // loop_header
                  %s3936 = sphi 0, %s3938
                  %p3937 = scmp.ge.s32.totalorder %s3936, %s3929
                  %s3941 = sphi 0, %s3948
                  %s3942 = sphi %s3932, %s3951
                  %s3943 = sphi %s3934, %s3952
                $region84: #{fused_sigmoid_mul_conv_bn.1} parent=73 // loop_header_branch
                  %3940 = sbr.rel (%p3937) target = $region88
                $region85: #{fused_sigmoid_mul_conv_bn.1} parent=73 // loop_body
                  %v3944 = vld [vmem:[%s3942] sm:$0xff]
                  %3945 = vst [vmem:[%s3943] sm:$0xff] %v3944
                  %s3946 = sadd.s32 1, %s3941
                  %p3947 = scmp.ge.s32.totalorder %s3946, %s3929
                  %s3948 = scalar_select %p3947, 0, %s3946
                  %s3949 = smul.u32 %s3948, 8
                  %s3950 = smul.u32 %s3948, 8
                  %s3951 = scalar_lea.vmem %s3932, %s3949 [#allocation2]
                  %s3952 = scalar_lea.vmem %s3934, %s3950
                $region86: #{fused_sigmoid_mul_conv_bn.1} parent=73 // loop_footer
                  %s3938 = sadd.s32 %s3936, 1
                $region87: #{fused_sigmoid_mul_conv_bn.1} parent=73 // loop_footer_branch
                  %3935 = sbr.rel target = $region83
                $region88: #{fused_sigmoid_mul_conv_bn.1} parent=73 // loop_exit
                  _
              $region74: #{fused_sigmoid_mul_conv_bn.1} parent=51 // pred_fallthru
                _
              // Predicated region
              $region89: #{fused_sigmoid_mul_conv_bn.1} parent=51 // pred_check
                _
              $region90: #{fused_sigmoid_mul_conv_bn.1} parent=51 // pred_check_branch
                %3954 = sbr.rel target = $region92
              $region91: #{fused_sigmoid_mul_conv_bn.1} parent=51 // pred_region
                _
              $region92: #{fused_sigmoid_mul_conv_bn.1} parent=51 // pred_fallthru
                _
            $region52: #{fused_sigmoid_mul_conv_bn.1} parent=47 // pred_fallthru
              _
            // Predicated region
            $region53: #{fused_sigmoid_mul_conv_bn.1} parent=47 // pred_check
              _
            $region54: #{fused_sigmoid_mul_conv_bn.1} parent=47 // pred_check_branch
              %3774 = sbr.rel target = $region56
            $region55: #{fused_sigmoid_mul_conv_bn.1} parent=47 // pred_region
              %s3776 = ssub.s32 256, 1
              %s3777 = sdiv.u32.pop %s3763, 22
              %s3778 = srem.u32.pop %s3763, 22
              // While loop
              $region57: #{fused_sigmoid_mul_conv_bn.1} parent=55 // loop_pre_header
                _
              $region58: #{fused_sigmoid_mul_conv_bn.1} parent=55 // loop_header
                %s3780 = sphi 0, %s3782
                %p3781 = scmp.ge.s32.totalorder %s3780, %s3777
                %s3785 = sphi 0, %s3834
                %s3786 = sphi %s3756, %s3837
                %s3787 = sphi %s3767, %s3838
              $region59: #{fused_sigmoid_mul_conv_bn.1} parent=55 // loop_header_branch
                %3784 = sbr.rel (%p3781) target = $region63
              $region60: #{fused_sigmoid_mul_conv_bn.1} parent=55 // loop_body
                %v3788 = vld [vmem:[%s3786] sm:%s3776]
                %3789 = vst [vmem:[%s3787] sm:%s3776] %v3788
                %v3790 = vld [vmem:[%s3786 + $0x8] sm:%s3776]
                %3791 = vst [vmem:[%s3787 + $0x8] sm:%s3776] %v3790
                %v3792 = vld [vmem:[%s3786 + $0x10] sm:%s3776]
                %3793 = vst [vmem:[%s3787 + $0x10] sm:%s3776] %v3792
                %v3794 = vld [vmem:[%s3786 + $0x18] sm:%s3776]
                %3795 = vst [vmem:[%s3787 + $0x18] sm:%s3776] %v3794
                %v3796 = vld [vmem:[%s3786 + $0x20] sm:%s3776]
                %3797 = vst [vmem:[%s3787 + $0x20] sm:%s3776] %v3796
                %v3798 = vld [vmem:[%s3786 + $0x28] sm:%s3776]
                %3799 = vst [vmem:[%s3787 + $0x28] sm:%s3776] %v3798
                %v3800 = vld [vmem:[%s3786 + $0x30] sm:%s3776]
                %3801 = vst [vmem:[%s3787 + $0x30] sm:%s3776] %v3800
                %v3802 = vld [vmem:[%s3786 + $0x38] sm:%s3776]
                %3803 = vst [vmem:[%s3787 + $0x38] sm:%s3776] %v3802
                %v3804 = vld [vmem:[%s3786 + $0x40] sm:%s3776]
                %3805 = vst [vmem:[%s3787 + $0x40] sm:%s3776] %v3804
                %v3806 = vld [vmem:[%s3786 + $0x48] sm:%s3776]
                %3807 = vst [vmem:[%s3787 + $0x48] sm:%s3776] %v3806
                %v3808 = vld [vmem:[%s3786 + $0x50] sm:%s3776]
                %3809 = vst [vmem:[%s3787 + $0x50] sm:%s3776] %v3808
                %v3810 = vld [vmem:[%s3786 + $0x58] sm:%s3776]
                %3811 = vst [vmem:[%s3787 + $0x58] sm:%s3776] %v3810
                %v3812 = vld [vmem:[%s3786 + $0x60] sm:%s3776]
                %3813 = vst [vmem:[%s3787 + $0x60] sm:%s3776] %v3812
                %v3814 = vld [vmem:[%s3786 + $0x68] sm:%s3776]
                %3815 = vst [vmem:[%s3787 + $0x68] sm:%s3776] %v3814
                %v3816 = vld [vmem:[%s3786 + $0x70] sm:%s3776]
                %3817 = vst [vmem:[%s3787 + $0x70] sm:%s3776] %v3816
                %v3818 = vld [vmem:[%s3786 + $0x78] sm:%s3776]
                %3819 = vst [vmem:[%s3787 + $0x78] sm:%s3776] %v3818
                %v3820 = vld [vmem:[%s3786 + $0x80] sm:%s3776]
                %3821 = vst [vmem:[%s3787 + $0x80] sm:%s3776] %v3820
                %v3822 = vld [vmem:[%s3786 + $0x88] sm:%s3776]
                %3823 = vst [vmem:[%s3787 + $0x88] sm:%s3776] %v3822
                %v3824 = vld [vmem:[%s3786 + $0x90] sm:%s3776]
                %3825 = vst [vmem:[%s3787 + $0x90] sm:%s3776] %v3824
                %v3826 = vld [vmem:[%s3786 + $0x98] sm:%s3776]
                %3827 = vst [vmem:[%s3787 + $0x98] sm:%s3776] %v3826
                %v3828 = vld [vmem:[%s3786 + $0xa0] sm:%s3776]
                %3829 = vst [vmem:[%s3787 + $0xa0] sm:%s3776] %v3828
                %v3830 = vld [vmem:[%s3786 + $0xa8] sm:%s3776]
                %3831 = vst [vmem:[%s3787 + $0xa8] sm:%s3776] %v3830
                %s3832 = sadd.s32 1, %s3785
                %p3833 = scmp.ge.s32.totalorder %s3832, %s3777
                %s3834 = scalar_select %p3833, 0, %s3832
                %s3835 = smul.u32 %s3834, 176
                %s3836 = smul.u32 %s3834, 176
                %s3837 = scalar_lea.vmem %s3756, %s3835 [#allocation2]
                %s3838 = scalar_lea.vmem %s3767, %s3836
              $region61: #{fused_sigmoid_mul_conv_bn.1} parent=55 // loop_footer
                %s3782 = sadd.s32 %s3780, 1
              $region62: #{fused_sigmoid_mul_conv_bn.1} parent=55 // loop_footer_branch
                %3779 = sbr.rel target = $region58
              $region63: #{fused_sigmoid_mul_conv_bn.1} parent=55 // loop_exit
                _
              %s3839 = sdiv.u32.pop %s3763, 22
              %s3840 = srem.u32.pop %s3763, 22
              %s3841 = smul.u32 %s3839, 22
              %s3842 = smul.u32 8, %s3841
              %s3843 = scalar_lea.vmem %s3756, %s3842 [#allocation2]
              %s3844 = smul.u32 8, %s3841
              %s3845 = scalar_lea.vmem %s3767, %s3844
              // While loop
              $region64: #{fused_sigmoid_mul_conv_bn.1} parent=55 // loop_pre_header
                _
              $region65: #{fused_sigmoid_mul_conv_bn.1} parent=55 // loop_header
                %s3847 = sphi 0, %s3849
                %p3848 = scmp.ge.s32.totalorder %s3847, %s3840
                %s3852 = sphi 0, %s3859
                %s3853 = sphi %s3843, %s3862
                %s3854 = sphi %s3845, %s3863
              $region66: #{fused_sigmoid_mul_conv_bn.1} parent=55 // loop_header_branch
                %3851 = sbr.rel (%p3848) target = $region70
              $region67: #{fused_sigmoid_mul_conv_bn.1} parent=55 // loop_body
                %v3855 = vld [vmem:[%s3853] sm:%s3776]
                %3856 = vst [vmem:[%s3854] sm:%s3776] %v3855
                %s3857 = sadd.s32 1, %s3852
                %p3858 = scmp.ge.s32.totalorder %s3857, %s3840
                %s3859 = scalar_select %p3858, 0, %s3857
                %s3860 = smul.u32 %s3859, 8
                %s3861 = smul.u32 %s3859, 8
                %s3862 = scalar_lea.vmem %s3843, %s3860 [#allocation2]
                %s3863 = scalar_lea.vmem %s3845, %s3861
              $region68: #{fused_sigmoid_mul_conv_bn.1} parent=55 // loop_footer
                %s3849 = sadd.s32 %s3847, 1
              $region69: #{fused_sigmoid_mul_conv_bn.1} parent=55 // loop_footer_branch
                %3846 = sbr.rel target = $region65
              $region70: #{fused_sigmoid_mul_conv_bn.1} parent=55 // loop_exit
                _
            $region56: #{fused_sigmoid_mul_conv_bn.1} parent=47 // pred_fallthru
              _
          $region48: #{fused_sigmoid_mul_conv_bn.1} parent=43 // pred_fallthru
            _
          %3955 = vnop
        $region44: #{fused_sigmoid_mul_conv_bn.1} parent=39 // pred_fallthru
          _
      $region40: #{fused_sigmoid_mul_conv_bn.1} parent=5 // pred_fallthru
        _
      %p3956 = scmp.le.s32.totalorder 2, %s11
      // Predicated region
      $region93: #{fused_sigmoid_mul_conv_bn.1} parent=5 // pred_check
        %p3957 = pneg %p3956
      $region94: #{fused_sigmoid_mul_conv_bn.1} parent=5 // pred_check_branch
        %3959 = sbr.rel (%p3957) target = $region96
      $region95: #{fused_sigmoid_mul_conv_bn.1} parent=5 // pred_region
        %s3960 = ssub.s32 %s11, 2
        // Predicated region
        $region97: #{fused_sigmoid_mul_conv_bn.1} parent=95 // pred_check
          %p3961 = pneg %p160
        $region98: #{fused_sigmoid_mul_conv_bn.1} parent=95 // pred_check_branch
          %3963 = sbr.rel (%p3961) target = $region100
        $region99: #{fused_sigmoid_mul_conv_bn.1} parent=95 // pred_region
          %s3964 = sand.u32 %s145, 1
          %s3965 = sand.u32 %s145, 1
          %s3966 = smul.addr %s3965, 176
          %s3967 = scalar_lea.vmem [#allocation2], %s3966
        $region100: #{fused_sigmoid_mul_conv_bn.1} parent=95 // pred_fallthru
          _
      $region96: #{fused_sigmoid_mul_conv_bn.1} parent=5 // pred_fallthru
        _
    $region6: #{fused_sigmoid_mul_conv_bn.1} parent=1 // loop_footer
      %s15 = sadd.s32 1, %s11
    $region7: #{fused_sigmoid_mul_conv_bn.1} parent=1 // loop_footer_branch
      %10 = sbr.rel target = $region3
    $region8: #{fused_sigmoid_mul_conv_bn.1} parent=1 // loop_exit
      _

</llo_original>
